<compile_context>
chip_gen: v5e
topology: v5e:2x2
jax: 0.10.0
libtpu: 0.0.40
codegen_flags: <defaults>
</compile_context>

<pallas_src>
import functools

import jax
import jax.numpy as jnp
from jax import lax
from jax.experimental import pallas as pl
from jax.experimental.pallas import tpu as pltpu


# ----------------------------- Pallas kernel -------------------------------


def _make_encoder_kernel(n_layers: int, hid_dim: int, t_blk: int, b_chunk: int):
    """Fused encoder-LSTM kernel: grid = (batch_chunks, time_blocks)."""
    H = hid_dim
    nl = n_layers

    def kernel(p0_ref, *rest):
        # p0_ref: (t_blk, b_chunk, 4H) f32 -- hoisted layer-0 proj (+ bias 0).
        w_hh_refs = rest[:nl]                      # each (H, 4H) bf16
        w_ih_refs = rest[nl:2 * nl - 1]            # layers 1.. : (H, 4H) bf16
        b_refs = rest[2 * nl - 1:3 * nl - 2]       # layers 1.. : (1, 4H) f32
        h_out_ref = rest[3 * nl - 2]               # (nl, b_chunk, H) f32
        c_out_ref = rest[3 * nl - 1]               # (nl, b_chunk, H) f32
        h_sc = rest[3 * nl]                        # VMEM scratch (nl, b_chunk, H) bf16
        c_sc = rest[3 * nl + 1]                    # VMEM scratch (nl, b_chunk, H) f32

        ti = pl.program_id(1)

        @pl.when(ti == 0)
        def _init():
            # PyTorch nn.LSTM defaults to zero initial states.
            h_sc[...] = jnp.zeros_like(h_sc)
            c_sc[...] = jnp.zeros_like(c_sc)

        # Loop-invariant hoists: weight reads + bias broadcasts (no per-step
        # re-broadcast on the VPU inside the serial chain).
        w_hh = [w_hh_refs[l][...] for l in range(nl)]
        w_ih = [w_ih_refs[j][...] for j in range(nl - 1)]
        biases = [jnp.broadcast_to(b_refs[j][...], (b_chunk, 4 * H))
                  for j in range(nl - 1)]

        def step(t, carry):
            hs, cs = carry                         # tuples of (b_chunk, H); hs bf16, cs f32
            p0 = p0_ref[t]                         # (b_chunk, 4H) f32
            hs_new, cs_new = [], []
            x = None
            for l in range(nl):
                if l == 0:
                    # Input projection + bias already folded into p0.
                    gates = p0 + jnp.dot(hs[0], w_hh[0],
                                         preferred_element_type=jnp.float32)
                else:
                    gates = (jnp.dot(x, w_ih[l - 1],
                                     preferred_element_type=jnp.float32)
                             + jnp.dot(hs[l], w_hh[l],
                                       preferred_element_type=jnp.float32)
                             + biases[l - 1])
                # Gate layout [i, f, o, g]: one sigmoid over (B, 3H), one tanh.
                ifo = jax.nn.sigmoid(gates[:, :3 * H])
                g = jnp.tanh(gates[:, 3 * H:])
                i_g = ifo[:, 0 * H:1 * H]
                f_g = ifo[:, 1 * H:2 * H]
                o_g = ifo[:, 2 * H:3 * H]
                c_new = f_g * cs[l] + i_g * g
                h_new = (o_g * jnp.tanh(c_new)).astype(jnp.bfloat16)
                hs_new.append(h_new)
                cs_new.append(c_new)
                x = h_new                          # inter-layer dropout: identity (eval)
            return tuple(hs_new), tuple(cs_new)

        h0 = tuple(h_sc[l] for l in range(nl))
        c0 = tuple(c_sc[l] for l in range(nl))
        hs, cs = lax.fori_loop(0, t_blk, step, (h0, c0), unroll=True)
        for l in range(nl):
            h_sc[l] = hs[l]
            c_sc[l] = cs[l]

        @pl.when(ti == pl.num_programs(1) - 1)
        def _finalize():
            h_out_ref[...] = h_sc[...].astype(jnp.float32)
            c_out_ref[...] = c_sc[...]

    return kernel


def encoder_lstm(p0, ws_hh, ws_ih_rest, bs_rest, *, n_layers, hid_dim,
                 batch_chunk=None, t_block=None):
    """p0: (seq, B, 4H) f32 hoisted layer-0 projection (+bias).
    ws_hh[l]: (H, 4H) bf16; ws_ih_rest[l-1], bs_rest[l-1] for layers >= 1."""
    seq_len, B, G = p0.shape
    H = hid_dim
    assert G == 4 * H
    assert H % 128 == 0, "hid_dim must be lane-aligned (multiple of 128)"
    b_chunk = B if batch_chunk is None else batch_chunk
    assert B % b_chunk == 0 and b_chunk % 8 == 0, "batch chunks must be sublane-aligned"
    t_blk = seq_len if t_block is None else t_block
    assert seq_len % t_blk == 0
    nb = B // b_chunk
    nt = seq_len // t_blk

    kernel = _make_encoder_kernel(n_layers, hid_dim, t_blk, b_chunk)

    in_specs = [pl.BlockSpec((t_blk, b_chunk, 4 * H), lambda bi, ti: (ti, bi, 0))]
    in_specs += [pl.BlockSpec(w.shape, lambda bi, ti: (0, 0)) for w in ws_hh]
    in_specs += [pl.BlockSpec(w.shape, lambda bi, ti: (0, 0)) for w in ws_ih_rest]
    in_specs += [pl.BlockSpec(b.shape, lambda bi, ti: (0, 0)) for b in bs_rest]

    out_block = (n_layers, b_chunk, H)
    out_specs = [pl.BlockSpec(out_block, lambda bi, ti: (0, bi, 0)),
                 pl.BlockSpec(out_block, lambda bi, ti: (0, bi, 0))]
    out_shape = (jax.ShapeDtypeStruct((n_layers, B, H), jnp.float32),
                 jax.ShapeDtypeStruct((n_layers, B, H), jnp.float32))

    grid_spec = pltpu.PrefetchScalarGridSpec(
        num_scalar_prefetch=0,
        grid=(nb, nt),
        in_specs=in_specs,
        out_specs=out_specs,
        scratch_shapes=[pltpu.VMEM(out_block, jnp.bfloat16),   # h state (MXU operand)
                        pltpu.VMEM(out_block, jnp.float32)],   # c state
    )

    return pl.pallas_call(
        kernel,
        grid_spec=grid_spec,
        out_shape=out_shape,
        compiler_params=pltpu.CompilerParams(
            # batch chunks are independent (megacore on v7x); time is a recurrence.
            dimension_semantics=("parallel", "arbitrary"),
            vmem_limit_bytes=48 * 1024 * 1024,   # leave headroom on v7x's 64 MiB
        ),
    )(p0, *ws_hh, *ws_ih_rest, *bs_rest)


# ------------------------------ Encoder module ------------------------------


def init_encoder_params(key, input_dim, emb_dim, hid_dim, n_layers):
    """PyTorch-like init. Gate column layout is [i, f, o, g] (a pure permutation
    of PyTorch's [i, f, g, o]); biases pre-summed (b = b_ih + b_hh)."""
    keys = jax.random.split(key, 1 + 4 * n_layers)
    params = {
        "embedding": jax.random.normal(keys[0], (input_dim, emb_dim), jnp.float32)
    }
    bound = 1.0 / float(hid_dim) ** 0.5
    layers = []
    for l in range(n_layers):
        in_dim = emb_dim if l == 0 else hid_dim
        k0, k1, k2, k3 = keys[1 + 4 * l: 1 + 4 * (l + 1)]
        w_ih = jax.random.uniform(k0, (in_dim, 4 * hid_dim), jnp.float32, -bound, bound)
        w_hh = jax.random.uniform(k1, (hid_dim, 4 * hid_dim), jnp.float32, -bound, bound)
        b_ih = jax.random.uniform(k2, (1, 4 * hid_dim), jnp.float32, -bound, bound)
        b_hh = jax.random.uniform(k3, (1, 4 * hid_dim), jnp.float32, -bound, bound)
        layers.append({"w_ih": w_ih.astype(jnp.bfloat16),
                       "w_hh": w_hh.astype(jnp.bfloat16),
                       "b": b_ih + b_hh})
    params["lstm"] = layers
    return params


@functools.partial(jax.jit,
                   static_argnames=("n_layers", "hid_dim", "batch_chunk", "t_block"))
def encoder_forward(params, src, *, n_layers, hid_dim, batch_chunk=None, t_block=None):
    """Mirrors Encoder.forward (return_states_hist=False).

    src: (seq_len, B) int32 token ids.
    Returns (hidden, cell), each (n_layers, B, hid_dim) f32.
    """
    emb = params["embedding"][src].astype(jnp.bfloat16)        # (seq, B, emb)
    seq_len, B, emb_dim = emb.shape
    H = hid_dim
    l0 = params["lstm"][0]
    # Hoisted layer-0 input projection: one high-M matmul off the serial chain
    # (fused by XLA with the gather + cast), bias folded in.
    p0 = (jnp.dot(emb.reshape(seq_len * B, emb_dim), l0["w_ih"],
                  preferred_element_type=jnp.float32)
          .reshape(seq_len, B, 4 * H) + l0["b"])
    ws_hh = tuple(layer["w_hh"] for layer in params["lstm"])
    ws_ih_rest = tuple(layer["w_ih"] for layer in params["lstm"][1:])
    bs_rest = tuple(layer["b"] for layer in params["lstm"][1:])
    return encoder_lstm(p0, ws_hh, ws_ih_rest, bs_rest,
                        n_layers=n_layers, hid_dim=hid_dim,
                        batch_chunk=batch_chunk, t_block=t_block)


def encoder_reference(params, src, *, n_layers, hid_dim):
    """Pure-JAX reference with identical numerics (bf16 operands, f32 accum,
    hoisted layer-0 projection, [i,f,o,g] gate layout, bf16 h / f32 c states)."""
    emb = params["embedding"][src].astype(jnp.bfloat16)
    seq_len, B, emb_dim = emb.shape
    H = hid_dim
    l0 = params["lstm"][0]
    p0 = (jnp.dot(emb.reshape(seq_len * B, emb_dim), l0["w_ih"],
                  preferred_element_type=jnp.float32)
          .reshape(seq_len, B, 4 * H) + l0["b"])
    h = [jnp.zeros((B, H), jnp.bfloat16) for _ in range(n_layers)]
    c = [jnp.zeros((B, H), jnp.float32) for _ in range(n_layers)]
    for t in range(seq_len):
        x = None
        for l in range(n_layers):
            layer = params["lstm"][l]
            if l == 0:
                gates = p0[t] + jnp.dot(h[0], layer["w_hh"],
                                        preferred_element_type=jnp.float32)
            else:
                gates = (jnp.dot(x, layer["w_ih"], preferred_element_type=jnp.float32)
                         + jnp.dot(h[l], layer["w_hh"], preferred_element_type=jnp.float32)
                         + layer["b"])
            ifo = jax.nn.sigmoid(gates[:, :3 * H])
            g = jnp.tanh(gates[:, 3 * H:])
            i_g = ifo[:, 0 * H:1 * H]
            f_g = ifo[:, 1 * H:2 * H]
            o_g = ifo[:, 2 * H:3 * H]
            c_new = f_g * c[l] + i_g * g
            h_new = (o_g * jnp.tanh(c_new)).astype(jnp.bfloat16)
            h[l] = h_new
            c[l] = c_new
            x = h_new
    hidden = jnp.stack([hh.astype(jnp.float32) for hh in h])
    cell = jnp.stack(c)
    return hidden, cell


# ---------------------------------- main ------------------------------------


if __name__ == "__main__":
    input_dim = 50     # vocab size
    emb_dim = 128      # lane-aligned
    hid_dim = 128      # lane-aligned -> gate slices are whole lane tiles
    n_layers = 2
    seq_len = 8
    batch = 16         # two sublane-aligned chunks of 8 -> "parallel" batch axis

    key = jax.random.PRNGKey(0)
    k_params, k_src = jax.random.split(key, 2)

    params = init_encoder_params(k_params, input_dim, emb_dim, hid_dim, n_layers)
    src = jax.random.randint(k_src, (seq_len, batch), 0, input_dim, jnp.int32)

    hidden, cell = encoder_forward(params, src, n_layers=n_layers, hid_dim=hid_dim,
                                   batch_chunk=8, t_block=None)
    jax.block_until_ready((hidden, cell))

    h_ref, c_ref = encoder_reference(params, src, n_layers=n_layers, hid_dim=hid_dim)

    assert hidden.shape == (n_layers, batch, hid_dim)
    assert cell.shape == (n_layers, batch, hid_dim)
    assert bool(jnp.allclose(hidden, h_ref, atol=1e-2, rtol=1e-2))
    assert bool(jnp.allclose(cell, c_ref, atol=1e-2, rtol=1e-2))
    print("KERNEL_OK")
</pallas_src>

<mosaic_0001>
module attributes {stable_mosaic.version = 11 : i64} {
  func.func @kernel(%arg0: i32, %arg1: i32, %arg2: memref<8x8x512xf32, #tpu.memory_space<vmem>>, %arg3: memref<128x512xbf16, #tpu.memory_space<vmem>>, %arg4: memref<128x512xbf16, #tpu.memory_space<vmem>>, %arg5: memref<128x512xbf16, #tpu.memory_space<vmem>>, %arg6: memref<1x512xf32, #tpu.memory_space<vmem>>, %arg7: memref<2x8x128xf32, #tpu.memory_space<vmem>>, %arg8: memref<2x8x128xf32, #tpu.memory_space<vmem>>, %arg9: memref<2x8x128xbf16, #tpu.memory_space<vmem>>, %arg10: memref<2x8x128xf32, #tpu.memory_space<vmem>>) attributes {dimension_semantics = [#tpu.dimension_semantics<parallel>, #tpu.dimension_semantics<arbitrary>], iteration_bounds = array<i64: 2, 1>, scalar_prefetch = 0 : i64, scratch_operands = 2 : i64, tpu.core_type = #tpu.core_type<tc>, window_params = [{transform_indices = @transform_0, window_bounds = array<i64: 8, 8, 512>}, {pipeline_mode = #tpu.pipeline_mode<synchronous>, transform_indices = @transform_1, window_bounds = array<i64: 128, 512>}, {pipeline_mode = #tpu.pipeline_mode<synchronous>, transform_indices = @transform_2, window_bounds = array<i64: 128, 512>}, {pipeline_mode = #tpu.pipeline_mode<synchronous>, transform_indices = @transform_3, window_bounds = array<i64: 128, 512>}, {pipeline_mode = #tpu.pipeline_mode<synchronous>, transform_indices = @transform_4, window_bounds = array<i64: 1, 512>}, {transform_indices = @transform_5, window_bounds = array<i64: 2, 8, 128>}, {transform_indices = @transform_6, window_bounds = array<i64: 2, 8, 128>}]} {
    %c0_i32 = arith.constant 0 : i32
    %0 = arith.cmpi eq, %arg1, %c0_i32 : i32
    %1 = arith.extui %0 : i1 to i32
    %c0_i32_0 = arith.constant 0 : i32
    %2 = arith.cmpi ne, %1, %c0_i32_0 : i32
    scf.if %2 {
      %cst_89 = arith.constant 0.000000e+00 : bf16
      %376 = vector.broadcast %cst_89 : bf16 to vector<2x8x128xbf16>
      %c0_90 = arith.constant 0 : index
      %c0_91 = arith.constant 0 : index
      %c0_92 = arith.constant 0 : index
      %377 = vector.load %arg9[%c0_90, %c0_91, %c0_92] : memref<2x8x128xbf16, #tpu.memory_space<vmem>>, vector<2x8x128xbf16>
      tpu.vector_store %arg9[%c0_90, %c0_91, %c0_92], %376 {strides = array<i32>} : memref<2x8x128xbf16, #tpu.memory_space<vmem>>, vector<2x8x128xbf16>,
      %cst_93 = arith.constant 0.000000e+00 : f32
      %378 = vector.broadcast %cst_93 : f32 to vector<2x8x128xf32>
      %c0_94 = arith.constant 0 : index
      %c0_95 = arith.constant 0 : index
      %c0_96 = arith.constant 0 : index
      %379 = vector.load %arg10[%c0_94, %c0_95, %c0_96] : memref<2x8x128xf32, #tpu.memory_space<vmem>>, vector<2x8x128xf32>
      tpu.vector_store %arg10[%c0_94, %c0_95, %c0_96], %378 {strides = array<i32>} : memref<2x8x128xf32, #tpu.memory_space<vmem>>, vector<2x8x128xf32>,
    } else {
    }
    %c0 = arith.constant 0 : index
    %c0_1 = arith.constant 0 : index
    %3 = vector.load %arg3[%c0, %c0_1] : memref<128x512xbf16, #tpu.memory_space<vmem>>, vector<128x512xbf16>
    %c0_2 = arith.constant 0 : index
    %c0_3 = arith.constant 0 : index
    %4 = vector.load %arg4[%c0_2, %c0_3] : memref<128x512xbf16, #tpu.memory_space<vmem>>, vector<128x512xbf16>
    %c0_4 = arith.constant 0 : index
    %c0_5 = arith.constant 0 : index
    %5 = vector.load %arg5[%c0_4, %c0_5] : memref<128x512xbf16, #tpu.memory_space<vmem>>, vector<128x512xbf16>
    %c0_6 = arith.constant 0 : index
    %c0_7 = arith.constant 0 : index
    %6 = vector.load %arg6[%c0_6, %c0_7] : memref<1x512xf32, #tpu.memory_space<vmem>>, vector<1x512xf32>
    %7 = vector.shape_cast %6 : vector<1x512xf32> to vector<1x512xf32>
    %8 = vector.broadcast %7 : vector<1x512xf32> to vector<8x512xf32>
    %c0_8 = arith.constant 0 : index
    %c0_9 = arith.constant 0 : index
    %c0_10 = arith.constant 0 : index
    %9 = vector.load %arg9[%c0_8, %c0_9, %c0_10] : memref<2x8x128xbf16, #tpu.memory_space<vmem>>, vector<1x8x128xbf16>
    %10 = vector.shape_cast %9 : vector<1x8x128xbf16> to vector<8x128xbf16>
    %c1 = arith.constant 1 : index
    %c0_11 = arith.constant 0 : index
    %c0_12 = arith.constant 0 : index
    %11 = vector.load %arg9[%c1, %c0_11, %c0_12] : memref<2x8x128xbf16, #tpu.memory_space<vmem>>, vector<1x8x128xbf16>
    %12 = vector.shape_cast %11 : vector<1x8x128xbf16> to vector<8x128xbf16>
    %c0_13 = arith.constant 0 : index
    %c0_14 = arith.constant 0 : index
    %c0_15 = arith.constant 0 : index
    %13 = vector.load %arg10[%c0_13, %c0_14, %c0_15] : memref<2x8x128xf32, #tpu.memory_space<vmem>>, vector<1x8x128xf32>
    %14 = vector.shape_cast %13 : vector<1x8x128xf32> to vector<8x128xf32>
    %c1_16 = arith.constant 1 : index
    %c0_17 = arith.constant 0 : index
    %c0_18 = arith.constant 0 : index
    %15 = vector.load %arg10[%c1_16, %c0_17, %c0_18] : memref<2x8x128xf32, #tpu.memory_space<vmem>>, vector<1x8x128xf32>
    %16 = vector.shape_cast %15 : vector<1x8x128xf32> to vector<8x128xf32>
    %c0_i32_19 = arith.constant 0 : i32
    %17 = arith.index_cast %c0_i32_19 : i32 to index
    %c0_20 = arith.constant 0 : index
    %c0_21 = arith.constant 0 : index
    %18 = vector.load %arg2[%17, %c0_20, %c0_21] : memref<8x8x512xf32, #tpu.memory_space<vmem>>, vector<1x8x512xf32>
    %19 = vector.shape_cast %18 : vector<1x8x512xf32> to vector<8x512xf32>
    %cst = arith.constant dense<0.000000e+00> : vector<8x512xf32>
    %20 = tpu.matmul %10, %3, %cst {dimension_numbers = #tpu.dot_dimension_numbers<[1], [0], [0], [1], [0, 0, 1, 1], [], []>} : vector<8x128xbf16>, vector<128x512xbf16>, vector<8x512xf32> -> vector<8x512xf32>
    %21 = arith.addf %19, %20 : vector<8x512xf32>
    %22 = vector.extract_strided_slice %21 {offsets = [0, 0], sizes = [8, 384], strides = [1, 1]} : vector<8x512xf32> to vector<8x384xf32>
    %23 = arith.negf %22 : vector<8x384xf32>
    %24 = math.exp %23 : vector<8x384xf32>
    %cst_22 = arith.constant 1.000000e+00 : f32
    %25 = vector.broadcast %cst_22 : f32 to vector<8x384xf32>
    %26 = arith.addf %25, %24 : vector<8x384xf32>
    %27 = arith.divf %25, %26 : vector<8x384xf32>
    %28 = vector.extract_strided_slice %21 {offsets = [0, 384], sizes = [8, 128], strides = [1, 1]} : vector<8x512xf32> to vector<8x128xf32>
    %29 = math.tanh %28 : vector<8x128xf32>
    %30 = vector.extract_strided_slice %27 {offsets = [0, 0], sizes = [8, 128], strides = [1, 1]} : vector<8x384xf32> to vector<8x128xf32>
    %31 = vector.extract_strided_slice %27 {offsets = [0, 128], sizes = [8, 128], strides = [1, 1]} : vector<8x384xf32> to vector<8x128xf32>
    %32 = vector.extract_strided_slice %27 {offsets = [0, 256], sizes = [8, 128], strides = [1, 1]} : vector<8x384xf32> to vector<8x128xf32>
    %33 = arith.mulf %31, %14 : vector<8x128xf32>
    %34 = arith.mulf %30, %29 : vector<8x128xf32>
    %35 = arith.addf %33, %34 : vector<8x128xf32>
    %36 = math.tanh %35 : vector<8x128xf32>
    %37 = arith.mulf %32, %36 : vector<8x128xf32>
    %38 = arith.truncf %37 : vector<8x128xf32> to vector<8x128xbf16>
    %cst_23 = arith.constant dense<0.000000e+00> : vector<8x512xf32>
    %39 = tpu.matmul %38, %5, %cst_23 {dimension_numbers = #tpu.dot_dimension_numbers<[1], [0], [0], [1], [0, 0, 1, 1], [], []>} : vector<8x128xbf16>, vector<128x512xbf16>, vector<8x512xf32> -> vector<8x512xf32>
    %cst_24 = arith.constant dense<0.000000e+00> : vector<8x512xf32>
    %40 = tpu.matmul %12, %4, %cst_24 {dimension_numbers = #tpu.dot_dimension_numbers<[1], [0], [0], [1], [0, 0, 1, 1], [], []>} : vector<8x128xbf16>, vector<128x512xbf16>, vector<8x512xf32> -> vector<8x512xf32>
    %41 = arith.addf %39, %40 : vector<8x512xf32>
    %42 = arith.addf %41, %8 : vector<8x512xf32>
    %43 = vector.extract_strided_slice %42 {offsets = [0, 0], sizes = [8, 384], strides = [1, 1]} : vector<8x512xf32> to vector<8x384xf32>
    %44 = arith.negf %43 : vector<8x384xf32>
    %45 = math.exp %44 : vector<8x384xf32>
    %cst_25 = arith.constant 1.000000e+00 : f32
    %46 = vector.broadcast %cst_25 : f32 to vector<8x384xf32>
    %47 = arith.addf %46, %45 : vector<8x384xf32>
    %48 = arith.divf %46, %47 : vector<8x384xf32>
    %49 = vector.extract_strided_slice %42 {offsets = [0, 384], sizes = [8, 128], strides = [1, 1]} : vector<8x512xf32> to vector<8x128xf32>
    %50 = math.tanh %49 : vector<8x128xf32>
    %51 = vector.extract_strided_slice %48 {offsets = [0, 0], sizes = [8, 128], strides = [1, 1]} : vector<8x384xf32> to vector<8x128xf32>
    %52 = vector.extract_strided_slice %48 {offsets = [0, 128], sizes = [8, 128], strides = [1, 1]} : vector<8x384xf32> to vector<8x128xf32>
    %53 = vector.extract_strided_slice %48 {offsets = [0, 256], sizes = [8, 128], strides = [1, 1]} : vector<8x384xf32> to vector<8x128xf32>
    %54 = arith.mulf %52, %16 : vector<8x128xf32>
    %55 = arith.mulf %51, %50 : vector<8x128xf32>
    %56 = arith.addf %54, %55 : vector<8x128xf32>
    %57 = math.tanh %56 : vector<8x128xf32>
    %58 = arith.mulf %53, %57 : vector<8x128xf32>
    %59 = arith.truncf %58 : vector<8x128xf32> to vector<8x128xbf16>
    %c1_i32 = arith.constant 1 : i32
    %60 = arith.index_cast %c1_i32 : i32 to index
    %c0_26 = arith.constant 0 : index
    %c0_27 = arith.constant 0 : index
    %61 = vector.load %arg2[%60, %c0_26, %c0_27] : memref<8x8x512xf32, #tpu.memory_space<vmem>>, vector<1x8x512xf32>
    %62 = vector.shape_cast %61 : vector<1x8x512xf32> to vector<8x512xf32>
    %cst_28 = arith.constant dense<0.000000e+00> : vector<8x512xf32>
    %63 = tpu.matmul %38, %3, %cst_28 {dimension_numbers = #tpu.dot_dimension_numbers<[1], [0], [0], [1], [0, 0, 1, 1], [], []>} : vector<8x128xbf16>, vector<128x512xbf16>, vector<8x512xf32> -> vector<8x512xf32>
    %64 = arith.addf %62, %63 : vector<8x512xf32>
    %65 = vector.extract_strided_slice %64 {offsets = [0, 0], sizes = [8, 384], strides = [1, 1]} : vector<8x512xf32> to vector<8x384xf32>
    %66 = arith.negf %65 : vector<8x384xf32>
    %67 = math.exp %66 : vector<8x384xf32>
    %cst_29 = arith.constant 1.000000e+00 : f32
    %68 = vector.broadcast %cst_29 : f32 to vector<8x384xf32>
    %69 = arith.addf %68, %67 : vector<8x384xf32>
    %70 = arith.divf %68, %69 : vector<8x384xf32>
    %71 = vector.extract_strided_slice %64 {offsets = [0, 384], sizes = [8, 128], strides = [1, 1]} : vector<8x512xf32> to vector<8x128xf32>
    %72 = math.tanh %71 : vector<8x128xf32>
    %73 = vector.extract_strided_slice %70 {offsets = [0, 0], sizes = [8, 128], strides = [1, 1]} : vector<8x384xf32> to vector<8x128xf32>
    %74 = vector.extract_strided_slice %70 {offsets = [0, 128], sizes = [8, 128], strides = [1, 1]} : vector<8x384xf32> to vector<8x128xf32>
    %75 = vector.extract_strided_slice %70 {offsets = [0, 256], sizes = [8, 128], strides = [1, 1]} : vector<8x384xf32> to vector<8x128xf32>
    %76 = arith.mulf %74, %35 : vector<8x128xf32>
    %77 = arith.mulf %73, %72 : vector<8x128xf32>
    %78 = arith.addf %76, %77 : vector<8x128xf32>
    %79 = math.tanh %78 : vector<8x128xf32>
    %80 = arith.mulf %75, %79 : vector<8x128xf32>
    %81 = arith.truncf %80 : vector<8x128xf32> to vector<8x128xbf16>
    %cst_30 = arith.constant dense<0.000000e+00> : vector<8x512xf32>
    %82 = tpu.matmul %81, %5, %cst_30 {dimension_numbers = #tpu.dot_dimension_numbers<[1], [0], [0], [1], [0, 0, 1, 1], [], []>} : vector<8x128xbf16>, vector<128x512xbf16>, vector<8x512xf32> -> vector<8x512xf32>
    %cst_31 = arith.constant dense<0.000000e+00> : vector<8x512xf32>
    %83 = tpu.matmul %59, %4, %cst_31 {dimension_numbers = #tpu.dot_dimension_numbers<[1], [0], [0], [1], [0, 0, 1, 1], [], []>} : vector<8x128xbf16>, vector<128x512xbf16>, vector<8x512xf32> -> vector<8x512xf32>
    %84 = arith.addf %82, %83 : vector<8x512xf32>
    %85 = arith.addf %84, %8 : vector<8x512xf32>
    %86 = vector.extract_strided_slice %85 {offsets = [0, 0], sizes = [8, 384], strides = [1, 1]} : vector<8x512xf32> to vector<8x384xf32>
    %87 = arith.negf %86 : vector<8x384xf32>
    %88 = math.exp %87 : vector<8x384xf32>
    %cst_32 = arith.constant 1.000000e+00 : f32
    %89 = vector.broadcast %cst_32 : f32 to vector<8x384xf32>
    %90 = arith.addf %89, %88 : vector<8x384xf32>
    %91 = arith.divf %89, %90 : vector<8x384xf32>
    %92 = vector.extract_strided_slice %85 {offsets = [0, 384], sizes = [8, 128], strides = [1, 1]} : vector<8x512xf32> to vector<8x128xf32>
    %93 = math.tanh %92 : vector<8x128xf32>
    %94 = vector.extract_strided_slice %91 {offsets = [0, 0], sizes = [8, 128], strides = [1, 1]} : vector<8x384xf32> to vector<8x128xf32>
    %95 = vector.extract_strided_slice %91 {offsets = [0, 128], sizes = [8, 128], strides = [1, 1]} : vector<8x384xf32> to vector<8x128xf32>
    %96 = vector.extract_strided_slice %91 {offsets = [0, 256], sizes = [8, 128], strides = [1, 1]} : vector<8x384xf32> to vector<8x128xf32>
    %97 = arith.mulf %95, %56 : vector<8x128xf32>
    %98 = arith.mulf %94, %93 : vector<8x128xf32>
    %99 = arith.addf %97, %98 : vector<8x128xf32>
    %100 = math.tanh %99 : vector<8x128xf32>
    %101 = arith.mulf %96, %100 : vector<8x128xf32>
    %102 = arith.truncf %101 : vector<8x128xf32> to vector<8x128xbf16>
    %c2_i32 = arith.constant 2 : i32
    %103 = arith.index_cast %c2_i32 : i32 to index
    %c0_33 = arith.constant 0 : index
    %c0_34 = arith.constant 0 : index
    %104 = vector.load %arg2[%103, %c0_33, %c0_34] : memref<8x8x512xf32, #tpu.memory_space<vmem>>, vector<1x8x512xf32>
    %105 = vector.shape_cast %104 : vector<1x8x512xf32> to vector<8x512xf32>
    %cst_35 = arith.constant dense<0.000000e+00> : vector<8x512xf32>
    %106 = tpu.matmul %81, %3, %cst_35 {dimension_numbers = #tpu.dot_dimension_numbers<[1], [0], [0], [1], [0, 0, 1, 1], [], []>} : vector<8x128xbf16>, vector<128x512xbf16>, vector<8x512xf32> -> vector<8x512xf32>
    %107 = arith.addf %105, %106 : vector<8x512xf32>
    %108 = vector.extract_strided_slice %107 {offsets = [0, 0], sizes = [8, 384], strides = [1, 1]} : vector<8x512xf32> to vector<8x384xf32>
    %109 = arith.negf %108 : vector<8x384xf32>
    %110 = math.exp %109 : vector<8x384xf32>
    %cst_36 = arith.constant 1.000000e+00 : f32
    %111 = vector.broadcast %cst_36 : f32 to vector<8x384xf32>
    %112 = arith.addf %111, %110 : vector<8x384xf32>
    %113 = arith.divf %111, %112 : vector<8x384xf32>
    %114 = vector.extract_strided_slice %107 {offsets = [0, 384], sizes = [8, 128], strides = [1, 1]} : vector<8x512xf32> to vector<8x128xf32>
    %115 = math.tanh %114 : vector<8x128xf32>
    %116 = vector.extract_strided_slice %113 {offsets = [0, 0], sizes = [8, 128], strides = [1, 1]} : vector<8x384xf32> to vector<8x128xf32>
    %117 = vector.extract_strided_slice %113 {offsets = [0, 128], sizes = [8, 128], strides = [1, 1]} : vector<8x384xf32> to vector<8x128xf32>
    %118 = vector.extract_strided_slice %113 {offsets = [0, 256], sizes = [8, 128], strides = [1, 1]} : vector<8x384xf32> to vector<8x128xf32>
    %119 = arith.mulf %117, %78 : vector<8x128xf32>
    %120 = arith.mulf %116, %115 : vector<8x128xf32>
    %121 = arith.addf %119, %120 : vector<8x128xf32>
    %122 = math.tanh %121 : vector<8x128xf32>
    %123 = arith.mulf %118, %122 : vector<8x128xf32>
    %124 = arith.truncf %123 : vector<8x128xf32> to vector<8x128xbf16>
    %cst_37 = arith.constant dense<0.000000e+00> : vector<8x512xf32>
    %125 = tpu.matmul %124, %5, %cst_37 {dimension_numbers = #tpu.dot_dimension_numbers<[1], [0], [0], [1], [0, 0, 1, 1], [], []>} : vector<8x128xbf16>, vector<128x512xbf16>, vector<8x512xf32> -> vector<8x512xf32>
    %cst_38 = arith.constant dense<0.000000e+00> : vector<8x512xf32>
    %126 = tpu.matmul %102, %4, %cst_38 {dimension_numbers = #tpu.dot_dimension_numbers<[1], [0], [0], [1], [0, 0, 1, 1], [], []>} : vector<8x128xbf16>, vector<128x512xbf16>, vector<8x512xf32> -> vector<8x512xf32>
    %127 = arith.addf %125, %126 : vector<8x512xf32>
    %128 = arith.addf %127, %8 : vector<8x512xf32>
    %129 = vector.extract_strided_slice %128 {offsets = [0, 0], sizes = [8, 384], strides = [1, 1]} : vector<8x512xf32> to vector<8x384xf32>
    %130 = arith.negf %129 : vector<8x384xf32>
    %131 = math.exp %130 : vector<8x384xf32>
    %cst_39 = arith.constant 1.000000e+00 : f32
    %132 = vector.broadcast %cst_39 : f32 to vector<8x384xf32>
    %133 = arith.addf %132, %131 : vector<8x384xf32>
    %134 = arith.divf %132, %133 : vector<8x384xf32>
    %135 = vector.extract_strided_slice %128 {offsets = [0, 384], sizes = [8, 128], strides = [1, 1]} : vector<8x512xf32> to vector<8x128xf32>
    %136 = math.tanh %135 : vector<8x128xf32>
    %137 = vector.extract_strided_slice %134 {offsets = [0, 0], sizes = [8, 128], strides = [1, 1]} : vector<8x384xf32> to vector<8x128xf32>
    %138 = vector.extract_strided_slice %134 {offsets = [0, 128], sizes = [8, 128], strides = [1, 1]} : vector<8x384xf32> to vector<8x128xf32>
    %139 = vector.extract_strided_slice %134 {offsets = [0, 256], sizes = [8, 128], strides = [1, 1]} : vector<8x384xf32> to vector<8x128xf32>
    %140 = arith.mulf %138, %99 : vector<8x128xf32>
    %141 = arith.mulf %137, %136 : vector<8x128xf32>
    %142 = arith.addf %140, %141 : vector<8x128xf32>
    %143 = math.tanh %142 : vector<8x128xf32>
    %144 = arith.mulf %139, %143 : vector<8x128xf32>
    %145 = arith.truncf %144 : vector<8x128xf32> to vector<8x128xbf16>
    %c3_i32 = arith.constant 3 : i32
    %146 = arith.index_cast %c3_i32 : i32 to index
    %c0_40 = arith.constant 0 : index
    %c0_41 = arith.constant 0 : index
    %147 = vector.load %arg2[%146, %c0_40, %c0_41] : memref<8x8x512xf32, #tpu.memory_space<vmem>>, vector<1x8x512xf32>
    %148 = vector.shape_cast %147 : vector<1x8x512xf32> to vector<8x512xf32>
    %cst_42 = arith.constant dense<0.000000e+00> : vector<8x512xf32>
    %149 = tpu.matmul %124, %3, %cst_42 {dimension_numbers = #tpu.dot_dimension_numbers<[1], [0], [0], [1], [0, 0, 1, 1], [], []>} : vector<8x128xbf16>, vector<128x512xbf16>, vector<8x512xf32> -> vector<8x512xf32>
    %150 = arith.addf %148, %149 : vector<8x512xf32>
    %151 = vector.extract_strided_slice %150 {offsets = [0, 0], sizes = [8, 384], strides = [1, 1]} : vector<8x512xf32> to vector<8x384xf32>
    %152 = arith.negf %151 : vector<8x384xf32>
    %153 = math.exp %152 : vector<8x384xf32>
    %cst_43 = arith.constant 1.000000e+00 : f32
    %154 = vector.broadcast %cst_43 : f32 to vector<8x384xf32>
    %155 = arith.addf %154, %153 : vector<8x384xf32>
    %156 = arith.divf %154, %155 : vector<8x384xf32>
    %157 = vector.extract_strided_slice %150 {offsets = [0, 384], sizes = [8, 128], strides = [1, 1]} : vector<8x512xf32> to vector<8x128xf32>
    %158 = math.tanh %157 : vector<8x128xf32>
    %159 = vector.extract_strided_slice %156 {offsets = [0, 0], sizes = [8, 128], strides = [1, 1]} : vector<8x384xf32> to vector<8x128xf32>
    %160 = vector.extract_strided_slice %156 {offsets = [0, 128], sizes = [8, 128], strides = [1, 1]} : vector<8x384xf32> to vector<8x128xf32>
    %161 = vector.extract_strided_slice %156 {offsets = [0, 256], sizes = [8, 128], strides = [1, 1]} : vector<8x384xf32> to vector<8x128xf32>
    %162 = arith.mulf %160, %121 : vector<8x128xf32>
    %163 = arith.mulf %159, %158 : vector<8x128xf32>
    %164 = arith.addf %162, %163 : vector<8x128xf32>
    %165 = math.tanh %164 : vector<8x128xf32>
    %166 = arith.mulf %161, %165 : vector<8x128xf32>
    %167 = arith.truncf %166 : vector<8x128xf32> to vector<8x128xbf16>
    %cst_44 = arith.constant dense<0.000000e+00> : vector<8x512xf32>
    %168 = tpu.matmul %167, %5, %cst_44 {dimension_numbers = #tpu.dot_dimension_numbers<[1], [0], [0], [1], [0, 0, 1, 1], [], []>} : vector<8x128xbf16>, vector<128x512xbf16>, vector<8x512xf32> -> vector<8x512xf32>
    %cst_45 = arith.constant dense<0.000000e+00> : vector<8x512xf32>
    %169 = tpu.matmul %145, %4, %cst_45 {dimension_numbers = #tpu.dot_dimension_numbers<[1], [0], [0], [1], [0, 0, 1, 1], [], []>} : vector<8x128xbf16>, vector<128x512xbf16>, vector<8x512xf32> -> vector<8x512xf32>
    %170 = arith.addf %168, %169 : vector<8x512xf32>
    %171 = arith.addf %170, %8 : vector<8x512xf32>
    %172 = vector.extract_strided_slice %171 {offsets = [0, 0], sizes = [8, 384], strides = [1, 1]} : vector<8x512xf32> to vector<8x384xf32>
    %173 = arith.negf %172 : vector<8x384xf32>
    %174 = math.exp %173 : vector<8x384xf32>
    %cst_46 = arith.constant 1.000000e+00 : f32
    %175 = vector.broadcast %cst_46 : f32 to vector<8x384xf32>
    %176 = arith.addf %175, %174 : vector<8x384xf32>
    %177 = arith.divf %175, %176 : vector<8x384xf32>
    %178 = vector.extract_strided_slice %171 {offsets = [0, 384], sizes = [8, 128], strides = [1, 1]} : vector<8x512xf32> to vector<8x128xf32>
    %179 = math.tanh %178 : vector<8x128xf32>
    %180 = vector.extract_strided_slice %177 {offsets = [0, 0], sizes = [8, 128], strides = [1, 1]} : vector<8x384xf32> to vector<8x128xf32>
    %181 = vector.extract_strided_slice %177 {offsets = [0, 128], sizes = [8, 128], strides = [1, 1]} : vector<8x384xf32> to vector<8x128xf32>
    %182 = vector.extract_strided_slice %177 {offsets = [0, 256], sizes = [8, 128], strides = [1, 1]} : vector<8x384xf32> to vector<8x128xf32>
    %183 = arith.mulf %181, %142 : vector<8x128xf32>
    %184 = arith.mulf %180, %179 : vector<8x128xf32>
    %185 = arith.addf %183, %184 : vector<8x128xf32>
    %186 = math.tanh %185 : vector<8x128xf32>
    %187 = arith.mulf %182, %186 : vector<8x128xf32>
    %188 = arith.truncf %187 : vector<8x128xf32> to vector<8x128xbf16>
    %c4_i32 = arith.constant 4 : i32
    %189 = arith.index_cast %c4_i32 : i32 to index
    %c0_47 = arith.constant 0 : index
    %c0_48 = arith.constant 0 : index
    %190 = vector.load %arg2[%189, %c0_47, %c0_48] : memref<8x8x512xf32, #tpu.memory_space<vmem>>, vector<1x8x512xf32>
    %191 = vector.shape_cast %190 : vector<1x8x512xf32> to vector<8x512xf32>
    %cst_49 = arith.constant dense<0.000000e+00> : vector<8x512xf32>
    %192 = tpu.matmul %167, %3, %cst_49 {dimension_numbers = #tpu.dot_dimension_numbers<[1], [0], [0], [1], [0, 0, 1, 1], [], []>} : vector<8x128xbf16>, vector<128x512xbf16>, vector<8x512xf32> -> vector<8x512xf32>
    %193 = arith.addf %191, %192 : vector<8x512xf32>
    %194 = vector.extract_strided_slice %193 {offsets = [0, 0], sizes = [8, 384], strides = [1, 1]} : vector<8x512xf32> to vector<8x384xf32>
    %195 = arith.negf %194 : vector<8x384xf32>
    %196 = math.exp %195 : vector<8x384xf32>
    %cst_50 = arith.constant 1.000000e+00 : f32
    %197 = vector.broadcast %cst_50 : f32 to vector<8x384xf32>
    %198 = arith.addf %197, %196 : vector<8x384xf32>
    %199 = arith.divf %197, %198 : vector<8x384xf32>
    %200 = vector.extract_strided_slice %193 {offsets = [0, 384], sizes = [8, 128], strides = [1, 1]} : vector<8x512xf32> to vector<8x128xf32>
    %201 = math.tanh %200 : vector<8x128xf32>
    %202 = vector.extract_strided_slice %199 {offsets = [0, 0], sizes = [8, 128], strides = [1, 1]} : vector<8x384xf32> to vector<8x128xf32>
    %203 = vector.extract_strided_slice %199 {offsets = [0, 128], sizes = [8, 128], strides = [1, 1]} : vector<8x384xf32> to vector<8x128xf32>
    %204 = vector.extract_strided_slice %199 {offsets = [0, 256], sizes = [8, 128], strides = [1, 1]} : vector<8x384xf32> to vector<8x128xf32>
    %205 = arith.mulf %203, %164 : vector<8x128xf32>
    %206 = arith.mulf %202, %201 : vector<8x128xf32>
    %207 = arith.addf %205, %206 : vector<8x128xf32>
    %208 = math.tanh %207 : vector<8x128xf32>
    %209 = arith.mulf %204, %208 : vector<8x128xf32>
    %210 = arith.truncf %209 : vector<8x128xf32> to vector<8x128xbf16>
    %cst_51 = arith.constant dense<0.000000e+00> : vector<8x512xf32>
    %211 = tpu.matmul %210, %5, %cst_51 {dimension_numbers = #tpu.dot_dimension_numbers<[1], [0], [0], [1], [0, 0, 1, 1], [], []>} : vector<8x128xbf16>, vector<128x512xbf16>, vector<8x512xf32> -> vector<8x512xf32>
    %cst_52 = arith.constant dense<0.000000e+00> : vector<8x512xf32>
    %212 = tpu.matmul %188, %4, %cst_52 {dimension_numbers = #tpu.dot_dimension_numbers<[1], [0], [0], [1], [0, 0, 1, 1], [], []>} : vector<8x128xbf16>, vector<128x512xbf16>, vector<8x512xf32> -> vector<8x512xf32>
    %213 = arith.addf %211, %212 : vector<8x512xf32>
    %214 = arith.addf %213, %8 : vector<8x512xf32>
    %215 = vector.extract_strided_slice %214 {offsets = [0, 0], sizes = [8, 384], strides = [1, 1]} : vector<8x512xf32> to vector<8x384xf32>
    %216 = arith.negf %215 : vector<8x384xf32>
    %217 = math.exp %216 : vector<8x384xf32>
    %cst_53 = arith.constant 1.000000e+00 : f32
    %218 = vector.broadcast %cst_53 : f32 to vector<8x384xf32>
    %219 = arith.addf %218, %217 : vector<8x384xf32>
    %220 = arith.divf %218, %219 : vector<8x384xf32>
    %221 = vector.extract_strided_slice %214 {offsets = [0, 384], sizes = [8, 128], strides = [1, 1]} : vector<8x512xf32> to vector<8x128xf32>
    %222 = math.tanh %221 : vector<8x128xf32>
    %223 = vector.extract_strided_slice %220 {offsets = [0, 0], sizes = [8, 128], strides = [1, 1]} : vector<8x384xf32> to vector<8x128xf32>
    %224 = vector.extract_strided_slice %220 {offsets = [0, 128], sizes = [8, 128], strides = [1, 1]} : vector<8x384xf32> to vector<8x128xf32>
    %225 = vector.extract_strided_slice %220 {offsets = [0, 256], sizes = [8, 128], strides = [1, 1]} : vector<8x384xf32> to vector<8x128xf32>
    %226 = arith.mulf %224, %185 : vector<8x128xf32>
    %227 = arith.mulf %223, %222 : vector<8x128xf32>
    %228 = arith.addf %226, %227 : vector<8x128xf32>
    %229 = math.tanh %228 : vector<8x128xf32>
    %230 = arith.mulf %225, %229 : vector<8x128xf32>
    %231 = arith.truncf %230 : vector<8x128xf32> to vector<8x128xbf16>
    %c5_i32 = arith.constant 5 : i32
    %232 = arith.index_cast %c5_i32 : i32 to index
    %c0_54 = arith.constant 0 : index
    %c0_55 = arith.constant 0 : index
    %233 = vector.load %arg2[%232, %c0_54, %c0_55] : memref<8x8x512xf32, #tpu.memory_space<vmem>>, vector<1x8x512xf32>
    %234 = vector.shape_cast %233 : vector<1x8x512xf32> to vector<8x512xf32>
    %cst_56 = arith.constant dense<0.000000e+00> : vector<8x512xf32>
    %235 = tpu.matmul %210, %3, %cst_56 {dimension_numbers = #tpu.dot_dimension_numbers<[1], [0], [0], [1], [0, 0, 1, 1], [], []>} : vector<8x128xbf16>, vector<128x512xbf16>, vector<8x512xf32> -> vector<8x512xf32>
    %236 = arith.addf %234, %235 : vector<8x512xf32>
    %237 = vector.extract_strided_slice %236 {offsets = [0, 0], sizes = [8, 384], strides = [1, 1]} : vector<8x512xf32> to vector<8x384xf32>
    %238 = arith.negf %237 : vector<8x384xf32>
    %239 = math.exp %238 : vector<8x384xf32>
    %cst_57 = arith.constant 1.000000e+00 : f32
    %240 = vector.broadcast %cst_57 : f32 to vector<8x384xf32>
    %241 = arith.addf %240, %239 : vector<8x384xf32>
    %242 = arith.divf %240, %241 : vector<8x384xf32>
    %243 = vector.extract_strided_slice %236 {offsets = [0, 384], sizes = [8, 128], strides = [1, 1]} : vector<8x512xf32> to vector<8x128xf32>
    %244 = math.tanh %243 : vector<8x128xf32>
    %245 = vector.extract_strided_slice %242 {offsets = [0, 0], sizes = [8, 128], strides = [1, 1]} : vector<8x384xf32> to vector<8x128xf32>
    %246 = vector.extract_strided_slice %242 {offsets = [0, 128], sizes = [8, 128], strides = [1, 1]} : vector<8x384xf32> to vector<8x128xf32>
    %247 = vector.extract_strided_slice %242 {offsets = [0, 256], sizes = [8, 128], strides = [1, 1]} : vector<8x384xf32> to vector<8x128xf32>
    %248 = arith.mulf %246, %207 : vector<8x128xf32>
    %249 = arith.mulf %245, %244 : vector<8x128xf32>
    %250 = arith.addf %248, %249 : vector<8x128xf32>
    %251 = math.tanh %250 : vector<8x128xf32>
    %252 = arith.mulf %247, %251 : vector<8x128xf32>
    %253 = arith.truncf %252 : vector<8x128xf32> to vector<8x128xbf16>
    %cst_58 = arith.constant dense<0.000000e+00> : vector<8x512xf32>
    %254 = tpu.matmul %253, %5, %cst_58 {dimension_numbers = #tpu.dot_dimension_numbers<[1], [0], [0], [1], [0, 0, 1, 1], [], []>} : vector<8x128xbf16>, vector<128x512xbf16>, vector<8x512xf32> -> vector<8x512xf32>
    %cst_59 = arith.constant dense<0.000000e+00> : vector<8x512xf32>
    %255 = tpu.matmul %231, %4, %cst_59 {dimension_numbers = #tpu.dot_dimension_numbers<[1], [0], [0], [1], [0, 0, 1, 1], [], []>} : vector<8x128xbf16>, vector<128x512xbf16>, vector<8x512xf32> -> vector<8x512xf32>
    %256 = arith.addf %254, %255 : vector<8x512xf32>
    %257 = arith.addf %256, %8 : vector<8x512xf32>
    %258 = vector.extract_strided_slice %257 {offsets = [0, 0], sizes = [8, 384], strides = [1, 1]} : vector<8x512xf32> to vector<8x384xf32>
    %259 = arith.negf %258 : vector<8x384xf32>
    %260 = math.exp %259 : vector<8x384xf32>
    %cst_60 = arith.constant 1.000000e+00 : f32
    %261 = vector.broadcast %cst_60 : f32 to vector<8x384xf32>
    %262 = arith.addf %261, %260 : vector<8x384xf32>
    %263 = arith.divf %261, %262 : vector<8x384xf32>
    %264 = vector.extract_strided_slice %257 {offsets = [0, 384], sizes = [8, 128], strides = [1, 1]} : vector<8x512xf32> to vector<8x128xf32>
    %265 = math.tanh %264 : vector<8x128xf32>
    %266 = vector.extract_strided_slice %263 {offsets = [0, 0], sizes = [8, 128], strides = [1, 1]} : vector<8x384xf32> to vector<8x128xf32>
    %267 = vector.extract_strided_slice %263 {offsets = [0, 128], sizes = [8, 128], strides = [1, 1]} : vector<8x384xf32> to vector<8x128xf32>
    %268 = vector.extract_strided_slice %263 {offsets = [0, 256], sizes = [8, 128], strides = [1, 1]} : vector<8x384xf32> to vector<8x128xf32>
    %269 = arith.mulf %267, %228 : vector<8x128xf32>
    %270 = arith.mulf %266, %265 : vector<8x128xf32>
    %271 = arith.addf %269, %270 : vector<8x128xf32>
    %272 = math.tanh %271 : vector<8x128xf32>
    %273 = arith.mulf %268, %272 : vector<8x128xf32>
    %274 = arith.truncf %273 : vector<8x128xf32> to vector<8x128xbf16>
    %c6_i32 = arith.constant 6 : i32
    %275 = arith.index_cast %c6_i32 : i32 to index
    %c0_61 = arith.constant 0 : index
    %c0_62 = arith.constant 0 : index
    %276 = vector.load %arg2[%275, %c0_61, %c0_62] : memref<8x8x512xf32, #tpu.memory_space<vmem>>, vector<1x8x512xf32>
    %277 = vector.shape_cast %276 : vector<1x8x512xf32> to vector<8x512xf32>
    %cst_63 = arith.constant dense<0.000000e+00> : vector<8x512xf32>
    %278 = tpu.matmul %253, %3, %cst_63 {dimension_numbers = #tpu.dot_dimension_numbers<[1], [0], [0], [1], [0, 0, 1, 1], [], []>} : vector<8x128xbf16>, vector<128x512xbf16>, vector<8x512xf32> -> vector<8x512xf32>
    %279 = arith.addf %277, %278 : vector<8x512xf32>
    %280 = vector.extract_strided_slice %279 {offsets = [0, 0], sizes = [8, 384], strides = [1, 1]} : vector<8x512xf32> to vector<8x384xf32>
    %281 = arith.negf %280 : vector<8x384xf32>
    %282 = math.exp %281 : vector<8x384xf32>
    %cst_64 = arith.constant 1.000000e+00 : f32
    %283 = vector.broadcast %cst_64 : f32 to vector<8x384xf32>
    %284 = arith.addf %283, %282 : vector<8x384xf32>
    %285 = arith.divf %283, %284 : vector<8x384xf32>
    %286 = vector.extract_strided_slice %279 {offsets = [0, 384], sizes = [8, 128], strides = [1, 1]} : vector<8x512xf32> to vector<8x128xf32>
    %287 = math.tanh %286 : vector<8x128xf32>
    %288 = vector.extract_strided_slice %285 {offsets = [0, 0], sizes = [8, 128], strides = [1, 1]} : vector<8x384xf32> to vector<8x128xf32>
    %289 = vector.extract_strided_slice %285 {offsets = [0, 128], sizes = [8, 128], strides = [1, 1]} : vector<8x384xf32> to vector<8x128xf32>
    %290 = vector.extract_strided_slice %285 {offsets = [0, 256], sizes = [8, 128], strides = [1, 1]} : vector<8x384xf32> to vector<8x128xf32>
    %291 = arith.mulf %289, %250 : vector<8x128xf32>
    %292 = arith.mulf %288, %287 : vector<8x128xf32>
    %293 = arith.addf %291, %292 : vector<8x128xf32>
    %294 = math.tanh %293 : vector<8x128xf32>
    %295 = arith.mulf %290, %294 : vector<8x128xf32>
    %296 = arith.truncf %295 : vector<8x128xf32> to vector<8x128xbf16>
    %cst_65 = arith.constant dense<0.000000e+00> : vector<8x512xf32>
    %297 = tpu.matmul %296, %5, %cst_65 {dimension_numbers = #tpu.dot_dimension_numbers<[1], [0], [0], [1], [0, 0, 1, 1], [], []>} : vector<8x128xbf16>, vector<128x512xbf16>, vector<8x512xf32> -> vector<8x512xf32>
    %cst_66 = arith.constant dense<0.000000e+00> : vector<8x512xf32>
    %298 = tpu.matmul %274, %4, %cst_66 {dimension_numbers = #tpu.dot_dimension_numbers<[1], [0], [0], [1], [0, 0, 1, 1], [], []>} : vector<8x128xbf16>, vector<128x512xbf16>, vector<8x512xf32> -> vector<8x512xf32>
    %299 = arith.addf %297, %298 : vector<8x512xf32>
    %300 = arith.addf %299, %8 : vector<8x512xf32>
    %301 = vector.extract_strided_slice %300 {offsets = [0, 0], sizes = [8, 384], strides = [1, 1]} : vector<8x512xf32> to vector<8x384xf32>
    %302 = arith.negf %301 : vector<8x384xf32>
    %303 = math.exp %302 : vector<8x384xf32>
    %cst_67 = arith.constant 1.000000e+00 : f32
    %304 = vector.broadcast %cst_67 : f32 to vector<8x384xf32>
    %305 = arith.addf %304, %303 : vector<8x384xf32>
    %306 = arith.divf %304, %305 : vector<8x384xf32>
    %307 = vector.extract_strided_slice %300 {offsets = [0, 384], sizes = [8, 128], strides = [1, 1]} : vector<8x512xf32> to vector<8x128xf32>
    %308 = math.tanh %307 : vector<8x128xf32>
    %309 = vector.extract_strided_slice %306 {offsets = [0, 0], sizes = [8, 128], strides = [1, 1]} : vector<8x384xf32> to vector<8x128xf32>
    %310 = vector.extract_strided_slice %306 {offsets = [0, 128], sizes = [8, 128], strides = [1, 1]} : vector<8x384xf32> to vector<8x128xf32>
    %311 = vector.extract_strided_slice %306 {offsets = [0, 256], sizes = [8, 128], strides = [1, 1]} : vector<8x384xf32> to vector<8x128xf32>
    %312 = arith.mulf %310, %271 : vector<8x128xf32>
    %313 = arith.mulf %309, %308 : vector<8x128xf32>
    %314 = arith.addf %312, %313 : vector<8x128xf32>
    %315 = math.tanh %314 : vector<8x128xf32>
    %316 = arith.mulf %311, %315 : vector<8x128xf32>
    %317 = arith.truncf %316 : vector<8x128xf32> to vector<8x128xbf16>
    %c7_i32 = arith.constant 7 : i32
    %318 = arith.index_cast %c7_i32 : i32 to index
    %c0_68 = arith.constant 0 : index
    %c0_69 = arith.constant 0 : index
    %319 = vector.load %arg2[%318, %c0_68, %c0_69] : memref<8x8x512xf32, #tpu.memory_space<vmem>>, vector<1x8x512xf32>
    %320 = vector.shape_cast %319 : vector<1x8x512xf32> to vector<8x512xf32>
    %cst_70 = arith.constant dense<0.000000e+00> : vector<8x512xf32>
    %321 = tpu.matmul %296, %3, %cst_70 {dimension_numbers = #tpu.dot_dimension_numbers<[1], [0], [0], [1], [0, 0, 1, 1], [], []>} : vector<8x128xbf16>, vector<128x512xbf16>, vector<8x512xf32> -> vector<8x512xf32>
    %322 = arith.addf %320, %321 : vector<8x512xf32>
    %323 = vector.extract_strided_slice %322 {offsets = [0, 0], sizes = [8, 384], strides = [1, 1]} : vector<8x512xf32> to vector<8x384xf32>
    %324 = arith.negf %323 : vector<8x384xf32>
    %325 = math.exp %324 : vector<8x384xf32>
    %cst_71 = arith.constant 1.000000e+00 : f32
    %326 = vector.broadcast %cst_71 : f32 to vector<8x384xf32>
    %327 = arith.addf %326, %325 : vector<8x384xf32>
    %328 = arith.divf %326, %327 : vector<8x384xf32>
    %329 = vector.extract_strided_slice %322 {offsets = [0, 384], sizes = [8, 128], strides = [1, 1]} : vector<8x512xf32> to vector<8x128xf32>
    %330 = math.tanh %329 : vector<8x128xf32>
    %331 = vector.extract_strided_slice %328 {offsets = [0, 0], sizes = [8, 128], strides = [1, 1]} : vector<8x384xf32> to vector<8x128xf32>
    %332 = vector.extract_strided_slice %328 {offsets = [0, 128], sizes = [8, 128], strides = [1, 1]} : vector<8x384xf32> to vector<8x128xf32>
    %333 = vector.extract_strided_slice %328 {offsets = [0, 256], sizes = [8, 128], strides = [1, 1]} : vector<8x384xf32> to vector<8x128xf32>
    %334 = arith.mulf %332, %293 : vector<8x128xf32>
    %335 = arith.mulf %331, %330 : vector<8x128xf32>
    %336 = arith.addf %334, %335 : vector<8x128xf32>
    %337 = math.tanh %336 : vector<8x128xf32>
    %338 = arith.mulf %333, %337 : vector<8x128xf32>
    %339 = arith.truncf %338 : vector<8x128xf32> to vector<8x128xbf16>
    %cst_72 = arith.constant dense<0.000000e+00> : vector<8x512xf32>
    %340 = tpu.matmul %339, %5, %cst_72 {dimension_numbers = #tpu.dot_dimension_numbers<[1], [0], [0], [1], [0, 0, 1, 1], [], []>} : vector<8x128xbf16>, vector<128x512xbf16>, vector<8x512xf32> -> vector<8x512xf32>
    %cst_73 = arith.constant dense<0.000000e+00> : vector<8x512xf32>
    %341 = tpu.matmul %317, %4, %cst_73 {dimension_numbers = #tpu.dot_dimension_numbers<[1], [0], [0], [1], [0, 0, 1, 1], [], []>} : vector<8x128xbf16>, vector<128x512xbf16>, vector<8x512xf32> -> vector<8x512xf32>
    %342 = arith.addf %340, %341 : vector<8x512xf32>
    %343 = arith.addf %342, %8 : vector<8x512xf32>
    %344 = vector.extract_strided_slice %343 {offsets = [0, 0], sizes = [8, 384], strides = [1, 1]} : vector<8x512xf32> to vector<8x384xf32>
    %345 = arith.negf %344 : vector<8x384xf32>
    %346 = math.exp %345 : vector<8x384xf32>
    %cst_74 = arith.constant 1.000000e+00 : f32
    %347 = vector.broadcast %cst_74 : f32 to vector<8x384xf32>
    %348 = arith.addf %347, %346 : vector<8x384xf32>
    %349 = arith.divf %347, %348 : vector<8x384xf32>
    %350 = vector.extract_strided_slice %343 {offsets = [0, 384], sizes = [8, 128], strides = [1, 1]} : vector<8x512xf32> to vector<8x128xf32>
    %351 = math.tanh %350 : vector<8x128xf32>
    %352 = vector.extract_strided_slice %349 {offsets = [0, 0], sizes = [8, 128], strides = [1, 1]} : vector<8x384xf32> to vector<8x128xf32>
    %353 = vector.extract_strided_slice %349 {offsets = [0, 128], sizes = [8, 128], strides = [1, 1]} : vector<8x384xf32> to vector<8x128xf32>
    %354 = vector.extract_strided_slice %349 {offsets = [0, 256], sizes = [8, 128], strides = [1, 1]} : vector<8x384xf32> to vector<8x128xf32>
    %355 = arith.mulf %353, %314 : vector<8x128xf32>
    %356 = arith.mulf %352, %351 : vector<8x128xf32>
    %357 = arith.addf %355, %356 : vector<8x128xf32>
    %358 = math.tanh %357 : vector<8x128xf32>
    %359 = arith.mulf %354, %358 : vector<8x128xf32>
    %360 = arith.truncf %359 : vector<8x128xf32> to vector<8x128xbf16>
    %c8_i32 = arith.constant 8 : i32
    %c0_75 = arith.constant 0 : index
    %c0_76 = arith.constant 0 : index
    %c0_77 = arith.constant 0 : index
    %361 = vector.load %arg9[%c0_75, %c0_76, %c0_77] : memref<2x8x128xbf16, #tpu.memory_space<vmem>>, vector<1x8x128xbf16>
    %362 = vector.shape_cast %361 : vector<1x8x128xbf16> to vector<8x128xbf16>
    %363 = vector.shape_cast %339 : vector<8x128xbf16> to vector<1x8x128xbf16>
    tpu.vector_store %arg9[%c0_75, %c0_76, %c0_77], %363 {strides = array<i32>} : memref<2x8x128xbf16, #tpu.memory_space<vmem>>, vector<1x8x128xbf16>,
    %c0_78 = arith.constant 0 : index
    %c0_79 = arith.constant 0 : index
    %c0_80 = arith.constant 0 : index
    %364 = vector.load %arg10[%c0_78, %c0_79, %c0_80] : memref<2x8x128xf32, #tpu.memory_space<vmem>>, vector<1x8x128xf32>
    %365 = vector.shape_cast %364 : vector<1x8x128xf32> to vector<8x128xf32>
    %366 = vector.shape_cast %336 : vector<8x128xf32> to vector<1x8x128xf32>
    tpu.vector_store %arg10[%c0_78, %c0_79, %c0_80], %366 {strides = array<i32>} : memref<2x8x128xf32, #tpu.memory_space<vmem>>, vector<1x8x128xf32>,
    %c1_81 = arith.constant 1 : index
    %c0_82 = arith.constant 0 : index
    %c0_83 = arith.constant 0 : index
    %367 = vector.load %arg9[%c1_81, %c0_82, %c0_83] : memref<2x8x128xbf16, #tpu.memory_space<vmem>>, vector<1x8x128xbf16>
    %368 = vector.shape_cast %367 : vector<1x8x128xbf16> to vector<8x128xbf16>
    %369 = vector.shape_cast %360 : vector<8x128xbf16> to vector<1x8x128xbf16>
    tpu.vector_store %arg9[%c1_81, %c0_82, %c0_83], %369 {strides = array<i32>} : memref<2x8x128xbf16, #tpu.memory_space<vmem>>, vector<1x8x128xbf16>,
    %c1_84 = arith.constant 1 : index
    %c0_85 = arith.constant 0 : index
    %c0_86 = arith.constant 0 : index
    %370 = vector.load %arg10[%c1_84, %c0_85, %c0_86] : memref<2x8x128xf32, #tpu.memory_space<vmem>>, vector<1x8x128xf32>
    %371 = vector.shape_cast %370 : vector<1x8x128xf32> to vector<8x128xf32>
    %372 = vector.shape_cast %357 : vector<8x128xf32> to vector<1x8x128xf32>
    tpu.vector_store %arg10[%c1_84, %c0_85, %c0_86], %372 {strides = array<i32>} : memref<2x8x128xf32, #tpu.memory_space<vmem>>, vector<1x8x128xf32>,
    %c0_i32_87 = arith.constant 0 : i32
    %373 = arith.cmpi eq, %arg1, %c0_i32_87 : i32
    %374 = arith.extui %373 : i1 to i32
    %c0_i32_88 = arith.constant 0 : i32
    %375 = arith.cmpi ne, %374, %c0_i32_88 : i32
    scf.if %375 {
      %c0_89 = arith.constant 0 : index
      %c0_90 = arith.constant 0 : index
      %c0_91 = arith.constant 0 : index
      %376 = vector.load %arg9[%c0_89, %c0_90, %c0_91] : memref<2x8x128xbf16, #tpu.memory_space<vmem>>, vector<2x8x128xbf16>
      %377 = arith.extf %376 : vector<2x8x128xbf16> to vector<2x8x128xf32>
      %c0_92 = arith.constant 0 : index
      %c0_93 = arith.constant 0 : index
      %c0_94 = arith.constant 0 : index
      %378 = vector.load %arg7[%c0_92, %c0_93, %c0_94] : memref<2x8x128xf32, #tpu.memory_space<vmem>>, vector<2x8x128xf32>
      tpu.vector_store %arg7[%c0_92, %c0_93, %c0_94], %377 {strides = array<i32>} : memref<2x8x128xf32, #tpu.memory_space<vmem>>, vector<2x8x128xf32>,
      %c0_95 = arith.constant 0 : index
      %c0_96 = arith.constant 0 : index
      %c0_97 = arith.constant 0 : index
      %379 = vector.load %arg10[%c0_95, %c0_96, %c0_97] : memref<2x8x128xf32, #tpu.memory_space<vmem>>, vector<2x8x128xf32>
      %c0_98 = arith.constant 0 : index
      %c0_99 = arith.constant 0 : index
      %c0_100 = arith.constant 0 : index
      %380 = vector.load %arg8[%c0_98, %c0_99, %c0_100] : memref<2x8x128xf32, #tpu.memory_space<vmem>>, vector<2x8x128xf32>
      tpu.vector_store %arg8[%c0_98, %c0_99, %c0_100], %379 {strides = array<i32>} : memref<2x8x128xf32, #tpu.memory_space<vmem>>, vector<2x8x128xf32>,
    } else {
    }
    return
  }
  func.func @transform_0(%arg0: i32, %arg1: i32) -> (i32, i32, i32) {
    %c0_i32 = arith.constant 0 : i32
    %c0_i32_0 = arith.constant 0 : i32
    return %arg1, %arg0, %c0_i32 : i32, i32, i32
  }
  func.func @transform_1(%arg0: i32, %arg1: i32) -> (i32, i32) {
    %c0_i32 = arith.constant 0 : i32
    %c0_i32_0 = arith.constant 0 : i32
    %c0_i32_1 = arith.constant 0 : i32
    return %c0_i32, %c0_i32_0 : i32, i32
  }
  func.func @transform_2(%arg0: i32, %arg1: i32) -> (i32, i32) {
    %c0_i32 = arith.constant 0 : i32
    %c0_i32_0 = arith.constant 0 : i32
    %c0_i32_1 = arith.constant 0 : i32
    return %c0_i32, %c0_i32_0 : i32, i32
  }
  func.func @transform_3(%arg0: i32, %arg1: i32) -> (i32, i32) {
    %c0_i32 = arith.constant 0 : i32
    %c0_i32_0 = arith.constant 0 : i32
    %c0_i32_1 = arith.constant 0 : i32
    return %c0_i32, %c0_i32_0 : i32, i32
  }
  func.func @transform_4(%arg0: i32, %arg1: i32) -> (i32, i32) {
    %c0_i32 = arith.constant 0 : i32
    %c0_i32_0 = arith.constant 0 : i32
    %c0_i32_1 = arith.constant 0 : i32
    return %c0_i32, %c0_i32_0 : i32, i32
  }
  func.func @transform_5(%arg0: i32, %arg1: i32) -> (i32, i32, i32) {
    %c0_i32 = arith.constant 0 : i32
    %c0_i32_0 = arith.constant 0 : i32
    %c0_i32_1 = arith.constant 0 : i32
    return %c0_i32, %arg0, %c0_i32_0 : i32, i32, i32
  }
  func.func @transform_6(%arg0: i32, %arg1: i32) -> (i32, i32, i32) {
    %c0_i32 = arith.constant 0 : i32
    %c0_i32_0 = arith.constant 0 : i32
    %c0_i32_1 = arith.constant 0 : i32
    return %c0_i32, %arg0, %c0_i32_0 : i32, i32, i32
  }
}

</mosaic_0001>

<llo_original>
// kernel: encoder_forward.1
$region0: #{encoder_forward.1}
  #allocation0 [shape = 'u32[]', space=smem, size = 0x4, offset = 0x4, fixed_abs, tag = 'smem constant byte address 0x4 - core index']
  #allocation1 [shape = 'u32[72,128]{1,0:T(1,128)}', space=vmem, size = 0x9000, scoped, tag = 'internal scratch']
  #allocation2 [shape = 'bf16[2,8,128]{2,1,0:T(8,128)(2,1)}', space=vmem, size = 0x1000, scoped, tag = 'scratch operand']
  #allocation3 [shape = 'f32[2,8,128]{2,1,0:T(8,128)}', space=vmem, size = 0x2000, scoped, tag = 'scratch operand']
  %s0 = inlined_call_operand.vmem [shape: f32[8,16,512], index: 0, kind: input, shape index: {}]
  %s1 = inlined_call_operand.vmem [shape: bf16[128,512], index: 1, kind: input, shape index: {}]
  %s2 = inlined_call_operand.vmem [shape: bf16[128,512], index: 2, kind: input, shape index: {}]
  %s3 = inlined_call_operand.vmem [shape: bf16[128,512], index: 3, kind: input, shape index: {}]
  %s4 = inlined_call_operand.vmem [shape: f32[1,512], index: 4, kind: input, shape index: {}]
  %s5 = inlined_call_operand.hbm [shape: f32[2,16,128], index: 5, kind: output, shape index: {0}]
  %s6 = inlined_call_operand.hbm [shape: f32[2,16,128], index: 6, kind: output, shape index: {1}]
  %7 = xla_tuple %s5, %s6
  %s8 = sld [smem:[#allocation0]]
  $region92: #{encoder_forward.1} parent=0
    _
  %s10 = ssub.s32 1, %s8
  %s11 = scalar_select 0, %s10, %s8
  $region1: #{encoder_forward.1} parent=0
    #allocation4 [shape = 'u8[262144]{0}', space=vmem, size = 0x40000, scoped, tag = 'input window, operand 0']
    #allocation5 [shape = 'u8[16384]{0}', space=vmem, size = 0x4000, scoped, tag = 'output window, operand 0']
    #allocation6 [shape = 's32[2]{0}', space=sflag, size = 0x8, scoped, tag = 'scoped memory for encoder_forward.1']
    #allocation7 [shape = 'u8[16384]{0}', space=vmem, size = 0x4000, scoped, tag = 'output window, operand 1']
    #allocation8 [shape = 's32[2]{0}', space=sflag, size = 0x8, scoped, tag = 'scoped memory for encoder_forward.1']
    %12 = vsyncpa [#allocation6], 0
    %s13 = scalar_lea.sflag [#allocation6], 1
    %14 = vsyncpa %s13, 0
    %15 = vsyncpa [#allocation8], 0
    %s16 = scalar_lea.sflag [#allocation8], 1
    %17 = vsyncpa %s16, 0
    loop: start=0, step=1, limit=4
    $region2: #{encoder_forward.1} parent=1 // loop_pre_header
      _
    $region3: #{encoder_forward.1} parent=1 // loop_header
      %s19 = sphi 0, %s23
      %p20 = scmp.ge.s32.totalorder %s19, 4
      %s26 = sphi 0, %s38
      %s27 = sphi 0, %s34
      %s28 = sphi 0, %s26
      %s29 = sphi 0, %s27
      %s30 = sphi 0, %s28
      %s31 = sphi 0, %s29
      %s43 = sphi 0, %s45
      %s46 = sphi 0, %s43
      %s47 = sphi 0, %s46
      %s63 = sphi 0, %s47
      %s67 = sphi 0, %s67
      %s69 = sphi 0, %s67
      %s70 = sphi 0, %s69
      %s84 = sphi 0, %s70
      %s88 = sphi 0, %s88
      %s90 = sphi 0, %s88
      %s91 = sphi 0, %s90
      %s105 = sphi 0, %s91
      %s109 = sphi 0, %s109
      %s111 = sphi 0, %s109
      %s112 = sphi 0, %s111
      %s126 = sphi 0, %s112
      %s130 = sphi 0, %s130
      %s132 = sphi 0, %s130
      %s133 = sphi 0, %s132
      %s147 = sphi 0, %s133
      %s153 = sphi 0, %s155
      %s156 = sphi 0, %s153
      %s157 = sphi 0, %s156
      %s173 = sphi 0, %s157
      %s179 = sphi 0, %s181
      %s182 = sphi 0, %s179
      %s183 = sphi 0, %s182
      %s199 = sphi 0, %s183
    $region4: #{encoder_forward.1} parent=1 // loop_header_branch
      %22 = sbr.rel (%p20) target = $region8
    $region5: #{encoder_forward.1} parent=1 // loop_body
      %s24 = ssub.s32 %s19, 1
      %s25 = ssub.s32 %s19, 2
      %s32 = sadd.s32 1, %s27
      %p33 = scmp.ge.s32.totalorder %s32, 1
      %s34 = scalar_select %p33, 0, %s32
      %s35 = sadd.s32 1, %s26
      %s36 = scalar_select %p33, %s35, %s26
      %p37 = scmp.ge.s32.totalorder %s36, 2
      %s38 = scalar_select %p37, 0, %s36
      %s39 = ssub.s32 %s27, %s34
      %s40 = ssub.s32 %s26, %s38
      %s41 = sor.u32 %s39, %s40
      %p42 = scmp.eq.s32.totalorder %s41, 0
      %s44 = sadd.s32 %s43, 1
      %s45 = scalar_select %p42, %s43, %s44
      %p48 = pneg %p42
      %p49 = scmp.eq.s32.totalorder %s19, 1
      %p50 = por %p48, %p49
      %p51 = scmp.ne.s32.totalorder %s43, %s46
      %p52 = scmp.eq.s32.totalorder %s19, 0
      %p53 = por %p51, %p52
      %p54 = scmp.ne.s32.totalorder %s43, %s46
      %p55 = scmp.eq.s32.totalorder %s24, 1
      %p56 = por %p54, %p55
      %p57 = scmp.ne.s32.totalorder %s46, %s47
      %p58 = scmp.eq.s32.totalorder %s24, 0
      %p59 = por %p57, %p58
      %p60 = scmp.ne.s32.totalorder %s46, %s47
      %p61 = scmp.eq.s32.totalorder %s25, 1
      %p62 = por %p60, %p61
      %p64 = scmp.ne.s32.totalorder %s47, %s63
      %p65 = scmp.eq.s32.totalorder %s25, 0
      %p66 = por %p64, %p65
      %s68 = sadd.s32 %s67, 1
      %p71 = scmp.eq.s32.totalorder %s19, 1
      %p72 = scmp.ne.s32.totalorder %s67, %s69
      %p73 = scmp.eq.s32.totalorder %s19, 0
      %p74 = por %p72, %p73
      %p75 = scmp.ne.s32.totalorder %s67, %s69
      %p76 = scmp.eq.s32.totalorder %s24, 1
      %p77 = por %p75, %p76
      %p78 = scmp.ne.s32.totalorder %s69, %s70
      %p79 = scmp.eq.s32.totalorder %s24, 0
      %p80 = por %p78, %p79
      %p81 = scmp.ne.s32.totalorder %s69, %s70
      %p82 = scmp.eq.s32.totalorder %s25, 1
      %p83 = por %p81, %p82
      %p85 = scmp.ne.s32.totalorder %s70, %s84
      %p86 = scmp.eq.s32.totalorder %s25, 0
      %p87 = por %p85, %p86
      %s89 = sadd.s32 %s88, 1
      %p92 = scmp.eq.s32.totalorder %s19, 1
      %p93 = scmp.ne.s32.totalorder %s88, %s90
      %p94 = scmp.eq.s32.totalorder %s19, 0
      %p95 = por %p93, %p94
      %p96 = scmp.ne.s32.totalorder %s88, %s90
      %p97 = scmp.eq.s32.totalorder %s24, 1
      %p98 = por %p96, %p97
      %p99 = scmp.ne.s32.totalorder %s90, %s91
      %p100 = scmp.eq.s32.totalorder %s24, 0
      %p101 = por %p99, %p100
      %p102 = scmp.ne.s32.totalorder %s90, %s91
      %p103 = scmp.eq.s32.totalorder %s25, 1
      %p104 = por %p102, %p103
      %p106 = scmp.ne.s32.totalorder %s91, %s105
      %p107 = scmp.eq.s32.totalorder %s25, 0
      %p108 = por %p106, %p107
      %s110 = sadd.s32 %s109, 1
      %p113 = scmp.eq.s32.totalorder %s19, 1
      %p114 = scmp.ne.s32.totalorder %s109, %s111
      %p115 = scmp.eq.s32.totalorder %s19, 0
      %p116 = por %p114, %p115
      %p117 = scmp.ne.s32.totalorder %s109, %s111
      %p118 = scmp.eq.s32.totalorder %s24, 1
      %p119 = por %p117, %p118
      %p120 = scmp.ne.s32.totalorder %s111, %s112
      %p121 = scmp.eq.s32.totalorder %s24, 0
      %p122 = por %p120, %p121
      %p123 = scmp.ne.s32.totalorder %s111, %s112
      %p124 = scmp.eq.s32.totalorder %s25, 1
      %p125 = por %p123, %p124
      %p127 = scmp.ne.s32.totalorder %s112, %s126
      %p128 = scmp.eq.s32.totalorder %s25, 0
      %p129 = por %p127, %p128
      %s131 = sadd.s32 %s130, 1
      %p134 = scmp.eq.s32.totalorder %s19, 1
      %p135 = scmp.ne.s32.totalorder %s130, %s132
      %p136 = scmp.eq.s32.totalorder %s19, 0
      %p137 = por %p135, %p136
      %p138 = scmp.ne.s32.totalorder %s130, %s132
      %p139 = scmp.eq.s32.totalorder %s24, 1
      %p140 = por %p138, %p139
      %p141 = scmp.ne.s32.totalorder %s132, %s133
      %p142 = scmp.eq.s32.totalorder %s24, 0
      %p143 = por %p141, %p142
      %p144 = scmp.ne.s32.totalorder %s132, %s133
      %p145 = scmp.eq.s32.totalorder %s25, 1
      %p146 = por %p144, %p145
      %p148 = scmp.ne.s32.totalorder %s133, %s147
      %p149 = scmp.eq.s32.totalorder %s25, 0
      %p150 = por %p148, %p149
      %s151 = ssub.s32 %s26, %s38
      %p152 = scmp.eq.s32.totalorder %s151, 0
      %s154 = sadd.s32 %s153, 1
      %s155 = scalar_select %p152, %s153, %s154
      %p158 = pneg %p152
      %p159 = scmp.eq.s32.totalorder %s19, 1
      %p160 = por %p158, %p159
      %p161 = scmp.ne.s32.totalorder %s153, %s156
      %p162 = scmp.eq.s32.totalorder %s19, 0
      %p163 = por %p161, %p162
      %p164 = scmp.ne.s32.totalorder %s153, %s156
      %p165 = scmp.eq.s32.totalorder %s24, 1
      %p166 = por %p164, %p165
      %p167 = scmp.ne.s32.totalorder %s156, %s157
      %p168 = scmp.eq.s32.totalorder %s24, 0
      %p169 = por %p167, %p168
      %p170 = scmp.ne.s32.totalorder %s156, %s157
      %p171 = scmp.eq.s32.totalorder %s25, 1
      %p172 = por %p170, %p171
      %p174 = scmp.ne.s32.totalorder %s157, %s173
      %p175 = scmp.eq.s32.totalorder %s25, 0
      %p176 = por %p174, %p175
      %s177 = ssub.s32 %s26, %s38
      %p178 = scmp.eq.s32.totalorder %s177, 0
      %s180 = sadd.s32 %s179, 1
      %s181 = scalar_select %p178, %s179, %s180
      %p184 = pneg %p178
      %p185 = scmp.eq.s32.totalorder %s19, 1
      %p186 = por %p184, %p185
      %p187 = scmp.ne.s32.totalorder %s179, %s182
      %p188 = scmp.eq.s32.totalorder %s19, 0
      %p189 = por %p187, %p188
      %p190 = scmp.ne.s32.totalorder %s179, %s182
      %p191 = scmp.eq.s32.totalorder %s24, 1
      %p192 = por %p190, %p191
      %p193 = scmp.ne.s32.totalorder %s182, %s183
      %p194 = scmp.eq.s32.totalorder %s24, 0
      %p195 = por %p193, %p194
      %p196 = scmp.ne.s32.totalorder %s182, %s183
      %p197 = scmp.eq.s32.totalorder %s25, 1
      %p198 = por %p196, %p197
      %p200 = scmp.ne.s32.totalorder %s183, %s199
      %p201 = scmp.eq.s32.totalorder %s25, 0
      %p202 = por %p200, %p201
      %p203 = scmp.le.s32.totalorder 1, %s19
      %p204 = scmp.lt.s32.totalorder %s19, 3
      %p205 = pnand %p203, %p204
      %p206 = pneg %p205
      // Predicated region
      $region9: #{encoder_forward.1} parent=5 // pred_check
        _
      $region10: #{encoder_forward.1} parent=5 // pred_check_branch
        %208 = sbr.rel (%p205) target = $region12
      $region11: #{encoder_forward.1} parent=5 // pred_region
        %s209 = ssub.s32 %s19, 1
        // Predicated region
        $region13: #{encoder_forward.1} parent=11 // pred_check
          %p210 = pneg %p80
        $region14: #{encoder_forward.1} parent=11 // pred_check_branch
          %212 = sbr.rel (%p210) target = $region16
        $region15: #{encoder_forward.1} parent=11 // pred_region
          _
        $region16: #{encoder_forward.1} parent=11 // pred_fallthru
          _
        // Predicated region
        $region17: #{encoder_forward.1} parent=11 // pred_check
          %p213 = pneg %p101
        $region18: #{encoder_forward.1} parent=11 // pred_check_branch
          %215 = sbr.rel (%p213) target = $region20
        $region19: #{encoder_forward.1} parent=11 // pred_region
          _
        $region20: #{encoder_forward.1} parent=11 // pred_fallthru
          _
        // Predicated region
        $region21: #{encoder_forward.1} parent=11 // pred_check
          %p216 = pneg %p122
        $region22: #{encoder_forward.1} parent=11 // pred_check_branch
          %218 = sbr.rel (%p216) target = $region24
        $region23: #{encoder_forward.1} parent=11 // pred_region
          _
        $region24: #{encoder_forward.1} parent=11 // pred_fallthru
          _
        // Predicated region
        $region25: #{encoder_forward.1} parent=11 // pred_check
          %p219 = pneg %p143
        $region26: #{encoder_forward.1} parent=11 // pred_check_branch
          %221 = sbr.rel (%p219) target = $region28
        $region27: #{encoder_forward.1} parent=11 // pred_region
          _
        $region28: #{encoder_forward.1} parent=11 // pred_fallthru
          _
      $region12: #{encoder_forward.1} parent=5 // pred_fallthru
        _
      %p222 = scmp.lt.s32.totalorder %s19, 2
      // Predicated region
      $region29: #{encoder_forward.1} parent=5 // pred_check
        %p223 = pneg %p222
      $region30: #{encoder_forward.1} parent=5 // pred_check_branch
        %225 = sbr.rel (%p223) target = $region32
      $region31: #{encoder_forward.1} parent=5 // pred_region
        // Predicated region
        $region33: #{encoder_forward.1} parent=31 // pred_check
          %p226 = pneg %p53
        $region34: #{encoder_forward.1} parent=31 // pred_check_branch
          %228 = sbr.rel (%p226) target = $region36
        $region35: #{encoder_forward.1} parent=31 // pred_region
          %s229 = sand.u32 %s43, 1
          %s230 = sand.u32 %s43, 1
          %s231 = smul.addr %s230, 256
          %s232 = scalar_lea.vmem [#allocation4], %s231
          %s233 = smul.u32 8, %s27
          %s234 = smul.addr %s26, 4
          %s235 = smul.addr %s233, 8
          %s236 = sadd.s32 %s234, %s235
          %s237 = smul.addr %s236, 8
          %s238 = scalar_lea.vmem %s0, %s237
          // Predicated region
          $region37: #{encoder_forward.1} parent=35 // pred_check
            _
          $region38: #{encoder_forward.1} parent=35 // pred_check_branch
            %240 = sbr.rel (0) target = $region40
          $region39: #{encoder_forward.1} parent=35 // pred_region
            // Predicated region
            $region41: #{encoder_forward.1} parent=39 // pred_check
              _
            $region42: #{encoder_forward.1} parent=39 // pred_check_branch
              %242 = sbr.rel (0) target = $region44
            $region43: #{encoder_forward.1} parent=39 // pred_region
              loop: start=0, step=1, limit=1
              $region45: #{encoder_forward.1} parent=43 // loop_pre_header
                _
              $region46: #{encoder_forward.1} parent=43 // loop_header
                %s244 = sphi 0, %s248
                %p245 = scmp.ge.s32.totalorder %s244, 1
                %s249 = sphi %s238, %s238
                %s250 = sphi %s232, %s232
              $region47: #{encoder_forward.1} parent=43 // loop_header_branch
                %247 = sbr.rel (%p245) target = $region51
              $region48: #{encoder_forward.1} parent=43 // loop_body
                %v251 = vld [vmem:[%s249] sm:$0xff]
                %252 = vst [vmem:[%s250] sm:$0xff] %v251
                %v253 = vld [vmem:[%s249 + $0x8] sm:$0xff]
                %254 = vst [vmem:[%s250 + $0x8] sm:$0xff] %v253
                %v255 = vld [vmem:[%s249 + $0x10] sm:$0xff]
                %256 = vst [vmem:[%s250 + $0x10] sm:$0xff] %v255
                %v257 = vld [vmem:[%s249 + $0x18] sm:$0xff]
                %258 = vst [vmem:[%s250 + $0x18] sm:$0xff] %v257
                %v259 = vld [vmem:[%s249 + $0x40] sm:$0xff]
                %260 = vst [vmem:[%s250 + $0x20] sm:$0xff] %v259
                %v261 = vld [vmem:[%s249 + $0x48] sm:$0xff]
                %262 = vst [vmem:[%s250 + $0x28] sm:$0xff] %v261
                %v263 = vld [vmem:[%s249 + $0x50] sm:$0xff]
                %264 = vst [vmem:[%s250 + $0x30] sm:$0xff] %v263
                %v265 = vld [vmem:[%s249 + $0x58] sm:$0xff]
                %266 = vst [vmem:[%s250 + $0x38] sm:$0xff] %v265
                %v267 = vld [vmem:[%s249 + $0x80] sm:$0xff]
                %268 = vst [vmem:[%s250 + $0x40] sm:$0xff] %v267
                %v269 = vld [vmem:[%s249 + $0x88] sm:$0xff]
                %270 = vst [vmem:[%s250 + $0x48] sm:$0xff] %v269
                %v271 = vld [vmem:[%s249 + $0x90] sm:$0xff]
                %272 = vst [vmem:[%s250 + $0x50] sm:$0xff] %v271
                %v273 = vld [vmem:[%s249 + $0x98] sm:$0xff]
                %274 = vst [vmem:[%s250 + $0x58] sm:$0xff] %v273
                %v275 = vld [vmem:[%s249 + $0xc0] sm:$0xff]
                %276 = vst [vmem:[%s250 + $0x60] sm:$0xff] %v275
                %v277 = vld [vmem:[%s249 + $0xc8] sm:$0xff]
                %278 = vst [vmem:[%s250 + $0x68] sm:$0xff] %v277
                %v279 = vld [vmem:[%s249 + $0xd0] sm:$0xff]
                %280 = vst [vmem:[%s250 + $0x70] sm:$0xff] %v279
                %v281 = vld [vmem:[%s249 + $0xd8] sm:$0xff]
                %282 = vst [vmem:[%s250 + $0x78] sm:$0xff] %v281
                %v283 = vld [vmem:[%s249 + $0x100] sm:$0xff]
                %284 = vst [vmem:[%s250 + $0x80] sm:$0xff] %v283
                %v285 = vld [vmem:[%s249 + $0x108] sm:$0xff]
                %286 = vst [vmem:[%s250 + $0x88] sm:$0xff] %v285
                %v287 = vld [vmem:[%s249 + $0x110] sm:$0xff]
                %288 = vst [vmem:[%s250 + $0x90] sm:$0xff] %v287
                %v289 = vld [vmem:[%s249 + $0x118] sm:$0xff]
                %290 = vst [vmem:[%s250 + $0x98] sm:$0xff] %v289
                %v291 = vld [vmem:[%s249 + $0x140] sm:$0xff]
                %292 = vst [vmem:[%s250 + $0xa0] sm:$0xff] %v291
                %v293 = vld [vmem:[%s249 + $0x148] sm:$0xff]
                %294 = vst [vmem:[%s250 + $0xa8] sm:$0xff] %v293
                %v295 = vld [vmem:[%s249 + $0x150] sm:$0xff]
                %296 = vst [vmem:[%s250 + $0xb0] sm:$0xff] %v295
                %v297 = vld [vmem:[%s249 + $0x158] sm:$0xff]
                %298 = vst [vmem:[%s250 + $0xb8] sm:$0xff] %v297
                %v299 = vld [vmem:[%s249 + $0x180] sm:$0xff]
                %300 = vst [vmem:[%s250 + $0xc0] sm:$0xff] %v299
                %v301 = vld [vmem:[%s249 + $0x188] sm:$0xff]
                %302 = vst [vmem:[%s250 + $0xc8] sm:$0xff] %v301
                %v303 = vld [vmem:[%s249 + $0x190] sm:$0xff]
                %304 = vst [vmem:[%s250 + $0xd0] sm:$0xff] %v303
                %v305 = vld [vmem:[%s249 + $0x198] sm:$0xff]
                %306 = vst [vmem:[%s250 + $0xd8] sm:$0xff] %v305
                %v307 = vld [vmem:[%s249 + $0x1c0] sm:$0xff]
                %308 = vst [vmem:[%s250 + $0xe0] sm:$0xff] %v307
                %v309 = vld [vmem:[%s249 + $0x1c8] sm:$0xff]
                %310 = vst [vmem:[%s250 + $0xe8] sm:$0xff] %v309
                %v311 = vld [vmem:[%s249 + $0x1d0] sm:$0xff]
                %312 = vst [vmem:[%s250 + $0xf0] sm:$0xff] %v311
                %v313 = vld [vmem:[%s249 + $0x1d8] sm:$0xff]
                %314 = vst [vmem:[%s250 + $0xf8] sm:$0xff] %v313
              $region49: #{encoder_forward.1} parent=43 // loop_footer
                %s248 = sadd.s32 1, %s244
              $region50: #{encoder_forward.1} parent=43 // loop_footer_branch
                %243 = sbr.rel target = $region46
              $region51: #{encoder_forward.1} parent=43 // loop_exit
                _
            $region44: #{encoder_forward.1} parent=39 // pred_fallthru
              _
            // Predicated region
            $region52: #{encoder_forward.1} parent=39 // pred_check
              _
            $region53: #{encoder_forward.1} parent=39 // pred_check_branch
              %316 = sbr.rel target = $region55
            $region54: #{encoder_forward.1} parent=39 // pred_region
              _
            $region55: #{encoder_forward.1} parent=39 // pred_fallthru
              _
          $region40: #{encoder_forward.1} parent=35 // pred_fallthru
            _
          %317 = vnop
        $region36: #{encoder_forward.1} parent=31 // pred_fallthru
          _
      $region32: #{encoder_forward.1} parent=5 // pred_fallthru
        _
      %p318 = scmp.le.s32.totalorder 1, %s19
      %p319 = scmp.lt.s32.totalorder %s19, 3
      %p320 = pnand %p318, %p319
      %p321 = pneg %p320
      // Predicated region
      $region56: #{encoder_forward.1} parent=5 // pred_check
        _
      $region57: #{encoder_forward.1} parent=5 // pred_check_branch
        %323 = sbr.rel (%p320) target = $region59
      $region58: #{encoder_forward.1} parent=5 // pred_region
        %s324 = ssub.s32 %s19, 1
        %s325 = sand.u32 %s46, 1
        %s326 = sand.u32 %s46, 1
        %s327 = smul.addr %s326, 256
        %s328 = scalar_lea.vmem [#allocation4], %s327
        // Predicated region
        $region60: #{encoder_forward.1} parent=58 // pred_check
          %p329 = pneg %p59
        $region61: #{encoder_forward.1} parent=58 // pred_check_branch
          %331 = sbr.rel (%p329) target = $region63
        $region62: #{encoder_forward.1} parent=58 // pred_region
          _
        $region63: #{encoder_forward.1} parent=58 // pred_fallthru
          _
        %s332 = sand.u32 %s46, 1
        %s333 = sand.u32 %s46, 1
        %s334 = smul.addr %s333, 256
        %s335 = scalar_lea.vmem [#allocation4], %s334
        %p336 = pneg %p59
        %p337 = pneg %p56
        %p338 = pneg %p80
        %p339 = pneg %p77
        %p340 = pneg %p101
        %p341 = pneg %p98
        %p342 = pneg %p122
        %p343 = pneg %p119
        %p344 = pneg %p143
        %p345 = pneg %p140
        %p346 = pneg %p169
        %p347 = pneg %p166
        %s348 = sand.u32 %s156, 1
        %s349 = scalar_lea.sflag [#allocation6], %s348
        %s350 = sand.u32 %s156, 1
        %s351 = smul.addr %s350, 16
        %s352 = scalar_lea.vmem [#allocation5], %s351
        %p353 = pneg %p195
        %p354 = pneg %p192
        %s355 = sand.u32 %s182, 1
        %s356 = scalar_lea.sflag [#allocation8], %s355
        %s357 = sand.u32 %s182, 1
        %s358 = smul.addr %s357, 16
        %s359 = scalar_lea.vmem [#allocation7], %s358
        %s360 = smul.u32 8, %s29
        %p362 = scmp.eq.s32.totalorder %s29, 0
        // Predicated region
        $region64: #{encoder_forward.1} parent=58 // pred_check
          %p363 = pneg %p362
        $region65: #{encoder_forward.1} parent=58 // pred_check_branch
          %365 = sbr.rel (%p363) target = $region67
        $region66: #{encoder_forward.1} parent=58 // pred_region
          %366 = vst [vmem:[#allocation2] sm:$0xf] 0
          %367 = vst [vmem:[#allocation2 + $0x4] sm:$0xf] 0
          %368 = vst [vmem:[#allocation3] sm:$0xff] 0.0
          %369 = vst [vmem:[#allocation3 + $0x8] sm:$0xff] 0.0
        $region67: #{encoder_forward.1} parent=58 // pred_fallthru
          _
        %v370 = vld [vmem:[%s1] sm:$0xff]
        %v371 = vld [vmem:[%s1 + $0x8] sm:$0xff]
        %v372 = vld [vmem:[%s1 + $0x10] sm:$0xff]
        %v373 = vld [vmem:[%s1 + $0x18] sm:$0xff]
        %v374 = vld [vmem:[%s1 + $0x20] sm:$0xff]
        %v375 = vld [vmem:[%s1 + $0x28] sm:$0xff]
        %v376 = vld [vmem:[%s1 + $0x30] sm:$0xff]
        %v377 = vld [vmem:[%s1 + $0x38] sm:$0xff]
        %v378 = vld [vmem:[%s1 + $0x40] sm:$0xff]
        %v379 = vld [vmem:[%s1 + $0x48] sm:$0xff]
        %v380 = vld [vmem:[%s1 + $0x50] sm:$0xff]
        %v381 = vld [vmem:[%s1 + $0x58] sm:$0xff]
        %v382 = vld [vmem:[%s1 + $0x60] sm:$0xff]
        %v383 = vld [vmem:[%s1 + $0x68] sm:$0xff]
        %v384 = vld [vmem:[%s1 + $0x70] sm:$0xff]
        %v385 = vld [vmem:[%s1 + $0x78] sm:$0xff]
        %v386 = vld [vmem:[%s1 + $0x80] sm:$0xff]
        %v387 = vld [vmem:[%s1 + $0x88] sm:$0xff]
        %v388 = vld [vmem:[%s1 + $0x90] sm:$0xff]
        %v389 = vld [vmem:[%s1 + $0x98] sm:$0xff]
        %v390 = vld [vmem:[%s1 + $0xa0] sm:$0xff]
        %v391 = vld [vmem:[%s1 + $0xa8] sm:$0xff]
        %v392 = vld [vmem:[%s1 + $0xb0] sm:$0xff]
        %v393 = vld [vmem:[%s1 + $0xb8] sm:$0xff]
        %v394 = vld [vmem:[%s1 + $0xc0] sm:$0xff]
        %v395 = vld [vmem:[%s1 + $0xc8] sm:$0xff]
        %v396 = vld [vmem:[%s1 + $0xd0] sm:$0xff]
        %v397 = vld [vmem:[%s1 + $0xd8] sm:$0xff]
        %v398 = vld [vmem:[%s1 + $0xe0] sm:$0xff]
        %v399 = vld [vmem:[%s1 + $0xe8] sm:$0xff]
        %v400 = vld [vmem:[%s1 + $0xf0] sm:$0xff]
        %v401 = vld [vmem:[%s1 + $0xf8] sm:$0xff]
        %v402 = vld [vmem:[%s2] sm:$0xff]
        %v403 = vld [vmem:[%s2 + $0x8] sm:$0xff]
        %v404 = vld [vmem:[%s2 + $0x10] sm:$0xff]
        %v405 = vld [vmem:[%s2 + $0x18] sm:$0xff]
        %v406 = vld [vmem:[%s2 + $0x20] sm:$0xff]
        %v407 = vld [vmem:[%s2 + $0x28] sm:$0xff]
        %v408 = vld [vmem:[%s2 + $0x30] sm:$0xff]
        %v409 = vld [vmem:[%s2 + $0x38] sm:$0xff]
        %v410 = vld [vmem:[%s2 + $0x40] sm:$0xff]
        %v411 = vld [vmem:[%s2 + $0x48] sm:$0xff]
        %v412 = vld [vmem:[%s2 + $0x50] sm:$0xff]
        %v413 = vld [vmem:[%s2 + $0x58] sm:$0xff]
        %v414 = vld [vmem:[%s2 + $0x60] sm:$0xff]
        %v415 = vld [vmem:[%s2 + $0x68] sm:$0xff]
        %v416 = vld [vmem:[%s2 + $0x70] sm:$0xff]
        %v417 = vld [vmem:[%s2 + $0x78] sm:$0xff]
        %v418 = vld [vmem:[%s2 + $0x80] sm:$0xff]
        %v419 = vld [vmem:[%s2 + $0x88] sm:$0xff]
        %v420 = vld [vmem:[%s2 + $0x90] sm:$0xff]
        %v421 = vld [vmem:[%s2 + $0x98] sm:$0xff]
        %v422 = vld [vmem:[%s2 + $0xa0] sm:$0xff]
        %v423 = vld [vmem:[%s2 + $0xa8] sm:$0xff]
        %v424 = vld [vmem:[%s2 + $0xb0] sm:$0xff]
        %v425 = vld [vmem:[%s2 + $0xb8] sm:$0xff]
        %v426 = vld [vmem:[%s2 + $0xc0] sm:$0xff]
        %v427 = vld [vmem:[%s2 + $0xc8] sm:$0xff]
        %v428 = vld [vmem:[%s2 + $0xd0] sm:$0xff]
        %v429 = vld [vmem:[%s2 + $0xd8] sm:$0xff]
        %v430 = vld [vmem:[%s2 + $0xe0] sm:$0xff]
        %v431 = vld [vmem:[%s2 + $0xe8] sm:$0xff]
        %v432 = vld [vmem:[%s2 + $0xf0] sm:$0xff]
        %v433 = vld [vmem:[%s2 + $0xf8] sm:$0xff]
        %v434 = vld [vmem:[%s3] sm:$0xff]
        %v435 = vld [vmem:[%s3 + $0x8] sm:$0xff]
        %v436 = vld [vmem:[%s3 + $0x10] sm:$0xff]
        %v437 = vld [vmem:[%s3 + $0x18] sm:$0xff]
        %v438 = vld [vmem:[%s3 + $0x20] sm:$0xff]
        %v439 = vld [vmem:[%s3 + $0x28] sm:$0xff]
        %v440 = vld [vmem:[%s3 + $0x30] sm:$0xff]
        %v441 = vld [vmem:[%s3 + $0x38] sm:$0xff]
        %v442 = vld [vmem:[%s3 + $0x40] sm:$0xff]
        %v443 = vld [vmem:[%s3 + $0x48] sm:$0xff]
        %v444 = vld [vmem:[%s3 + $0x50] sm:$0xff]
        %v445 = vld [vmem:[%s3 + $0x58] sm:$0xff]
        %v446 = vld [vmem:[%s3 + $0x60] sm:$0xff]
        %v447 = vld [vmem:[%s3 + $0x68] sm:$0xff]
        %v448 = vld [vmem:[%s3 + $0x70] sm:$0xff]
        %v449 = vld [vmem:[%s3 + $0x78] sm:$0xff]
        %v450 = vld [vmem:[%s3 + $0x80] sm:$0xff]
        %v451 = vld [vmem:[%s3 + $0x88] sm:$0xff]
        %v452 = vld [vmem:[%s3 + $0x90] sm:$0xff]
        %v453 = vld [vmem:[%s3 + $0x98] sm:$0xff]
        %v454 = vld [vmem:[%s3 + $0xa0] sm:$0xff]
        %v455 = vld [vmem:[%s3 + $0xa8] sm:$0xff]
        %v456 = vld [vmem:[%s3 + $0xb0] sm:$0xff]
        %v457 = vld [vmem:[%s3 + $0xb8] sm:$0xff]
        %v458 = vld [vmem:[%s3 + $0xc0] sm:$0xff]
        %v459 = vld [vmem:[%s3 + $0xc8] sm:$0xff]
        %v460 = vld [vmem:[%s3 + $0xd0] sm:$0xff]
        %v461 = vld [vmem:[%s3 + $0xd8] sm:$0xff]
        %v462 = vld [vmem:[%s3 + $0xe0] sm:$0xff]
        %v463 = vld [vmem:[%s3 + $0xe8] sm:$0xff]
        %v464 = vld [vmem:[%s3 + $0xf0] sm:$0xff]
        %v465 = vld [vmem:[%s3 + $0xf8] sm:$0xff]
        %v466 = vld [vmem:[%s4] sm:$0xf]
        %v468 = vperm.slane %v466, 0
        %v469 = vperm.slane %v466, 1
        %v470 = vperm.slane %v466, 2
        %v471 = vperm.slane %v466, 3
        %v476 = vld [vmem:[#allocation2] sm:$0xf]
        %s477 = scalar_lea.vmem [#allocation2], 4
        %v478 = vld [vmem:[%s477] sm:$0xf]
        %v479 = vld [vmem:[#allocation3] sm:$0xff]
        %s480 = scalar_lea.vmem [#allocation3], 8
        %v481 = vld [vmem:[%s480] sm:$0xff]
        %v482 = vld [vmem:[%s328] sm:$0xff]
        %v483 = vld [vmem:[%s328 + $0x8] sm:$0xff]
        %v484 = vld [vmem:[%s328 + $0x10] sm:$0xff]
        %v485 = vld [vmem:[%s328 + $0x18] sm:$0xff]
        %v518 = vunpack.c.l.b16 %v370
        %v519 = vunpack.c.h.b16 %v370
        %v520 = vunpack.c.l.b16 %v371
        %v521 = vunpack.c.h.b16 %v371
        %v522 = vunpack.c.l.b16 %v372
        %v523 = vunpack.c.h.b16 %v372
        %v524 = vunpack.c.l.b16 %v373
        %v525 = vunpack.c.h.b16 %v373
        %v526 = vunpack.c.l.b16 %v374
        %v527 = vunpack.c.h.b16 %v374
        %v528 = vunpack.c.l.b16 %v375
        %v529 = vunpack.c.h.b16 %v375
        %v530 = vunpack.c.l.b16 %v376
        %v531 = vunpack.c.h.b16 %v376
        %v532 = vunpack.c.l.b16 %v377
        %v533 = vunpack.c.h.b16 %v377
        %v534 = vunpack.c.l.b16 %v378
        %v535 = vunpack.c.h.b16 %v378
        %v536 = vunpack.c.l.b16 %v379
        %v537 = vunpack.c.h.b16 %v379
        %v538 = vunpack.c.l.b16 %v380
        %v539 = vunpack.c.h.b16 %v380
        %v540 = vunpack.c.l.b16 %v381
        %v541 = vunpack.c.h.b16 %v381
        %v542 = vunpack.c.l.b16 %v382
        %v543 = vunpack.c.h.b16 %v382
        %v544 = vunpack.c.l.b16 %v383
        %v545 = vunpack.c.h.b16 %v383
        %v546 = vunpack.c.l.b16 %v384
        %v547 = vunpack.c.h.b16 %v384
        %v548 = vunpack.c.l.b16 %v385
        %v549 = vunpack.c.h.b16 %v385
        %v550 = vunpack.c.l.b16 %v386
        %v551 = vunpack.c.h.b16 %v386
        %v552 = vunpack.c.l.b16 %v387
        %v553 = vunpack.c.h.b16 %v387
        %v554 = vunpack.c.l.b16 %v388
        %v555 = vunpack.c.h.b16 %v388
        %v556 = vunpack.c.l.b16 %v389
        %v557 = vunpack.c.h.b16 %v389
        %v558 = vunpack.c.l.b16 %v390
        %v559 = vunpack.c.h.b16 %v390
        %v560 = vunpack.c.l.b16 %v391
        %v561 = vunpack.c.h.b16 %v391
        %v562 = vunpack.c.l.b16 %v392
        %v563 = vunpack.c.h.b16 %v392
        %v564 = vunpack.c.l.b16 %v393
        %v565 = vunpack.c.h.b16 %v393
        %v566 = vunpack.c.l.b16 %v394
        %v567 = vunpack.c.h.b16 %v394
        %v568 = vunpack.c.l.b16 %v395
        %v569 = vunpack.c.h.b16 %v395
        %v570 = vunpack.c.l.b16 %v396
        %v571 = vunpack.c.h.b16 %v396
        %v572 = vunpack.c.l.b16 %v397
        %v573 = vunpack.c.h.b16 %v397
        %v574 = vunpack.c.l.b16 %v398
        %v575 = vunpack.c.h.b16 %v398
        %v576 = vunpack.c.l.b16 %v399
        %v577 = vunpack.c.h.b16 %v399
        %v578 = vunpack.c.l.b16 %v400
        %v579 = vunpack.c.h.b16 %v400
        %v580 = vunpack.c.l.b16 %v401
        %v581 = vunpack.c.h.b16 %v401
        %v582 = vpack.c.b16 %v522, %v518
        %v583 = vpack.c.b16 %v523, %v519
        %v584 = vpack.c.b16 %v524, %v520
        %v585 = vpack.c.b16 %v525, %v521
        %v586 = vpack.c.b16 %v530, %v526
        %v587 = vpack.c.b16 %v531, %v527
        %v588 = vpack.c.b16 %v532, %v528
        %v589 = vpack.c.b16 %v533, %v529
        %v590 = vpack.c.b16 %v538, %v534
        %v591 = vpack.c.b16 %v539, %v535
        %v592 = vpack.c.b16 %v540, %v536
        %v593 = vpack.c.b16 %v541, %v537
        %v594 = vpack.c.b16 %v546, %v542
        %v595 = vpack.c.b16 %v547, %v543
        %v596 = vpack.c.b16 %v548, %v544
        %v597 = vpack.c.b16 %v549, %v545
        %v598 = vpack.c.b16 %v554, %v550
        %v599 = vpack.c.b16 %v555, %v551
        %v600 = vpack.c.b16 %v556, %v552
        %v601 = vpack.c.b16 %v557, %v553
        %v602 = vpack.c.b16 %v562, %v558
        %v603 = vpack.c.b16 %v563, %v559
        %v604 = vpack.c.b16 %v564, %v560
        %v605 = vpack.c.b16 %v565, %v561
        %v606 = vpack.c.b16 %v570, %v566
        %v607 = vpack.c.b16 %v571, %v567
        %v608 = vpack.c.b16 %v572, %v568
        %v609 = vpack.c.b16 %v573, %v569
        %v610 = vpack.c.b16 %v578, %v574
        %v611 = vpack.c.b16 %v579, %v575
        %v612 = vpack.c.b16 %v580, %v576
        %v613 = vpack.c.b16 %v581, %v577
        %646 = vmatpush.bf16.msra.mxu0 %v610
        %647 = vmatpush.bf16.msra.mxu0 %v606
        %648 = vmatpush.bf16.msra.mxu0 %v602
        %649 = vmatpush.bf16.msra.mxu0 %v598
        %650 = vmatpush.bf16.msra.mxu0 %v594
        %651 = vmatpush.bf16.msra.mxu0 %v590
        %652 = vmatpush.bf16.msra.mxu0 %v586
        %653 = vmatpush.bf16.msra.mxu0 %v582
        %654 = vmatmul.bf16.gmra.mxu0 %v476
        %v655 = vpop.f32.mrf.mxu0
        %v656 = vadd.f32 0.0, %v655
        %v657 = vpop.f32.mrf.mxu0
        %658 = vdwg.mxu0
        %659 = vmatpush.bf16.msra.mxu0 %v611
        %660 = vmatpush.bf16.msra.mxu0 %v607
        %661 = vmatpush.bf16.msra.mxu0 %v603
        %662 = vmatpush.bf16.msra.mxu0 %v599
        %663 = vmatpush.bf16.msra.mxu0 %v595
        %664 = vmatpush.bf16.msra.mxu0 %v591
        %665 = vmatpush.bf16.msra.mxu0 %v587
        %666 = vmatpush.bf16.msra.mxu0 %v583
        %667 = vmatmul.bf16.gmra.mxu0 %v476
        %v668 = vpop.f32.mrf.mxu0
        %v669 = vadd.f32 0.0, %v668
        %v670 = vpop.f32.mrf.mxu0
        %671 = vdwg.mxu0
        %672 = vmatpush.bf16.msra.mxu0 %v612
        %673 = vmatpush.bf16.msra.mxu0 %v608
        %674 = vmatpush.bf16.msra.mxu0 %v604
        %675 = vmatpush.bf16.msra.mxu0 %v600
        %676 = vmatpush.bf16.msra.mxu0 %v596
        %677 = vmatpush.bf16.msra.mxu0 %v592
        %678 = vmatpush.bf16.msra.mxu0 %v588
        %679 = vmatpush.bf16.msra.mxu0 %v584
        %680 = vmatmul.bf16.gmra.mxu0 %v476
        %v681 = vpop.f32.mrf.mxu0
        %v682 = vadd.f32 0.0, %v681
        %v683 = vpop.f32.mrf.mxu0
        %684 = vdwg.mxu0
        %685 = vmatpush.bf16.msra.mxu0 %v613
        %686 = vmatpush.bf16.msra.mxu0 %v609
        %687 = vmatpush.bf16.msra.mxu0 %v605
        %688 = vmatpush.bf16.msra.mxu0 %v601
        %689 = vmatpush.bf16.msra.mxu0 %v597
        %690 = vmatpush.bf16.msra.mxu0 %v593
        %691 = vmatpush.bf16.msra.mxu0 %v589
        %692 = vmatpush.bf16.msra.mxu0 %v585
        %693 = vmatmul.bf16.gmra.mxu0 %v476
        %v694 = vpop.f32.mrf.mxu0
        %v695 = vadd.f32 0.0, %v694
        %v696 = vpop.f32.mrf.mxu0
        %697 = vdwg.mxu0
        %v698 = vadd.f32 %v482, %v656
        %v699 = vadd.f32 %v483, %v669
        %v700 = vadd.f32 %v484, %v682
        %v701 = vadd.f32 %v485, %v695
        %v702 = vxor.u32 %v698, 2147483648
        %v703 = vxor.u32 %v699, 2147483648
        %v704 = vxor.u32 %v700, 2147483648
        %v705 = vmul.f32 %v702, 1.442695
        %v706 = vpow.pop %v705
        %v707 = vmul.f32 %v703, 1.442695
        %v708 = vpow.pop %v707
        %v709 = vmul.f32 %v704, 1.442695
        %v710 = vpow.pop %v709
        %v711 = vadd.f32 %v706, 1.0
        %v712 = vadd.f32 %v708, 1.0
        %v713 = vadd.f32 %v710, 1.0
        %v714 = vrcp.pop %v711
        %v715 = vmul.f32 %v711, %v714
        %v716 = vsub.f32 1.0, %v715
        %v717 = vmul.f32 %v714, %v716
        %v718 = vadd.f32 %v714, %v717
        %vm719 = vweird.f32 %v711
        %vm720 = vweird.f32 %v714
        %vm721 = vmor %vm719, %vm720
        %v722 = vsel %vm721, %v714, %v718
        %v723 = vand.u32 2147483647, %v711
        %vm724 = vcmp.eq.f32.partialorder %v723, 8.507059e+37
        %v725 = vand.u32 %v711, 2147483648
        %v726 = vor.u32 1.1754944e-38, %v725
        %v727 = vsel %vm724, %v726, %v722
        %v728 = vmul.f32 1.0, %v727
        %v729 = vrcp.pop %v712
        %v730 = vmul.f32 %v712, %v729
        %v731 = vsub.f32 1.0, %v730
        %v732 = vmul.f32 %v729, %v731
        %v733 = vadd.f32 %v729, %v732
        %vm734 = vweird.f32 %v712
        %vm735 = vweird.f32 %v729
        %vm736 = vmor %vm734, %vm735
        %v737 = vsel %vm736, %v729, %v733
        %v738 = vand.u32 2147483647, %v712
        %vm739 = vcmp.eq.f32.partialorder %v738, 8.507059e+37
        %v740 = vand.u32 %v712, 2147483648
        %v741 = vor.u32 1.1754944e-38, %v740
        %v742 = vsel %vm739, %v741, %v737
        %v743 = vmul.f32 1.0, %v742
        %v744 = vrcp.pop %v713
        %v745 = vmul.f32 %v713, %v744
        %v746 = vsub.f32 1.0, %v745
        %v747 = vmul.f32 %v744, %v746
        %v748 = vadd.f32 %v744, %v747
        %vm749 = vweird.f32 %v713
        %vm750 = vweird.f32 %v744
        %vm751 = vmor %vm749, %vm750
        %v752 = vsel %vm751, %v744, %v748
        %v753 = vand.u32 2147483647, %v713
        %vm754 = vcmp.eq.f32.partialorder %v753, 8.507059e+37
        %v755 = vand.u32 %v713, 2147483648
        %v756 = vor.u32 1.1754944e-38, %v755
        %v757 = vsel %vm754, %v756, %v752
        %v758 = vmul.f32 1.0, %v757
        %v759 = vtanh.pop %v701
        %v760 = vmul.f32 %v743, %v479
        %v761 = vmul.f32 %v728, %v759
        %v762 = vadd.f32 %v760, %v761
        %v763 = vtanh.pop %v762
        %v764 = vmul.f32 %v758, %v763
        %v765 = vpack.c.bf16 %v764, %v764
        %v798 = vunpack.c.l.b16 %v402
        %v799 = vunpack.c.h.b16 %v402
        %v800 = vunpack.c.l.b16 %v403
        %v801 = vunpack.c.h.b16 %v403
        %v802 = vunpack.c.l.b16 %v404
        %v803 = vunpack.c.h.b16 %v404
        %v804 = vunpack.c.l.b16 %v405
        %v805 = vunpack.c.h.b16 %v405
        %v806 = vunpack.c.l.b16 %v406
        %v807 = vunpack.c.h.b16 %v406
        %v808 = vunpack.c.l.b16 %v407
        %v809 = vunpack.c.h.b16 %v407
        %v810 = vunpack.c.l.b16 %v408
        %v811 = vunpack.c.h.b16 %v408
        %v812 = vunpack.c.l.b16 %v409
        %v813 = vunpack.c.h.b16 %v409
        %v814 = vunpack.c.l.b16 %v410
        %v815 = vunpack.c.h.b16 %v410
        %v816 = vunpack.c.l.b16 %v411
        %v817 = vunpack.c.h.b16 %v411
        %v818 = vunpack.c.l.b16 %v412
        %v819 = vunpack.c.h.b16 %v412
        %v820 = vunpack.c.l.b16 %v413
        %v821 = vunpack.c.h.b16 %v413
        %v822 = vunpack.c.l.b16 %v414
        %v823 = vunpack.c.h.b16 %v414
        %v824 = vunpack.c.l.b16 %v415
        %v825 = vunpack.c.h.b16 %v415
        %v826 = vunpack.c.l.b16 %v416
        %v827 = vunpack.c.h.b16 %v416
        %v828 = vunpack.c.l.b16 %v417
        %v829 = vunpack.c.h.b16 %v417
        %v830 = vunpack.c.l.b16 %v418
        %v831 = vunpack.c.h.b16 %v418
        %v832 = vunpack.c.l.b16 %v419
        %v833 = vunpack.c.h.b16 %v419
        %v834 = vunpack.c.l.b16 %v420
        %v835 = vunpack.c.h.b16 %v420
        %v836 = vunpack.c.l.b16 %v421
        %v837 = vunpack.c.h.b16 %v421
        %v838 = vunpack.c.l.b16 %v422
        %v839 = vunpack.c.h.b16 %v422
        %v840 = vunpack.c.l.b16 %v423
        %v841 = vunpack.c.h.b16 %v423
        %v842 = vunpack.c.l.b16 %v424
        %v843 = vunpack.c.h.b16 %v424
        %v844 = vunpack.c.l.b16 %v425
        %v845 = vunpack.c.h.b16 %v425
        %v846 = vunpack.c.l.b16 %v426
        %v847 = vunpack.c.h.b16 %v426
        %v848 = vunpack.c.l.b16 %v427
        %v849 = vunpack.c.h.b16 %v427
        %v850 = vunpack.c.l.b16 %v428
        %v851 = vunpack.c.h.b16 %v428
        %v852 = vunpack.c.l.b16 %v429
        %v853 = vunpack.c.h.b16 %v429
        %v854 = vunpack.c.l.b16 %v430
        %v855 = vunpack.c.h.b16 %v430
        %v856 = vunpack.c.l.b16 %v431
        %v857 = vunpack.c.h.b16 %v431
        %v858 = vunpack.c.l.b16 %v432
        %v859 = vunpack.c.h.b16 %v432
        %v860 = vunpack.c.l.b16 %v433
        %v861 = vunpack.c.h.b16 %v433
        %v862 = vpack.c.b16 %v802, %v798
        %v863 = vpack.c.b16 %v803, %v799
        %v864 = vpack.c.b16 %v804, %v800
        %v865 = vpack.c.b16 %v805, %v801
        %v866 = vpack.c.b16 %v810, %v806
        %v867 = vpack.c.b16 %v811, %v807
        %v868 = vpack.c.b16 %v812, %v808
        %v869 = vpack.c.b16 %v813, %v809
        %v870 = vpack.c.b16 %v818, %v814
        %v871 = vpack.c.b16 %v819, %v815
        %v872 = vpack.c.b16 %v820, %v816
        %v873 = vpack.c.b16 %v821, %v817
        %v874 = vpack.c.b16 %v826, %v822
        %v875 = vpack.c.b16 %v827, %v823
        %v876 = vpack.c.b16 %v828, %v824
        %v877 = vpack.c.b16 %v829, %v825
        %v878 = vpack.c.b16 %v834, %v830
        %v879 = vpack.c.b16 %v835, %v831
        %v880 = vpack.c.b16 %v836, %v832
        %v881 = vpack.c.b16 %v837, %v833
        %v882 = vpack.c.b16 %v842, %v838
        %v883 = vpack.c.b16 %v843, %v839
        %v884 = vpack.c.b16 %v844, %v840
        %v885 = vpack.c.b16 %v845, %v841
        %v886 = vpack.c.b16 %v850, %v846
        %v887 = vpack.c.b16 %v851, %v847
        %v888 = vpack.c.b16 %v852, %v848
        %v889 = vpack.c.b16 %v853, %v849
        %v890 = vpack.c.b16 %v858, %v854
        %v891 = vpack.c.b16 %v859, %v855
        %v892 = vpack.c.b16 %v860, %v856
        %v893 = vpack.c.b16 %v861, %v857
        %926 = vmatpush.bf16.msra.mxu0 %v890
        %927 = vmatpush.bf16.msra.mxu0 %v886
        %928 = vmatpush.bf16.msra.mxu0 %v882
        %929 = vmatpush.bf16.msra.mxu0 %v878
        %930 = vmatpush.bf16.msra.mxu0 %v874
        %931 = vmatpush.bf16.msra.mxu0 %v870
        %932 = vmatpush.bf16.msra.mxu0 %v866
        %933 = vmatpush.bf16.msra.mxu0 %v862
        %934 = vmatmul.bf16.gmra.mxu0 %v478
        %v935 = vpop.f32.mrf.mxu0
        %v936 = vadd.f32 0.0, %v935
        %v937 = vpop.f32.mrf.mxu0
        %938 = vdwg.mxu0
        %939 = vmatpush.bf16.msra.mxu0 %v891
        %940 = vmatpush.bf16.msra.mxu0 %v887
        %941 = vmatpush.bf16.msra.mxu0 %v883
        %942 = vmatpush.bf16.msra.mxu0 %v879
        %943 = vmatpush.bf16.msra.mxu0 %v875
        %944 = vmatpush.bf16.msra.mxu0 %v871
        %945 = vmatpush.bf16.msra.mxu0 %v867
        %946 = vmatpush.bf16.msra.mxu0 %v863
        %947 = vmatmul.bf16.gmra.mxu0 %v478
        %v948 = vpop.f32.mrf.mxu0
        %v949 = vadd.f32 0.0, %v948
        %v950 = vpop.f32.mrf.mxu0
        %951 = vdwg.mxu0
        %952 = vmatpush.bf16.msra.mxu0 %v892
        %953 = vmatpush.bf16.msra.mxu0 %v888
        %954 = vmatpush.bf16.msra.mxu0 %v884
        %955 = vmatpush.bf16.msra.mxu0 %v880
        %956 = vmatpush.bf16.msra.mxu0 %v876
        %957 = vmatpush.bf16.msra.mxu0 %v872
        %958 = vmatpush.bf16.msra.mxu0 %v868
        %959 = vmatpush.bf16.msra.mxu0 %v864
        %960 = vmatmul.bf16.gmra.mxu0 %v478
        %v961 = vpop.f32.mrf.mxu0
        %v962 = vadd.f32 0.0, %v961
        %v963 = vpop.f32.mrf.mxu0
        %964 = vdwg.mxu0
        %965 = vmatpush.bf16.msra.mxu0 %v893
        %966 = vmatpush.bf16.msra.mxu0 %v889
        %967 = vmatpush.bf16.msra.mxu0 %v885
        %968 = vmatpush.bf16.msra.mxu0 %v881
        %969 = vmatpush.bf16.msra.mxu0 %v877
        %970 = vmatpush.bf16.msra.mxu0 %v873
        %971 = vmatpush.bf16.msra.mxu0 %v869
        %972 = vmatpush.bf16.msra.mxu0 %v865
        %973 = vmatmul.bf16.gmra.mxu0 %v478
        %v974 = vpop.f32.mrf.mxu0
        %v975 = vadd.f32 0.0, %v974
        %v976 = vpop.f32.mrf.mxu0
        %977 = vdwg.mxu0
        %v1010 = vunpack.c.l.b16 %v434
        %v1011 = vunpack.c.h.b16 %v434
        %v1012 = vunpack.c.l.b16 %v435
        %v1013 = vunpack.c.h.b16 %v435
        %v1014 = vunpack.c.l.b16 %v436
        %v1015 = vunpack.c.h.b16 %v436
        %v1016 = vunpack.c.l.b16 %v437
        %v1017 = vunpack.c.h.b16 %v437
        %v1018 = vunpack.c.l.b16 %v438
        %v1019 = vunpack.c.h.b16 %v438
        %v1020 = vunpack.c.l.b16 %v439
        %v1021 = vunpack.c.h.b16 %v439
        %v1022 = vunpack.c.l.b16 %v440
        %v1023 = vunpack.c.h.b16 %v440
        %v1024 = vunpack.c.l.b16 %v441
        %v1025 = vunpack.c.h.b16 %v441
        %v1026 = vunpack.c.l.b16 %v442
        %v1027 = vunpack.c.h.b16 %v442
        %v1028 = vunpack.c.l.b16 %v443
        %v1029 = vunpack.c.h.b16 %v443
        %v1030 = vunpack.c.l.b16 %v444
        %v1031 = vunpack.c.h.b16 %v444
        %v1032 = vunpack.c.l.b16 %v445
        %v1033 = vunpack.c.h.b16 %v445
        %v1034 = vunpack.c.l.b16 %v446
        %v1035 = vunpack.c.h.b16 %v446
        %v1036 = vunpack.c.l.b16 %v447
        %v1037 = vunpack.c.h.b16 %v447
        %v1038 = vunpack.c.l.b16 %v448
        %v1039 = vunpack.c.h.b16 %v448
        %v1040 = vunpack.c.l.b16 %v449
        %v1041 = vunpack.c.h.b16 %v449
        %v1042 = vunpack.c.l.b16 %v450
        %v1043 = vunpack.c.h.b16 %v450
        %v1044 = vunpack.c.l.b16 %v451
        %v1045 = vunpack.c.h.b16 %v451
        %v1046 = vunpack.c.l.b16 %v452
        %v1047 = vunpack.c.h.b16 %v452
        %v1048 = vunpack.c.l.b16 %v453
        %v1049 = vunpack.c.h.b16 %v453
        %v1050 = vunpack.c.l.b16 %v454
        %v1051 = vunpack.c.h.b16 %v454
        %v1052 = vunpack.c.l.b16 %v455
        %v1053 = vunpack.c.h.b16 %v455
        %v1054 = vunpack.c.l.b16 %v456
        %v1055 = vunpack.c.h.b16 %v456
        %v1056 = vunpack.c.l.b16 %v457
        %v1057 = vunpack.c.h.b16 %v457
        %v1058 = vunpack.c.l.b16 %v458
        %v1059 = vunpack.c.h.b16 %v458
        %v1060 = vunpack.c.l.b16 %v459
        %v1061 = vunpack.c.h.b16 %v459
        %v1062 = vunpack.c.l.b16 %v460
        %v1063 = vunpack.c.h.b16 %v460
        %v1064 = vunpack.c.l.b16 %v461
        %v1065 = vunpack.c.h.b16 %v461
        %v1066 = vunpack.c.l.b16 %v462
        %v1067 = vunpack.c.h.b16 %v462
        %v1068 = vunpack.c.l.b16 %v463
        %v1069 = vunpack.c.h.b16 %v463
        %v1070 = vunpack.c.l.b16 %v464
        %v1071 = vunpack.c.h.b16 %v464
        %v1072 = vunpack.c.l.b16 %v465
        %v1073 = vunpack.c.h.b16 %v465
        %v1074 = vpack.c.b16 %v1014, %v1010
        %v1075 = vpack.c.b16 %v1015, %v1011
        %v1076 = vpack.c.b16 %v1016, %v1012
        %v1077 = vpack.c.b16 %v1017, %v1013
        %v1078 = vpack.c.b16 %v1022, %v1018
        %v1079 = vpack.c.b16 %v1023, %v1019
        %v1080 = vpack.c.b16 %v1024, %v1020
        %v1081 = vpack.c.b16 %v1025, %v1021
        %v1082 = vpack.c.b16 %v1030, %v1026
        %v1083 = vpack.c.b16 %v1031, %v1027
        %v1084 = vpack.c.b16 %v1032, %v1028
        %v1085 = vpack.c.b16 %v1033, %v1029
        %v1086 = vpack.c.b16 %v1038, %v1034
        %v1087 = vpack.c.b16 %v1039, %v1035
        %v1088 = vpack.c.b16 %v1040, %v1036
        %v1089 = vpack.c.b16 %v1041, %v1037
        %v1090 = vpack.c.b16 %v1046, %v1042
        %v1091 = vpack.c.b16 %v1047, %v1043
        %v1092 = vpack.c.b16 %v1048, %v1044
        %v1093 = vpack.c.b16 %v1049, %v1045
        %v1094 = vpack.c.b16 %v1054, %v1050
        %v1095 = vpack.c.b16 %v1055, %v1051
        %v1096 = vpack.c.b16 %v1056, %v1052
        %v1097 = vpack.c.b16 %v1057, %v1053
        %v1098 = vpack.c.b16 %v1062, %v1058
        %v1099 = vpack.c.b16 %v1063, %v1059
        %v1100 = vpack.c.b16 %v1064, %v1060
        %v1101 = vpack.c.b16 %v1065, %v1061
        %v1102 = vpack.c.b16 %v1070, %v1066
        %v1103 = vpack.c.b16 %v1071, %v1067
        %v1104 = vpack.c.b16 %v1072, %v1068
        %v1105 = vpack.c.b16 %v1073, %v1069
        %1138 = vmatpush.bf16.msra.mxu0 %v1102
        %1139 = vmatpush.bf16.msra.mxu0 %v1098
        %1140 = vmatpush.bf16.msra.mxu0 %v1094
        %1141 = vmatpush.bf16.msra.mxu0 %v1090
        %1142 = vmatpush.bf16.msra.mxu0 %v1086
        %1143 = vmatpush.bf16.msra.mxu0 %v1082
        %1144 = vmatpush.bf16.msra.mxu0 %v1078
        %1145 = vmatpush.bf16.msra.mxu0 %v1074
        %1146 = vmatmul.bf16.gmra.mxu0 %v765
        %v1147 = vpop.f32.mrf.mxu0
        %v1148 = vadd.f32 %v936, %v1147
        %v1149 = vpop.f32.mrf.mxu0
        %1150 = vdwg.mxu0
        %1151 = vmatpush.bf16.msra.mxu0 %v1103
        %1152 = vmatpush.bf16.msra.mxu0 %v1099
        %1153 = vmatpush.bf16.msra.mxu0 %v1095
        %1154 = vmatpush.bf16.msra.mxu0 %v1091
        %1155 = vmatpush.bf16.msra.mxu0 %v1087
        %1156 = vmatpush.bf16.msra.mxu0 %v1083
        %1157 = vmatpush.bf16.msra.mxu0 %v1079
        %1158 = vmatpush.bf16.msra.mxu0 %v1075
        %1159 = vmatmul.bf16.gmra.mxu0 %v765
        %v1160 = vpop.f32.mrf.mxu0
        %v1161 = vadd.f32 %v949, %v1160
        %v1162 = vpop.f32.mrf.mxu0
        %1163 = vdwg.mxu0
        %1164 = vmatpush.bf16.msra.mxu0 %v1104
        %1165 = vmatpush.bf16.msra.mxu0 %v1100
        %1166 = vmatpush.bf16.msra.mxu0 %v1096
        %1167 = vmatpush.bf16.msra.mxu0 %v1092
        %1168 = vmatpush.bf16.msra.mxu0 %v1088
        %1169 = vmatpush.bf16.msra.mxu0 %v1084
        %1170 = vmatpush.bf16.msra.mxu0 %v1080
        %1171 = vmatpush.bf16.msra.mxu0 %v1076
        %1172 = vmatmul.bf16.gmra.mxu0 %v765
        %v1173 = vpop.f32.mrf.mxu0
        %v1174 = vadd.f32 %v962, %v1173
        %v1175 = vpop.f32.mrf.mxu0
        %1176 = vdwg.mxu0
        %1177 = vmatpush.bf16.msra.mxu0 %v1105
        %1178 = vmatpush.bf16.msra.mxu0 %v1101
        %1179 = vmatpush.bf16.msra.mxu0 %v1097
        %1180 = vmatpush.bf16.msra.mxu0 %v1093
        %1181 = vmatpush.bf16.msra.mxu0 %v1089
        %1182 = vmatpush.bf16.msra.mxu0 %v1085
        %1183 = vmatpush.bf16.msra.mxu0 %v1081
        %1184 = vmatpush.bf16.msra.mxu0 %v1077
        %1185 = vmatmul.bf16.gmra.mxu0 %v765
        %v1186 = vpop.f32.mrf.mxu0
        %v1187 = vadd.f32 %v975, %v1186
        %v1188 = vpop.f32.mrf.mxu0
        %1189 = vdwg.mxu0
        %v1190 = vadd.f32 %v1148, %v468
        %v1191 = vadd.f32 %v1161, %v469
        %v1192 = vadd.f32 %v1174, %v470
        %v1193 = vadd.f32 %v1187, %v471
        %v1194 = vxor.u32 %v1190, 2147483648
        %v1195 = vxor.u32 %v1191, 2147483648
        %v1196 = vxor.u32 %v1192, 2147483648
        %v1197 = vmul.f32 %v1194, 1.442695
        %v1198 = vpow.pop %v1197
        %v1199 = vmul.f32 %v1195, 1.442695
        %v1200 = vpow.pop %v1199
        %v1201 = vmul.f32 %v1196, 1.442695
        %v1202 = vpow.pop %v1201
        %v1203 = vadd.f32 %v1198, 1.0
        %v1204 = vadd.f32 %v1200, 1.0
        %v1205 = vadd.f32 %v1202, 1.0
        %v1206 = vrcp.pop %v1203
        %v1207 = vmul.f32 %v1203, %v1206
        %v1208 = vsub.f32 1.0, %v1207
        %v1209 = vmul.f32 %v1206, %v1208
        %v1210 = vadd.f32 %v1206, %v1209
        %vm1211 = vweird.f32 %v1203
        %vm1212 = vweird.f32 %v1206
        %vm1213 = vmor %vm1211, %vm1212
        %v1214 = vsel %vm1213, %v1206, %v1210
        %v1215 = vand.u32 2147483647, %v1203
        %vm1216 = vcmp.eq.f32.partialorder %v1215, 8.507059e+37
        %v1217 = vand.u32 %v1203, 2147483648
        %v1218 = vor.u32 1.1754944e-38, %v1217
        %v1219 = vsel %vm1216, %v1218, %v1214
        %v1220 = vmul.f32 1.0, %v1219
        %v1221 = vrcp.pop %v1204
        %v1222 = vmul.f32 %v1204, %v1221
        %v1223 = vsub.f32 1.0, %v1222
        %v1224 = vmul.f32 %v1221, %v1223
        %v1225 = vadd.f32 %v1221, %v1224
        %vm1226 = vweird.f32 %v1204
        %vm1227 = vweird.f32 %v1221
        %vm1228 = vmor %vm1226, %vm1227
        %v1229 = vsel %vm1228, %v1221, %v1225
        %v1230 = vand.u32 2147483647, %v1204
        %vm1231 = vcmp.eq.f32.partialorder %v1230, 8.507059e+37
        %v1232 = vand.u32 %v1204, 2147483648
        %v1233 = vor.u32 1.1754944e-38, %v1232
        %v1234 = vsel %vm1231, %v1233, %v1229
        %v1235 = vmul.f32 1.0, %v1234
        %v1236 = vrcp.pop %v1205
        %v1237 = vmul.f32 %v1205, %v1236
        %v1238 = vsub.f32 1.0, %v1237
        %v1239 = vmul.f32 %v1236, %v1238
        %v1240 = vadd.f32 %v1236, %v1239
        %vm1241 = vweird.f32 %v1205
        %vm1242 = vweird.f32 %v1236
        %vm1243 = vmor %vm1241, %vm1242
        %v1244 = vsel %vm1243, %v1236, %v1240
        %v1245 = vand.u32 2147483647, %v1205
        %vm1246 = vcmp.eq.f32.partialorder %v1245, 8.507059e+37
        %v1247 = vand.u32 %v1205, 2147483648
        %v1248 = vor.u32 1.1754944e-38, %v1247
        %v1249 = vsel %vm1246, %v1248, %v1244
        %v1250 = vmul.f32 1.0, %v1249
        %v1251 = vtanh.pop %v1193
        %v1252 = vmul.f32 %v1235, %v481
        %v1253 = vmul.f32 %v1220, %v1251
        %v1254 = vadd.f32 %v1252, %v1253
        %v1255 = vtanh.pop %v1254
        %v1256 = vmul.f32 %v1250, %v1255
        %v1257 = vpack.c.bf16 %v1256, %v1256
        %s1258 = scalar_lea.vmem %s328, 32 [#allocation4]
        %v1259 = vld [vmem:[%s1258] sm:$0xff]
        %v1260 = vld [vmem:[%s1258 + $0x8] sm:$0xff]
        %v1261 = vld [vmem:[%s1258 + $0x10] sm:$0xff]
        %v1262 = vld [vmem:[%s1258 + $0x18] sm:$0xff]
        %1263 = vmatpush.bf16.msra.mxu0 %v610
        %1264 = vmatpush.bf16.msra.mxu0 %v606
        %1265 = vmatpush.bf16.msra.mxu0 %v602
        %1266 = vmatpush.bf16.msra.mxu0 %v598
        %1267 = vmatpush.bf16.msra.mxu0 %v594
        %1268 = vmatpush.bf16.msra.mxu0 %v590
        %1269 = vmatpush.bf16.msra.mxu0 %v586
        %1270 = vmatpush.bf16.msra.mxu0 %v582
        %1271 = vmatmul.bf16.gmra.mxu0 %v765
        %v1272 = vpop.f32.mrf.mxu0
        %v1273 = vadd.f32 0.0, %v1272
        %v1274 = vpop.f32.mrf.mxu0
        %1275 = vdwg.mxu0
        %1276 = vmatpush.bf16.msra.mxu0 %v611
        %1277 = vmatpush.bf16.msra.mxu0 %v607
        %1278 = vmatpush.bf16.msra.mxu0 %v603
        %1279 = vmatpush.bf16.msra.mxu0 %v599
        %1280 = vmatpush.bf16.msra.mxu0 %v595
        %1281 = vmatpush.bf16.msra.mxu0 %v591
        %1282 = vmatpush.bf16.msra.mxu0 %v587
        %1283 = vmatpush.bf16.msra.mxu0 %v583
        %1284 = vmatmul.bf16.gmra.mxu0 %v765
        %v1285 = vpop.f32.mrf.mxu0
        %v1286 = vadd.f32 0.0, %v1285
        %v1287 = vpop.f32.mrf.mxu0
        %1288 = vdwg.mxu0
        %1289 = vmatpush.bf16.msra.mxu0 %v612
        %1290 = vmatpush.bf16.msra.mxu0 %v608
        %1291 = vmatpush.bf16.msra.mxu0 %v604
        %1292 = vmatpush.bf16.msra.mxu0 %v600
        %1293 = vmatpush.bf16.msra.mxu0 %v596
        %1294 = vmatpush.bf16.msra.mxu0 %v592
        %1295 = vmatpush.bf16.msra.mxu0 %v588
        %1296 = vmatpush.bf16.msra.mxu0 %v584
        %1297 = vmatmul.bf16.gmra.mxu0 %v765
        %v1298 = vpop.f32.mrf.mxu0
        %v1299 = vadd.f32 0.0, %v1298
        %v1300 = vpop.f32.mrf.mxu0
        %1301 = vdwg.mxu0
        %1302 = vmatpush.bf16.msra.mxu0 %v613
        %1303 = vmatpush.bf16.msra.mxu0 %v609
        %1304 = vmatpush.bf16.msra.mxu0 %v605
        %1305 = vmatpush.bf16.msra.mxu0 %v601
        %1306 = vmatpush.bf16.msra.mxu0 %v597
        %1307 = vmatpush.bf16.msra.mxu0 %v593
        %1308 = vmatpush.bf16.msra.mxu0 %v589
        %1309 = vmatpush.bf16.msra.mxu0 %v585
        %1310 = vmatmul.bf16.gmra.mxu0 %v765
        %v1311 = vpop.f32.mrf.mxu0
        %v1312 = vadd.f32 0.0, %v1311
        %v1313 = vpop.f32.mrf.mxu0
        %1314 = vdwg.mxu0
        %v1315 = vadd.f32 %v1259, %v1273
        %v1316 = vadd.f32 %v1260, %v1286
        %v1317 = vadd.f32 %v1261, %v1299
        %v1318 = vadd.f32 %v1262, %v1312
        %v1319 = vxor.u32 %v1315, 2147483648
        %v1320 = vxor.u32 %v1316, 2147483648
        %v1321 = vxor.u32 %v1317, 2147483648
        %v1322 = vmul.f32 %v1319, 1.442695
        %v1323 = vpow.pop %v1322
        %v1324 = vmul.f32 %v1320, 1.442695
        %v1325 = vpow.pop %v1324
        %v1326 = vmul.f32 %v1321, 1.442695
        %v1327 = vpow.pop %v1326
        %v1328 = vadd.f32 %v1323, 1.0
        %v1329 = vadd.f32 %v1325, 1.0
        %v1330 = vadd.f32 %v1327, 1.0
        %v1331 = vrcp.pop %v1328
        %v1332 = vmul.f32 %v1328, %v1331
        %v1333 = vsub.f32 1.0, %v1332
        %v1334 = vmul.f32 %v1331, %v1333
        %v1335 = vadd.f32 %v1331, %v1334
        %vm1336 = vweird.f32 %v1328
        %vm1337 = vweird.f32 %v1331
        %vm1338 = vmor %vm1336, %vm1337
        %v1339 = vsel %vm1338, %v1331, %v1335
        %v1340 = vand.u32 2147483647, %v1328
        %vm1341 = vcmp.eq.f32.partialorder %v1340, 8.507059e+37
        %v1342 = vand.u32 %v1328, 2147483648
        %v1343 = vor.u32 1.1754944e-38, %v1342
        %v1344 = vsel %vm1341, %v1343, %v1339
        %v1345 = vmul.f32 1.0, %v1344
        %v1346 = vrcp.pop %v1329
        %v1347 = vmul.f32 %v1329, %v1346
        %v1348 = vsub.f32 1.0, %v1347
        %v1349 = vmul.f32 %v1346, %v1348
        %v1350 = vadd.f32 %v1346, %v1349
        %vm1351 = vweird.f32 %v1329
        %vm1352 = vweird.f32 %v1346
        %vm1353 = vmor %vm1351, %vm1352
        %v1354 = vsel %vm1353, %v1346, %v1350
        %v1355 = vand.u32 2147483647, %v1329
        %vm1356 = vcmp.eq.f32.partialorder %v1355, 8.507059e+37
        %v1357 = vand.u32 %v1329, 2147483648
        %v1358 = vor.u32 1.1754944e-38, %v1357
        %v1359 = vsel %vm1356, %v1358, %v1354
        %v1360 = vmul.f32 1.0, %v1359
        %v1361 = vrcp.pop %v1330
        %v1362 = vmul.f32 %v1330, %v1361
        %v1363 = vsub.f32 1.0, %v1362
        %v1364 = vmul.f32 %v1361, %v1363
        %v1365 = vadd.f32 %v1361, %v1364
        %vm1366 = vweird.f32 %v1330
        %vm1367 = vweird.f32 %v1361
        %vm1368 = vmor %vm1366, %vm1367
        %v1369 = vsel %vm1368, %v1361, %v1365
        %v1370 = vand.u32 2147483647, %v1330
        %vm1371 = vcmp.eq.f32.partialorder %v1370, 8.507059e+37
        %v1372 = vand.u32 %v1330, 2147483648
        %v1373 = vor.u32 1.1754944e-38, %v1372
        %v1374 = vsel %vm1371, %v1373, %v1369
        %v1375 = vmul.f32 1.0, %v1374
        %v1376 = vtanh.pop %v1318
        %v1377 = vmul.f32 %v1360, %v762
        %v1378 = vmul.f32 %v1345, %v1376
        %v1379 = vadd.f32 %v1377, %v1378
        %v1380 = vtanh.pop %v1379
        %v1381 = vmul.f32 %v1375, %v1380
        %v1382 = vpack.c.bf16 %v1381, %v1381
        %1383 = vmatpush.bf16.msra.mxu0 %v890
        %1384 = vmatpush.bf16.msra.mxu0 %v886
        %1385 = vmatpush.bf16.msra.mxu0 %v882
        %1386 = vmatpush.bf16.msra.mxu0 %v878
        %1387 = vmatpush.bf16.msra.mxu0 %v874
        %1388 = vmatpush.bf16.msra.mxu0 %v870
        %1389 = vmatpush.bf16.msra.mxu0 %v866
        %1390 = vmatpush.bf16.msra.mxu0 %v862
        %1391 = vmatmul.bf16.gmra.mxu0 %v1257
        %v1392 = vpop.f32.mrf.mxu0
        %v1393 = vadd.f32 0.0, %v1392
        %v1394 = vpop.f32.mrf.mxu0
        %1395 = vdwg.mxu0
        %1396 = vmatpush.bf16.msra.mxu0 %v891
        %1397 = vmatpush.bf16.msra.mxu0 %v887
        %1398 = vmatpush.bf16.msra.mxu0 %v883
        %1399 = vmatpush.bf16.msra.mxu0 %v879
        %1400 = vmatpush.bf16.msra.mxu0 %v875
        %1401 = vmatpush.bf16.msra.mxu0 %v871
        %1402 = vmatpush.bf16.msra.mxu0 %v867
        %1403 = vmatpush.bf16.msra.mxu0 %v863
        %1404 = vmatmul.bf16.gmra.mxu0 %v1257
        %v1405 = vpop.f32.mrf.mxu0
        %v1406 = vadd.f32 0.0, %v1405
        %v1407 = vpop.f32.mrf.mxu0
        %1408 = vdwg.mxu0
        %1409 = vmatpush.bf16.msra.mxu0 %v892
        %1410 = vmatpush.bf16.msra.mxu0 %v888
        %1411 = vmatpush.bf16.msra.mxu0 %v884
        %1412 = vmatpush.bf16.msra.mxu0 %v880
        %1413 = vmatpush.bf16.msra.mxu0 %v876
        %1414 = vmatpush.bf16.msra.mxu0 %v872
        %1415 = vmatpush.bf16.msra.mxu0 %v868
        %1416 = vmatpush.bf16.msra.mxu0 %v864
        %1417 = vmatmul.bf16.gmra.mxu0 %v1257
        %v1418 = vpop.f32.mrf.mxu0
        %v1419 = vadd.f32 0.0, %v1418
        %v1420 = vpop.f32.mrf.mxu0
        %1421 = vdwg.mxu0
        %1422 = vmatpush.bf16.msra.mxu0 %v893
        %1423 = vmatpush.bf16.msra.mxu0 %v889
        %1424 = vmatpush.bf16.msra.mxu0 %v885
        %1425 = vmatpush.bf16.msra.mxu0 %v881
        %1426 = vmatpush.bf16.msra.mxu0 %v877
        %1427 = vmatpush.bf16.msra.mxu0 %v873
        %1428 = vmatpush.bf16.msra.mxu0 %v869
        %1429 = vmatpush.bf16.msra.mxu0 %v865
        %1430 = vmatmul.bf16.gmra.mxu0 %v1257
        %v1431 = vpop.f32.mrf.mxu0
        %v1432 = vadd.f32 0.0, %v1431
        %v1433 = vpop.f32.mrf.mxu0
        %1434 = vdwg.mxu0
        %1435 = vmatpush.bf16.msra.mxu0 %v1102
        %1436 = vmatpush.bf16.msra.mxu0 %v1098
        %1437 = vmatpush.bf16.msra.mxu0 %v1094
        %1438 = vmatpush.bf16.msra.mxu0 %v1090
        %1439 = vmatpush.bf16.msra.mxu0 %v1086
        %1440 = vmatpush.bf16.msra.mxu0 %v1082
        %1441 = vmatpush.bf16.msra.mxu0 %v1078
        %1442 = vmatpush.bf16.msra.mxu0 %v1074
        %1443 = vmatmul.bf16.gmra.mxu0 %v1382
        %v1444 = vpop.f32.mrf.mxu0
        %v1445 = vadd.f32 %v1393, %v1444
        %v1446 = vpop.f32.mrf.mxu0
        %1447 = vdwg.mxu0
        %1448 = vmatpush.bf16.msra.mxu0 %v1103
        %1449 = vmatpush.bf16.msra.mxu0 %v1099
        %1450 = vmatpush.bf16.msra.mxu0 %v1095
        %1451 = vmatpush.bf16.msra.mxu0 %v1091
        %1452 = vmatpush.bf16.msra.mxu0 %v1087
        %1453 = vmatpush.bf16.msra.mxu0 %v1083
        %1454 = vmatpush.bf16.msra.mxu0 %v1079
        %1455 = vmatpush.bf16.msra.mxu0 %v1075
        %1456 = vmatmul.bf16.gmra.mxu0 %v1382
        %v1457 = vpop.f32.mrf.mxu0
        %v1458 = vadd.f32 %v1406, %v1457
        %v1459 = vpop.f32.mrf.mxu0
        %1460 = vdwg.mxu0
        %1461 = vmatpush.bf16.msra.mxu0 %v1104
        %1462 = vmatpush.bf16.msra.mxu0 %v1100
        %1463 = vmatpush.bf16.msra.mxu0 %v1096
        %1464 = vmatpush.bf16.msra.mxu0 %v1092
        %1465 = vmatpush.bf16.msra.mxu0 %v1088
        %1466 = vmatpush.bf16.msra.mxu0 %v1084
        %1467 = vmatpush.bf16.msra.mxu0 %v1080
        %1468 = vmatpush.bf16.msra.mxu0 %v1076
        %1469 = vmatmul.bf16.gmra.mxu0 %v1382
        %v1470 = vpop.f32.mrf.mxu0
        %v1471 = vadd.f32 %v1419, %v1470
        %v1472 = vpop.f32.mrf.mxu0
        %1473 = vdwg.mxu0
        %1474 = vmatpush.bf16.msra.mxu0 %v1105
        %1475 = vmatpush.bf16.msra.mxu0 %v1101
        %1476 = vmatpush.bf16.msra.mxu0 %v1097
        %1477 = vmatpush.bf16.msra.mxu0 %v1093
        %1478 = vmatpush.bf16.msra.mxu0 %v1089
        %1479 = vmatpush.bf16.msra.mxu0 %v1085
        %1480 = vmatpush.bf16.msra.mxu0 %v1081
        %1481 = vmatpush.bf16.msra.mxu0 %v1077
        %1482 = vmatmul.bf16.gmra.mxu0 %v1382
        %v1483 = vpop.f32.mrf.mxu0
        %v1484 = vadd.f32 %v1432, %v1483
        %v1485 = vpop.f32.mrf.mxu0
        %1486 = vdwg.mxu0
        %v1487 = vadd.f32 %v1445, %v468
        %v1488 = vadd.f32 %v1458, %v469
        %v1489 = vadd.f32 %v1471, %v470
        %v1490 = vadd.f32 %v1484, %v471
        %v1491 = vxor.u32 %v1487, 2147483648
        %v1492 = vxor.u32 %v1488, 2147483648
        %v1493 = vxor.u32 %v1489, 2147483648
        %v1494 = vmul.f32 %v1491, 1.442695
        %v1495 = vpow.pop %v1494
        %v1496 = vmul.f32 %v1492, 1.442695
        %v1497 = vpow.pop %v1496
        %v1498 = vmul.f32 %v1493, 1.442695
        %v1499 = vpow.pop %v1498
        %v1500 = vadd.f32 %v1495, 1.0
        %v1501 = vadd.f32 %v1497, 1.0
        %v1502 = vadd.f32 %v1499, 1.0
        %v1503 = vrcp.pop %v1500
        %v1504 = vmul.f32 %v1500, %v1503
        %v1505 = vsub.f32 1.0, %v1504
        %v1506 = vmul.f32 %v1503, %v1505
        %v1507 = vadd.f32 %v1503, %v1506
        %vm1508 = vweird.f32 %v1500
        %vm1509 = vweird.f32 %v1503
        %vm1510 = vmor %vm1508, %vm1509
        %v1511 = vsel %vm1510, %v1503, %v1507
        %v1512 = vand.u32 2147483647, %v1500
        %vm1513 = vcmp.eq.f32.partialorder %v1512, 8.507059e+37
        %v1514 = vand.u32 %v1500, 2147483648
        %v1515 = vor.u32 1.1754944e-38, %v1514
        %v1516 = vsel %vm1513, %v1515, %v1511
        %v1517 = vmul.f32 1.0, %v1516
        %v1518 = vrcp.pop %v1501
        %v1519 = vmul.f32 %v1501, %v1518
        %v1520 = vsub.f32 1.0, %v1519
        %v1521 = vmul.f32 %v1518, %v1520
        %v1522 = vadd.f32 %v1518, %v1521
        %vm1523 = vweird.f32 %v1501
        %vm1524 = vweird.f32 %v1518
        %vm1525 = vmor %vm1523, %vm1524
        %v1526 = vsel %vm1525, %v1518, %v1522
        %v1527 = vand.u32 2147483647, %v1501
        %vm1528 = vcmp.eq.f32.partialorder %v1527, 8.507059e+37
        %v1529 = vand.u32 %v1501, 2147483648
        %v1530 = vor.u32 1.1754944e-38, %v1529
        %v1531 = vsel %vm1528, %v1530, %v1526
        %v1532 = vmul.f32 1.0, %v1531
        %v1533 = vrcp.pop %v1502
        %v1534 = vmul.f32 %v1502, %v1533
        %v1535 = vsub.f32 1.0, %v1534
        %v1536 = vmul.f32 %v1533, %v1535
        %v1537 = vadd.f32 %v1533, %v1536
        %vm1538 = vweird.f32 %v1502
        %vm1539 = vweird.f32 %v1533
        %vm1540 = vmor %vm1538, %vm1539
        %v1541 = vsel %vm1540, %v1533, %v1537
        %v1542 = vand.u32 2147483647, %v1502
        %vm1543 = vcmp.eq.f32.partialorder %v1542, 8.507059e+37
        %v1544 = vand.u32 %v1502, 2147483648
        %v1545 = vor.u32 1.1754944e-38, %v1544
        %v1546 = vsel %vm1543, %v1545, %v1541
        %v1547 = vmul.f32 1.0, %v1546
        %v1548 = vtanh.pop %v1490
        %v1549 = vmul.f32 %v1532, %v1254
        %v1550 = vmul.f32 %v1517, %v1548
        %v1551 = vadd.f32 %v1549, %v1550
        %v1552 = vtanh.pop %v1551
        %v1553 = vmul.f32 %v1547, %v1552
        %v1554 = vpack.c.bf16 %v1553, %v1553
        %s1555 = scalar_lea.vmem %s328, 64 [#allocation4]
        %v1556 = vld [vmem:[%s1555] sm:$0xff]
        %v1557 = vld [vmem:[%s1555 + $0x8] sm:$0xff]
        %v1558 = vld [vmem:[%s1555 + $0x10] sm:$0xff]
        %v1559 = vld [vmem:[%s1555 + $0x18] sm:$0xff]
        %1560 = vmatpush.bf16.msra.mxu0 %v610
        %1561 = vmatpush.bf16.msra.mxu0 %v606
        %1562 = vmatpush.bf16.msra.mxu0 %v602
        %1563 = vmatpush.bf16.msra.mxu0 %v598
        %1564 = vmatpush.bf16.msra.mxu0 %v594
        %1565 = vmatpush.bf16.msra.mxu0 %v590
        %1566 = vmatpush.bf16.msra.mxu0 %v586
        %1567 = vmatpush.bf16.msra.mxu0 %v582
        %1568 = vmatmul.bf16.gmra.mxu0 %v1382
        %v1569 = vpop.f32.mrf.mxu0
        %v1570 = vadd.f32 0.0, %v1569
        %v1571 = vpop.f32.mrf.mxu0
        %1572 = vdwg.mxu0
        %1573 = vmatpush.bf16.msra.mxu0 %v611
        %1574 = vmatpush.bf16.msra.mxu0 %v607
        %1575 = vmatpush.bf16.msra.mxu0 %v603
        %1576 = vmatpush.bf16.msra.mxu0 %v599
        %1577 = vmatpush.bf16.msra.mxu0 %v595
        %1578 = vmatpush.bf16.msra.mxu0 %v591
        %1579 = vmatpush.bf16.msra.mxu0 %v587
        %1580 = vmatpush.bf16.msra.mxu0 %v583
        %1581 = vmatmul.bf16.gmra.mxu0 %v1382
        %v1582 = vpop.f32.mrf.mxu0
        %v1583 = vadd.f32 0.0, %v1582
        %v1584 = vpop.f32.mrf.mxu0
        %1585 = vdwg.mxu0
        %1586 = vmatpush.bf16.msra.mxu0 %v612
        %1587 = vmatpush.bf16.msra.mxu0 %v608
        %1588 = vmatpush.bf16.msra.mxu0 %v604
        %1589 = vmatpush.bf16.msra.mxu0 %v600
        %1590 = vmatpush.bf16.msra.mxu0 %v596
        %1591 = vmatpush.bf16.msra.mxu0 %v592
        %1592 = vmatpush.bf16.msra.mxu0 %v588
        %1593 = vmatpush.bf16.msra.mxu0 %v584
        %1594 = vmatmul.bf16.gmra.mxu0 %v1382
        %v1595 = vpop.f32.mrf.mxu0
        %v1596 = vadd.f32 0.0, %v1595
        %v1597 = vpop.f32.mrf.mxu0
        %1598 = vdwg.mxu0
        %1599 = vmatpush.bf16.msra.mxu0 %v613
        %1600 = vmatpush.bf16.msra.mxu0 %v609
        %1601 = vmatpush.bf16.msra.mxu0 %v605
        %1602 = vmatpush.bf16.msra.mxu0 %v601
        %1603 = vmatpush.bf16.msra.mxu0 %v597
        %1604 = vmatpush.bf16.msra.mxu0 %v593
        %1605 = vmatpush.bf16.msra.mxu0 %v589
        %1606 = vmatpush.bf16.msra.mxu0 %v585
        %1607 = vmatmul.bf16.gmra.mxu0 %v1382
        %v1608 = vpop.f32.mrf.mxu0
        %v1609 = vadd.f32 0.0, %v1608
        %v1610 = vpop.f32.mrf.mxu0
        %1611 = vdwg.mxu0
        %v1612 = vadd.f32 %v1556, %v1570
        %v1613 = vadd.f32 %v1557, %v1583
        %v1614 = vadd.f32 %v1558, %v1596
        %v1615 = vadd.f32 %v1559, %v1609
        %v1616 = vxor.u32 %v1612, 2147483648
        %v1617 = vxor.u32 %v1613, 2147483648
        %v1618 = vxor.u32 %v1614, 2147483648
        %v1619 = vmul.f32 %v1616, 1.442695
        %v1620 = vpow.pop %v1619
        %v1621 = vmul.f32 %v1617, 1.442695
        %v1622 = vpow.pop %v1621
        %v1623 = vmul.f32 %v1618, 1.442695
        %v1624 = vpow.pop %v1623
        %v1625 = vadd.f32 %v1620, 1.0
        %v1626 = vadd.f32 %v1622, 1.0
        %v1627 = vadd.f32 %v1624, 1.0
        %v1628 = vrcp.pop %v1625
        %v1629 = vmul.f32 %v1625, %v1628
        %v1630 = vsub.f32 1.0, %v1629
        %v1631 = vmul.f32 %v1628, %v1630
        %v1632 = vadd.f32 %v1628, %v1631
        %vm1633 = vweird.f32 %v1625
        %vm1634 = vweird.f32 %v1628
        %vm1635 = vmor %vm1633, %vm1634
        %v1636 = vsel %vm1635, %v1628, %v1632
        %v1637 = vand.u32 2147483647, %v1625
        %vm1638 = vcmp.eq.f32.partialorder %v1637, 8.507059e+37
        %v1639 = vand.u32 %v1625, 2147483648
        %v1640 = vor.u32 1.1754944e-38, %v1639
        %v1641 = vsel %vm1638, %v1640, %v1636
        %v1642 = vmul.f32 1.0, %v1641
        %v1643 = vrcp.pop %v1626
        %v1644 = vmul.f32 %v1626, %v1643
        %v1645 = vsub.f32 1.0, %v1644
        %v1646 = vmul.f32 %v1643, %v1645
        %v1647 = vadd.f32 %v1643, %v1646
        %vm1648 = vweird.f32 %v1626
        %vm1649 = vweird.f32 %v1643
        %vm1650 = vmor %vm1648, %vm1649
        %v1651 = vsel %vm1650, %v1643, %v1647
        %v1652 = vand.u32 2147483647, %v1626
        %vm1653 = vcmp.eq.f32.partialorder %v1652, 8.507059e+37
        %v1654 = vand.u32 %v1626, 2147483648
        %v1655 = vor.u32 1.1754944e-38, %v1654
        %v1656 = vsel %vm1653, %v1655, %v1651
        %v1657 = vmul.f32 1.0, %v1656
        %v1658 = vrcp.pop %v1627
        %v1659 = vmul.f32 %v1627, %v1658
        %v1660 = vsub.f32 1.0, %v1659
        %v1661 = vmul.f32 %v1658, %v1660
        %v1662 = vadd.f32 %v1658, %v1661
        %vm1663 = vweird.f32 %v1627
        %vm1664 = vweird.f32 %v1658
        %vm1665 = vmor %vm1663, %vm1664
        %v1666 = vsel %vm1665, %v1658, %v1662
        %v1667 = vand.u32 2147483647, %v1627
        %vm1668 = vcmp.eq.f32.partialorder %v1667, 8.507059e+37
        %v1669 = vand.u32 %v1627, 2147483648
        %v1670 = vor.u32 1.1754944e-38, %v1669
        %v1671 = vsel %vm1668, %v1670, %v1666
        %v1672 = vmul.f32 1.0, %v1671
        %v1673 = vtanh.pop %v1615
        %v1674 = vmul.f32 %v1657, %v1379
        %v1675 = vmul.f32 %v1642, %v1673
        %v1676 = vadd.f32 %v1674, %v1675
        %v1677 = vtanh.pop %v1676
        %v1678 = vmul.f32 %v1672, %v1677
        %v1679 = vpack.c.bf16 %v1678, %v1678
        %1680 = vmatpush.bf16.msra.mxu0 %v890
        %1681 = vmatpush.bf16.msra.mxu0 %v886
        %1682 = vmatpush.bf16.msra.mxu0 %v882
        %1683 = vmatpush.bf16.msra.mxu0 %v878
        %1684 = vmatpush.bf16.msra.mxu0 %v874
        %1685 = vmatpush.bf16.msra.mxu0 %v870
        %1686 = vmatpush.bf16.msra.mxu0 %v866
        %1687 = vmatpush.bf16.msra.mxu0 %v862
        %1688 = vmatmul.bf16.gmra.mxu0 %v1554
        %v1689 = vpop.f32.mrf.mxu0
        %v1690 = vadd.f32 0.0, %v1689
        %v1691 = vpop.f32.mrf.mxu0
        %1692 = vdwg.mxu0
        %1693 = vmatpush.bf16.msra.mxu0 %v891
        %1694 = vmatpush.bf16.msra.mxu0 %v887
        %1695 = vmatpush.bf16.msra.mxu0 %v883
        %1696 = vmatpush.bf16.msra.mxu0 %v879
        %1697 = vmatpush.bf16.msra.mxu0 %v875
        %1698 = vmatpush.bf16.msra.mxu0 %v871
        %1699 = vmatpush.bf16.msra.mxu0 %v867
        %1700 = vmatpush.bf16.msra.mxu0 %v863
        %1701 = vmatmul.bf16.gmra.mxu0 %v1554
        %v1702 = vpop.f32.mrf.mxu0
        %v1703 = vadd.f32 0.0, %v1702
        %v1704 = vpop.f32.mrf.mxu0
        %1705 = vdwg.mxu0
        %1706 = vmatpush.bf16.msra.mxu0 %v892
        %1707 = vmatpush.bf16.msra.mxu0 %v888
        %1708 = vmatpush.bf16.msra.mxu0 %v884
        %1709 = vmatpush.bf16.msra.mxu0 %v880
        %1710 = vmatpush.bf16.msra.mxu0 %v876
        %1711 = vmatpush.bf16.msra.mxu0 %v872
        %1712 = vmatpush.bf16.msra.mxu0 %v868
        %1713 = vmatpush.bf16.msra.mxu0 %v864
        %1714 = vmatmul.bf16.gmra.mxu0 %v1554
        %v1715 = vpop.f32.mrf.mxu0
        %v1716 = vadd.f32 0.0, %v1715
        %v1717 = vpop.f32.mrf.mxu0
        %1718 = vdwg.mxu0
        %1719 = vmatpush.bf16.msra.mxu0 %v893
        %1720 = vmatpush.bf16.msra.mxu0 %v889
        %1721 = vmatpush.bf16.msra.mxu0 %v885
        %1722 = vmatpush.bf16.msra.mxu0 %v881
        %1723 = vmatpush.bf16.msra.mxu0 %v877
        %1724 = vmatpush.bf16.msra.mxu0 %v873
        %1725 = vmatpush.bf16.msra.mxu0 %v869
        %1726 = vmatpush.bf16.msra.mxu0 %v865
        %1727 = vmatmul.bf16.gmra.mxu0 %v1554
        %v1728 = vpop.f32.mrf.mxu0
        %v1729 = vadd.f32 0.0, %v1728
        %v1730 = vpop.f32.mrf.mxu0
        %1731 = vdwg.mxu0
        %1732 = vmatpush.bf16.msra.mxu0 %v1102
        %1733 = vmatpush.bf16.msra.mxu0 %v1098
        %1734 = vmatpush.bf16.msra.mxu0 %v1094
        %1735 = vmatpush.bf16.msra.mxu0 %v1090
        %1736 = vmatpush.bf16.msra.mxu0 %v1086
        %1737 = vmatpush.bf16.msra.mxu0 %v1082
        %1738 = vmatpush.bf16.msra.mxu0 %v1078
        %1739 = vmatpush.bf16.msra.mxu0 %v1074
        %1740 = vmatmul.bf16.gmra.mxu0 %v1679
        %v1741 = vpop.f32.mrf.mxu0
        %v1742 = vadd.f32 %v1690, %v1741
        %v1743 = vpop.f32.mrf.mxu0
        %1744 = vdwg.mxu0
        %1745 = vmatpush.bf16.msra.mxu0 %v1103
        %1746 = vmatpush.bf16.msra.mxu0 %v1099
        %1747 = vmatpush.bf16.msra.mxu0 %v1095
        %1748 = vmatpush.bf16.msra.mxu0 %v1091
        %1749 = vmatpush.bf16.msra.mxu0 %v1087
        %1750 = vmatpush.bf16.msra.mxu0 %v1083
        %1751 = vmatpush.bf16.msra.mxu0 %v1079
        %1752 = vmatpush.bf16.msra.mxu0 %v1075
        %1753 = vmatmul.bf16.gmra.mxu0 %v1679
        %v1754 = vpop.f32.mrf.mxu0
        %v1755 = vadd.f32 %v1703, %v1754
        %v1756 = vpop.f32.mrf.mxu0
        %1757 = vdwg.mxu0
        %1758 = vmatpush.bf16.msra.mxu0 %v1104
        %1759 = vmatpush.bf16.msra.mxu0 %v1100
        %1760 = vmatpush.bf16.msra.mxu0 %v1096
        %1761 = vmatpush.bf16.msra.mxu0 %v1092
        %1762 = vmatpush.bf16.msra.mxu0 %v1088
        %1763 = vmatpush.bf16.msra.mxu0 %v1084
        %1764 = vmatpush.bf16.msra.mxu0 %v1080
        %1765 = vmatpush.bf16.msra.mxu0 %v1076
        %1766 = vmatmul.bf16.gmra.mxu0 %v1679
        %v1767 = vpop.f32.mrf.mxu0
        %v1768 = vadd.f32 %v1716, %v1767
        %v1769 = vpop.f32.mrf.mxu0
        %1770 = vdwg.mxu0
        %1771 = vmatpush.bf16.msra.mxu0 %v1105
        %1772 = vmatpush.bf16.msra.mxu0 %v1101
        %1773 = vmatpush.bf16.msra.mxu0 %v1097
        %1774 = vmatpush.bf16.msra.mxu0 %v1093
        %1775 = vmatpush.bf16.msra.mxu0 %v1089
        %1776 = vmatpush.bf16.msra.mxu0 %v1085
        %1777 = vmatpush.bf16.msra.mxu0 %v1081
        %1778 = vmatpush.bf16.msra.mxu0 %v1077
        %1779 = vmatmul.bf16.gmra.mxu0 %v1679
        %v1780 = vpop.f32.mrf.mxu0
        %v1781 = vadd.f32 %v1729, %v1780
        %v1782 = vpop.f32.mrf.mxu0
        %1783 = vdwg.mxu0
        %v1784 = vadd.f32 %v1742, %v468
        %v1785 = vadd.f32 %v1755, %v469
        %v1786 = vadd.f32 %v1768, %v470
        %v1787 = vadd.f32 %v1781, %v471
        %v1788 = vxor.u32 %v1784, 2147483648
        %v1789 = vxor.u32 %v1785, 2147483648
        %v1790 = vxor.u32 %v1786, 2147483648
        %v1791 = vmul.f32 %v1788, 1.442695
        %v1792 = vpow.pop %v1791
        %v1793 = vmul.f32 %v1789, 1.442695
        %v1794 = vpow.pop %v1793
        %v1795 = vmul.f32 %v1790, 1.442695
        %v1796 = vpow.pop %v1795
        %v1797 = vadd.f32 %v1792, 1.0
        %v1798 = vadd.f32 %v1794, 1.0
        %v1799 = vadd.f32 %v1796, 1.0
        %v1800 = vrcp.pop %v1797
        %v1801 = vmul.f32 %v1797, %v1800
        %v1802 = vsub.f32 1.0, %v1801
        %v1803 = vmul.f32 %v1800, %v1802
        %v1804 = vadd.f32 %v1800, %v1803
        %vm1805 = vweird.f32 %v1797
        %vm1806 = vweird.f32 %v1800
        %vm1807 = vmor %vm1805, %vm1806
        %v1808 = vsel %vm1807, %v1800, %v1804
        %v1809 = vand.u32 2147483647, %v1797
        %vm1810 = vcmp.eq.f32.partialorder %v1809, 8.507059e+37
        %v1811 = vand.u32 %v1797, 2147483648
        %v1812 = vor.u32 1.1754944e-38, %v1811
        %v1813 = vsel %vm1810, %v1812, %v1808
        %v1814 = vmul.f32 1.0, %v1813
        %v1815 = vrcp.pop %v1798
        %v1816 = vmul.f32 %v1798, %v1815
        %v1817 = vsub.f32 1.0, %v1816
        %v1818 = vmul.f32 %v1815, %v1817
        %v1819 = vadd.f32 %v1815, %v1818
        %vm1820 = vweird.f32 %v1798
        %vm1821 = vweird.f32 %v1815
        %vm1822 = vmor %vm1820, %vm1821
        %v1823 = vsel %vm1822, %v1815, %v1819
        %v1824 = vand.u32 2147483647, %v1798
        %vm1825 = vcmp.eq.f32.partialorder %v1824, 8.507059e+37
        %v1826 = vand.u32 %v1798, 2147483648
        %v1827 = vor.u32 1.1754944e-38, %v1826
        %v1828 = vsel %vm1825, %v1827, %v1823
        %v1829 = vmul.f32 1.0, %v1828
        %v1830 = vrcp.pop %v1799
        %v1831 = vmul.f32 %v1799, %v1830
        %v1832 = vsub.f32 1.0, %v1831
        %v1833 = vmul.f32 %v1830, %v1832
        %v1834 = vadd.f32 %v1830, %v1833
        %vm1835 = vweird.f32 %v1799
        %vm1836 = vweird.f32 %v1830
        %vm1837 = vmor %vm1835, %vm1836
        %v1838 = vsel %vm1837, %v1830, %v1834
        %v1839 = vand.u32 2147483647, %v1799
        %vm1840 = vcmp.eq.f32.partialorder %v1839, 8.507059e+37
        %v1841 = vand.u32 %v1799, 2147483648
        %v1842 = vor.u32 1.1754944e-38, %v1841
        %v1843 = vsel %vm1840, %v1842, %v1838
        %v1844 = vmul.f32 1.0, %v1843
        %v1845 = vtanh.pop %v1787
        %v1846 = vmul.f32 %v1829, %v1551
        %v1847 = vmul.f32 %v1814, %v1845
        %v1848 = vadd.f32 %v1846, %v1847
        %v1849 = vtanh.pop %v1848
        %v1850 = vmul.f32 %v1844, %v1849
        %v1851 = vpack.c.bf16 %v1850, %v1850
        %s1852 = scalar_lea.vmem %s328, 96 [#allocation4]
        %v1853 = vld [vmem:[%s1852] sm:$0xff]
        %v1854 = vld [vmem:[%s1852 + $0x8] sm:$0xff]
        %v1855 = vld [vmem:[%s1852 + $0x10] sm:$0xff]
        %v1856 = vld [vmem:[%s1852 + $0x18] sm:$0xff]
        %1857 = vmatpush.bf16.msra.mxu0 %v610
        %1858 = vmatpush.bf16.msra.mxu0 %v606
        %1859 = vmatpush.bf16.msra.mxu0 %v602
        %1860 = vmatpush.bf16.msra.mxu0 %v598
        %1861 = vmatpush.bf16.msra.mxu0 %v594
        %1862 = vmatpush.bf16.msra.mxu0 %v590
        %1863 = vmatpush.bf16.msra.mxu0 %v586
        %1864 = vmatpush.bf16.msra.mxu0 %v582
        %1865 = vmatmul.bf16.gmra.mxu0 %v1679
        %v1866 = vpop.f32.mrf.mxu0
        %v1867 = vadd.f32 0.0, %v1866
        %v1868 = vpop.f32.mrf.mxu0
        %1869 = vdwg.mxu0
        %1870 = vmatpush.bf16.msra.mxu0 %v611
        %1871 = vmatpush.bf16.msra.mxu0 %v607
        %1872 = vmatpush.bf16.msra.mxu0 %v603
        %1873 = vmatpush.bf16.msra.mxu0 %v599
        %1874 = vmatpush.bf16.msra.mxu0 %v595
        %1875 = vmatpush.bf16.msra.mxu0 %v591
        %1876 = vmatpush.bf16.msra.mxu0 %v587
        %1877 = vmatpush.bf16.msra.mxu0 %v583
        %1878 = vmatmul.bf16.gmra.mxu0 %v1679
        %v1879 = vpop.f32.mrf.mxu0
        %v1880 = vadd.f32 0.0, %v1879
        %v1881 = vpop.f32.mrf.mxu0
        %1882 = vdwg.mxu0
        %1883 = vmatpush.bf16.msra.mxu0 %v612
        %1884 = vmatpush.bf16.msra.mxu0 %v608
        %1885 = vmatpush.bf16.msra.mxu0 %v604
        %1886 = vmatpush.bf16.msra.mxu0 %v600
        %1887 = vmatpush.bf16.msra.mxu0 %v596
        %1888 = vmatpush.bf16.msra.mxu0 %v592
        %1889 = vmatpush.bf16.msra.mxu0 %v588
        %1890 = vmatpush.bf16.msra.mxu0 %v584
        %1891 = vmatmul.bf16.gmra.mxu0 %v1679
        %v1892 = vpop.f32.mrf.mxu0
        %v1893 = vadd.f32 0.0, %v1892
        %v1894 = vpop.f32.mrf.mxu0
        %1895 = vdwg.mxu0
        %1896 = vmatpush.bf16.msra.mxu0 %v613
        %1897 = vmatpush.bf16.msra.mxu0 %v609
        %1898 = vmatpush.bf16.msra.mxu0 %v605
        %1899 = vmatpush.bf16.msra.mxu0 %v601
        %1900 = vmatpush.bf16.msra.mxu0 %v597
        %1901 = vmatpush.bf16.msra.mxu0 %v593
        %1902 = vmatpush.bf16.msra.mxu0 %v589
        %1903 = vmatpush.bf16.msra.mxu0 %v585
        %1904 = vmatmul.bf16.gmra.mxu0 %v1679
        %v1905 = vpop.f32.mrf.mxu0
        %v1906 = vadd.f32 0.0, %v1905
        %v1907 = vpop.f32.mrf.mxu0
        %1908 = vdwg.mxu0
        %v1909 = vadd.f32 %v1853, %v1867
        %v1910 = vadd.f32 %v1854, %v1880
        %v1911 = vadd.f32 %v1855, %v1893
        %v1912 = vadd.f32 %v1856, %v1906
        %v1913 = vxor.u32 %v1909, 2147483648
        %v1914 = vxor.u32 %v1910, 2147483648
        %v1915 = vxor.u32 %v1911, 2147483648
        %v1916 = vmul.f32 %v1913, 1.442695
        %v1917 = vpow.pop %v1916
        %v1918 = vmul.f32 %v1914, 1.442695
        %v1919 = vpow.pop %v1918
        %v1920 = vmul.f32 %v1915, 1.442695
        %v1921 = vpow.pop %v1920
        %v1922 = vadd.f32 %v1917, 1.0
        %v1923 = vadd.f32 %v1919, 1.0
        %v1924 = vadd.f32 %v1921, 1.0
        %v1925 = vrcp.pop %v1922
        %v1926 = vmul.f32 %v1922, %v1925
        %v1927 = vsub.f32 1.0, %v1926
        %v1928 = vmul.f32 %v1925, %v1927
        %v1929 = vadd.f32 %v1925, %v1928
        %vm1930 = vweird.f32 %v1922
        %vm1931 = vweird.f32 %v1925
        %vm1932 = vmor %vm1930, %vm1931
        %v1933 = vsel %vm1932, %v1925, %v1929
        %v1934 = vand.u32 2147483647, %v1922
        %vm1935 = vcmp.eq.f32.partialorder %v1934, 8.507059e+37
        %v1936 = vand.u32 %v1922, 2147483648
        %v1937 = vor.u32 1.1754944e-38, %v1936
        %v1938 = vsel %vm1935, %v1937, %v1933
        %v1939 = vmul.f32 1.0, %v1938
        %v1940 = vrcp.pop %v1923
        %v1941 = vmul.f32 %v1923, %v1940
        %v1942 = vsub.f32 1.0, %v1941
        %v1943 = vmul.f32 %v1940, %v1942
        %v1944 = vadd.f32 %v1940, %v1943
        %vm1945 = vweird.f32 %v1923
        %vm1946 = vweird.f32 %v1940
        %vm1947 = vmor %vm1945, %vm1946
        %v1948 = vsel %vm1947, %v1940, %v1944
        %v1949 = vand.u32 2147483647, %v1923
        %vm1950 = vcmp.eq.f32.partialorder %v1949, 8.507059e+37
        %v1951 = vand.u32 %v1923, 2147483648
        %v1952 = vor.u32 1.1754944e-38, %v1951
        %v1953 = vsel %vm1950, %v1952, %v1948
        %v1954 = vmul.f32 1.0, %v1953
        %v1955 = vrcp.pop %v1924
        %v1956 = vmul.f32 %v1924, %v1955
        %v1957 = vsub.f32 1.0, %v1956
        %v1958 = vmul.f32 %v1955, %v1957
        %v1959 = vadd.f32 %v1955, %v1958
        %vm1960 = vweird.f32 %v1924
        %vm1961 = vweird.f32 %v1955
        %vm1962 = vmor %vm1960, %vm1961
        %v1963 = vsel %vm1962, %v1955, %v1959
        %v1964 = vand.u32 2147483647, %v1924
        %vm1965 = vcmp.eq.f32.partialorder %v1964, 8.507059e+37
        %v1966 = vand.u32 %v1924, 2147483648
        %v1967 = vor.u32 1.1754944e-38, %v1966
        %v1968 = vsel %vm1965, %v1967, %v1963
        %v1969 = vmul.f32 1.0, %v1968
        %v1970 = vtanh.pop %v1912
        %v1971 = vmul.f32 %v1954, %v1676
        %v1972 = vmul.f32 %v1939, %v1970
        %v1973 = vadd.f32 %v1971, %v1972
        %v1974 = vtanh.pop %v1973
        %v1975 = vmul.f32 %v1969, %v1974
        %v1976 = vpack.c.bf16 %v1975, %v1975
        %1977 = vmatpush.bf16.msra.mxu0 %v890
        %1978 = vmatpush.bf16.msra.mxu0 %v886
        %1979 = vmatpush.bf16.msra.mxu0 %v882
        %1980 = vmatpush.bf16.msra.mxu0 %v878
        %1981 = vmatpush.bf16.msra.mxu0 %v874
        %1982 = vmatpush.bf16.msra.mxu0 %v870
        %1983 = vmatpush.bf16.msra.mxu0 %v866
        %1984 = vmatpush.bf16.msra.mxu0 %v862
        %1985 = vmatmul.bf16.gmra.mxu0 %v1851
        %v1986 = vpop.f32.mrf.mxu0
        %v1987 = vadd.f32 0.0, %v1986
        %v1988 = vpop.f32.mrf.mxu0
        %1989 = vdwg.mxu0
        %1990 = vmatpush.bf16.msra.mxu0 %v891
        %1991 = vmatpush.bf16.msra.mxu0 %v887
        %1992 = vmatpush.bf16.msra.mxu0 %v883
        %1993 = vmatpush.bf16.msra.mxu0 %v879
        %1994 = vmatpush.bf16.msra.mxu0 %v875
        %1995 = vmatpush.bf16.msra.mxu0 %v871
        %1996 = vmatpush.bf16.msra.mxu0 %v867
        %1997 = vmatpush.bf16.msra.mxu0 %v863
        %1998 = vmatmul.bf16.gmra.mxu0 %v1851
        %v1999 = vpop.f32.mrf.mxu0
        %v2000 = vadd.f32 0.0, %v1999
        %v2001 = vpop.f32.mrf.mxu0
        %2002 = vdwg.mxu0
        %2003 = vmatpush.bf16.msra.mxu0 %v892
        %2004 = vmatpush.bf16.msra.mxu0 %v888
        %2005 = vmatpush.bf16.msra.mxu0 %v884
        %2006 = vmatpush.bf16.msra.mxu0 %v880
        %2007 = vmatpush.bf16.msra.mxu0 %v876
        %2008 = vmatpush.bf16.msra.mxu0 %v872
        %2009 = vmatpush.bf16.msra.mxu0 %v868
        %2010 = vmatpush.bf16.msra.mxu0 %v864
        %2011 = vmatmul.bf16.gmra.mxu0 %v1851
        %v2012 = vpop.f32.mrf.mxu0
        %v2013 = vadd.f32 0.0, %v2012
        %v2014 = vpop.f32.mrf.mxu0
        %2015 = vdwg.mxu0
        %2016 = vmatpush.bf16.msra.mxu0 %v893
        %2017 = vmatpush.bf16.msra.mxu0 %v889
        %2018 = vmatpush.bf16.msra.mxu0 %v885
        %2019 = vmatpush.bf16.msra.mxu0 %v881
        %2020 = vmatpush.bf16.msra.mxu0 %v877
        %2021 = vmatpush.bf16.msra.mxu0 %v873
        %2022 = vmatpush.bf16.msra.mxu0 %v869
        %2023 = vmatpush.bf16.msra.mxu0 %v865
        %2024 = vmatmul.bf16.gmra.mxu0 %v1851
        %v2025 = vpop.f32.mrf.mxu0
        %v2026 = vadd.f32 0.0, %v2025
        %v2027 = vpop.f32.mrf.mxu0
        %2028 = vdwg.mxu0
        %2029 = vmatpush.bf16.msra.mxu0 %v1102
        %2030 = vmatpush.bf16.msra.mxu0 %v1098
        %2031 = vmatpush.bf16.msra.mxu0 %v1094
        %2032 = vmatpush.bf16.msra.mxu0 %v1090
        %2033 = vmatpush.bf16.msra.mxu0 %v1086
        %2034 = vmatpush.bf16.msra.mxu0 %v1082
        %2035 = vmatpush.bf16.msra.mxu0 %v1078
        %2036 = vmatpush.bf16.msra.mxu0 %v1074
        %2037 = vmatmul.bf16.gmra.mxu0 %v1976
        %v2038 = vpop.f32.mrf.mxu0
        %v2039 = vadd.f32 %v1987, %v2038
        %v2040 = vpop.f32.mrf.mxu0
        %2041 = vdwg.mxu0
        %2042 = vmatpush.bf16.msra.mxu0 %v1103
        %2043 = vmatpush.bf16.msra.mxu0 %v1099
        %2044 = vmatpush.bf16.msra.mxu0 %v1095
        %2045 = vmatpush.bf16.msra.mxu0 %v1091
        %2046 = vmatpush.bf16.msra.mxu0 %v1087
        %2047 = vmatpush.bf16.msra.mxu0 %v1083
        %2048 = vmatpush.bf16.msra.mxu0 %v1079
        %2049 = vmatpush.bf16.msra.mxu0 %v1075
        %2050 = vmatmul.bf16.gmra.mxu0 %v1976
        %v2051 = vpop.f32.mrf.mxu0
        %v2052 = vadd.f32 %v2000, %v2051
        %v2053 = vpop.f32.mrf.mxu0
        %2054 = vdwg.mxu0
        %2055 = vmatpush.bf16.msra.mxu0 %v1104
        %2056 = vmatpush.bf16.msra.mxu0 %v1100
        %2057 = vmatpush.bf16.msra.mxu0 %v1096
        %2058 = vmatpush.bf16.msra.mxu0 %v1092
        %2059 = vmatpush.bf16.msra.mxu0 %v1088
        %2060 = vmatpush.bf16.msra.mxu0 %v1084
        %2061 = vmatpush.bf16.msra.mxu0 %v1080
        %2062 = vmatpush.bf16.msra.mxu0 %v1076
        %2063 = vmatmul.bf16.gmra.mxu0 %v1976
        %v2064 = vpop.f32.mrf.mxu0
        %v2065 = vadd.f32 %v2013, %v2064
        %v2066 = vpop.f32.mrf.mxu0
        %2067 = vdwg.mxu0
        %2068 = vmatpush.bf16.msra.mxu0 %v1105
        %2069 = vmatpush.bf16.msra.mxu0 %v1101
        %2070 = vmatpush.bf16.msra.mxu0 %v1097
        %2071 = vmatpush.bf16.msra.mxu0 %v1093
        %2072 = vmatpush.bf16.msra.mxu0 %v1089
        %2073 = vmatpush.bf16.msra.mxu0 %v1085
        %2074 = vmatpush.bf16.msra.mxu0 %v1081
        %2075 = vmatpush.bf16.msra.mxu0 %v1077
        %2076 = vmatmul.bf16.gmra.mxu0 %v1976
        %v2077 = vpop.f32.mrf.mxu0
        %v2078 = vadd.f32 %v2026, %v2077
        %v2079 = vpop.f32.mrf.mxu0
        %2080 = vdwg.mxu0
        %v2081 = vadd.f32 %v2039, %v468
        %v2082 = vadd.f32 %v2052, %v469
        %v2083 = vadd.f32 %v2065, %v470
        %v2084 = vadd.f32 %v2078, %v471
        %v2085 = vxor.u32 %v2081, 2147483648
        %v2086 = vxor.u32 %v2082, 2147483648
        %v2087 = vxor.u32 %v2083, 2147483648
        %v2088 = vmul.f32 %v2085, 1.442695
        %v2089 = vpow.pop %v2088
        %v2090 = vmul.f32 %v2086, 1.442695
        %v2091 = vpow.pop %v2090
        %v2092 = vmul.f32 %v2087, 1.442695
        %v2093 = vpow.pop %v2092
        %v2094 = vadd.f32 %v2089, 1.0
        %v2095 = vadd.f32 %v2091, 1.0
        %v2096 = vadd.f32 %v2093, 1.0
        %v2097 = vrcp.pop %v2094
        %v2098 = vmul.f32 %v2094, %v2097
        %v2099 = vsub.f32 1.0, %v2098
        %v2100 = vmul.f32 %v2097, %v2099
        %v2101 = vadd.f32 %v2097, %v2100
        %vm2102 = vweird.f32 %v2094
        %vm2103 = vweird.f32 %v2097
        %vm2104 = vmor %vm2102, %vm2103
        %v2105 = vsel %vm2104, %v2097, %v2101
        %v2106 = vand.u32 2147483647, %v2094
        %vm2107 = vcmp.eq.f32.partialorder %v2106, 8.507059e+37
        %v2108 = vand.u32 %v2094, 2147483648
        %v2109 = vor.u32 1.1754944e-38, %v2108
        %v2110 = vsel %vm2107, %v2109, %v2105
        %v2111 = vmul.f32 1.0, %v2110
        %v2112 = vrcp.pop %v2095
        %v2113 = vmul.f32 %v2095, %v2112
        %v2114 = vsub.f32 1.0, %v2113
        %v2115 = vmul.f32 %v2112, %v2114
        %v2116 = vadd.f32 %v2112, %v2115
        %vm2117 = vweird.f32 %v2095
        %vm2118 = vweird.f32 %v2112
        %vm2119 = vmor %vm2117, %vm2118
        %v2120 = vsel %vm2119, %v2112, %v2116
        %v2121 = vand.u32 2147483647, %v2095
        %vm2122 = vcmp.eq.f32.partialorder %v2121, 8.507059e+37
        %v2123 = vand.u32 %v2095, 2147483648
        %v2124 = vor.u32 1.1754944e-38, %v2123
        %v2125 = vsel %vm2122, %v2124, %v2120
        %v2126 = vmul.f32 1.0, %v2125
        %v2127 = vrcp.pop %v2096
        %v2128 = vmul.f32 %v2096, %v2127
        %v2129 = vsub.f32 1.0, %v2128
        %v2130 = vmul.f32 %v2127, %v2129
        %v2131 = vadd.f32 %v2127, %v2130
        %vm2132 = vweird.f32 %v2096
        %vm2133 = vweird.f32 %v2127
        %vm2134 = vmor %vm2132, %vm2133
        %v2135 = vsel %vm2134, %v2127, %v2131
        %v2136 = vand.u32 2147483647, %v2096
        %vm2137 = vcmp.eq.f32.partialorder %v2136, 8.507059e+37
        %v2138 = vand.u32 %v2096, 2147483648
        %v2139 = vor.u32 1.1754944e-38, %v2138
        %v2140 = vsel %vm2137, %v2139, %v2135
        %v2141 = vmul.f32 1.0, %v2140
        %v2142 = vtanh.pop %v2084
        %v2143 = vmul.f32 %v2126, %v1848
        %v2144 = vmul.f32 %v2111, %v2142
        %v2145 = vadd.f32 %v2143, %v2144
        %v2146 = vtanh.pop %v2145
        %v2147 = vmul.f32 %v2141, %v2146
        %v2148 = vpack.c.bf16 %v2147, %v2147
        %s2149 = scalar_lea.vmem %s328, 128 [#allocation4]
        %v2150 = vld [vmem:[%s2149] sm:$0xff]
        %v2151 = vld [vmem:[%s2149 + $0x8] sm:$0xff]
        %v2152 = vld [vmem:[%s2149 + $0x10] sm:$0xff]
        %v2153 = vld [vmem:[%s2149 + $0x18] sm:$0xff]
        %2154 = vmatpush.bf16.msra.mxu0 %v610
        %2155 = vmatpush.bf16.msra.mxu0 %v606
        %2156 = vmatpush.bf16.msra.mxu0 %v602
        %2157 = vmatpush.bf16.msra.mxu0 %v598
        %2158 = vmatpush.bf16.msra.mxu0 %v594
        %2159 = vmatpush.bf16.msra.mxu0 %v590
        %2160 = vmatpush.bf16.msra.mxu0 %v586
        %2161 = vmatpush.bf16.msra.mxu0 %v582
        %2162 = vmatmul.bf16.gmra.mxu0 %v1976
        %v2163 = vpop.f32.mrf.mxu0
        %v2164 = vadd.f32 0.0, %v2163
        %v2165 = vpop.f32.mrf.mxu0
        %2166 = vdwg.mxu0
        %2167 = vmatpush.bf16.msra.mxu0 %v611
        %2168 = vmatpush.bf16.msra.mxu0 %v607
        %2169 = vmatpush.bf16.msra.mxu0 %v603
        %2170 = vmatpush.bf16.msra.mxu0 %v599
        %2171 = vmatpush.bf16.msra.mxu0 %v595
        %2172 = vmatpush.bf16.msra.mxu0 %v591
        %2173 = vmatpush.bf16.msra.mxu0 %v587
        %2174 = vmatpush.bf16.msra.mxu0 %v583
        %2175 = vmatmul.bf16.gmra.mxu0 %v1976
        %v2176 = vpop.f32.mrf.mxu0
        %v2177 = vadd.f32 0.0, %v2176
        %v2178 = vpop.f32.mrf.mxu0
        %2179 = vdwg.mxu0
        %2180 = vmatpush.bf16.msra.mxu0 %v612
        %2181 = vmatpush.bf16.msra.mxu0 %v608
        %2182 = vmatpush.bf16.msra.mxu0 %v604
        %2183 = vmatpush.bf16.msra.mxu0 %v600
        %2184 = vmatpush.bf16.msra.mxu0 %v596
        %2185 = vmatpush.bf16.msra.mxu0 %v592
        %2186 = vmatpush.bf16.msra.mxu0 %v588
        %2187 = vmatpush.bf16.msra.mxu0 %v584
        %2188 = vmatmul.bf16.gmra.mxu0 %v1976
        %v2189 = vpop.f32.mrf.mxu0
        %v2190 = vadd.f32 0.0, %v2189
        %v2191 = vpop.f32.mrf.mxu0
        %2192 = vdwg.mxu0
        %2193 = vmatpush.bf16.msra.mxu0 %v613
        %2194 = vmatpush.bf16.msra.mxu0 %v609
        %2195 = vmatpush.bf16.msra.mxu0 %v605
        %2196 = vmatpush.bf16.msra.mxu0 %v601
        %2197 = vmatpush.bf16.msra.mxu0 %v597
        %2198 = vmatpush.bf16.msra.mxu0 %v593
        %2199 = vmatpush.bf16.msra.mxu0 %v589
        %2200 = vmatpush.bf16.msra.mxu0 %v585
        %2201 = vmatmul.bf16.gmra.mxu0 %v1976
        %v2202 = vpop.f32.mrf.mxu0
        %v2203 = vadd.f32 0.0, %v2202
        %v2204 = vpop.f32.mrf.mxu0
        %2205 = vdwg.mxu0
        %v2206 = vadd.f32 %v2150, %v2164
        %v2207 = vadd.f32 %v2151, %v2177
        %v2208 = vadd.f32 %v2152, %v2190
        %v2209 = vadd.f32 %v2153, %v2203
        %v2210 = vxor.u32 %v2206, 2147483648
        %v2211 = vxor.u32 %v2207, 2147483648
        %v2212 = vxor.u32 %v2208, 2147483648
        %v2213 = vmul.f32 %v2210, 1.442695
        %v2214 = vpow.pop %v2213
        %v2215 = vmul.f32 %v2211, 1.442695
        %v2216 = vpow.pop %v2215
        %v2217 = vmul.f32 %v2212, 1.442695
        %v2218 = vpow.pop %v2217
        %v2219 = vadd.f32 %v2214, 1.0
        %v2220 = vadd.f32 %v2216, 1.0
        %v2221 = vadd.f32 %v2218, 1.0
        %v2222 = vrcp.pop %v2219
        %v2223 = vmul.f32 %v2219, %v2222
        %v2224 = vsub.f32 1.0, %v2223
        %v2225 = vmul.f32 %v2222, %v2224
        %v2226 = vadd.f32 %v2222, %v2225
        %vm2227 = vweird.f32 %v2219
        %vm2228 = vweird.f32 %v2222
        %vm2229 = vmor %vm2227, %vm2228
        %v2230 = vsel %vm2229, %v2222, %v2226
        %v2231 = vand.u32 2147483647, %v2219
        %vm2232 = vcmp.eq.f32.partialorder %v2231, 8.507059e+37
        %v2233 = vand.u32 %v2219, 2147483648
        %v2234 = vor.u32 1.1754944e-38, %v2233
        %v2235 = vsel %vm2232, %v2234, %v2230
        %v2236 = vmul.f32 1.0, %v2235
        %v2237 = vrcp.pop %v2220
        %v2238 = vmul.f32 %v2220, %v2237
        %v2239 = vsub.f32 1.0, %v2238
        %v2240 = vmul.f32 %v2237, %v2239
        %v2241 = vadd.f32 %v2237, %v2240
        %vm2242 = vweird.f32 %v2220
        %vm2243 = vweird.f32 %v2237
        %vm2244 = vmor %vm2242, %vm2243
        %v2245 = vsel %vm2244, %v2237, %v2241
        %v2246 = vand.u32 2147483647, %v2220
        %vm2247 = vcmp.eq.f32.partialorder %v2246, 8.507059e+37
        %v2248 = vand.u32 %v2220, 2147483648
        %v2249 = vor.u32 1.1754944e-38, %v2248
        %v2250 = vsel %vm2247, %v2249, %v2245
        %v2251 = vmul.f32 1.0, %v2250
        %v2252 = vrcp.pop %v2221
        %v2253 = vmul.f32 %v2221, %v2252
        %v2254 = vsub.f32 1.0, %v2253
        %v2255 = vmul.f32 %v2252, %v2254
        %v2256 = vadd.f32 %v2252, %v2255
        %vm2257 = vweird.f32 %v2221
        %vm2258 = vweird.f32 %v2252
        %vm2259 = vmor %vm2257, %vm2258
        %v2260 = vsel %vm2259, %v2252, %v2256
        %v2261 = vand.u32 2147483647, %v2221
        %vm2262 = vcmp.eq.f32.partialorder %v2261, 8.507059e+37
        %v2263 = vand.u32 %v2221, 2147483648
        %v2264 = vor.u32 1.1754944e-38, %v2263
        %v2265 = vsel %vm2262, %v2264, %v2260
        %v2266 = vmul.f32 1.0, %v2265
        %v2267 = vtanh.pop %v2209
        %v2268 = vmul.f32 %v2251, %v1973
        %v2269 = vmul.f32 %v2236, %v2267
        %v2270 = vadd.f32 %v2268, %v2269
        %v2271 = vtanh.pop %v2270
        %v2272 = vmul.f32 %v2266, %v2271
        %v2273 = vpack.c.bf16 %v2272, %v2272
        %2274 = vmatpush.bf16.msra.mxu0 %v890
        %2275 = vmatpush.bf16.msra.mxu0 %v886
        %2276 = vmatpush.bf16.msra.mxu0 %v882
        %2277 = vmatpush.bf16.msra.mxu0 %v878
        %2278 = vmatpush.bf16.msra.mxu0 %v874
        %2279 = vmatpush.bf16.msra.mxu0 %v870
        %2280 = vmatpush.bf16.msra.mxu0 %v866
        %2281 = vmatpush.bf16.msra.mxu0 %v862
        %2282 = vmatmul.bf16.gmra.mxu0 %v2148
        %v2283 = vpop.f32.mrf.mxu0
        %v2284 = vadd.f32 0.0, %v2283
        %v2285 = vpop.f32.mrf.mxu0
        %2286 = vdwg.mxu0
        %2287 = vmatpush.bf16.msra.mxu0 %v891
        %2288 = vmatpush.bf16.msra.mxu0 %v887
        %2289 = vmatpush.bf16.msra.mxu0 %v883
        %2290 = vmatpush.bf16.msra.mxu0 %v879
        %2291 = vmatpush.bf16.msra.mxu0 %v875
        %2292 = vmatpush.bf16.msra.mxu0 %v871
        %2293 = vmatpush.bf16.msra.mxu0 %v867
        %2294 = vmatpush.bf16.msra.mxu0 %v863
        %2295 = vmatmul.bf16.gmra.mxu0 %v2148
        %v2296 = vpop.f32.mrf.mxu0
        %v2297 = vadd.f32 0.0, %v2296
        %v2298 = vpop.f32.mrf.mxu0
        %2299 = vdwg.mxu0
        %2300 = vmatpush.bf16.msra.mxu0 %v892
        %2301 = vmatpush.bf16.msra.mxu0 %v888
        %2302 = vmatpush.bf16.msra.mxu0 %v884
        %2303 = vmatpush.bf16.msra.mxu0 %v880
        %2304 = vmatpush.bf16.msra.mxu0 %v876
        %2305 = vmatpush.bf16.msra.mxu0 %v872
        %2306 = vmatpush.bf16.msra.mxu0 %v868
        %2307 = vmatpush.bf16.msra.mxu0 %v864
        %2308 = vmatmul.bf16.gmra.mxu0 %v2148
        %v2309 = vpop.f32.mrf.mxu0
        %v2310 = vadd.f32 0.0, %v2309
        %v2311 = vpop.f32.mrf.mxu0
        %2312 = vdwg.mxu0
        %2313 = vmatpush.bf16.msra.mxu0 %v893
        %2314 = vmatpush.bf16.msra.mxu0 %v889
        %2315 = vmatpush.bf16.msra.mxu0 %v885
        %2316 = vmatpush.bf16.msra.mxu0 %v881
        %2317 = vmatpush.bf16.msra.mxu0 %v877
        %2318 = vmatpush.bf16.msra.mxu0 %v873
        %2319 = vmatpush.bf16.msra.mxu0 %v869
        %2320 = vmatpush.bf16.msra.mxu0 %v865
        %2321 = vmatmul.bf16.gmra.mxu0 %v2148
        %v2322 = vpop.f32.mrf.mxu0
        %v2323 = vadd.f32 0.0, %v2322
        %v2324 = vpop.f32.mrf.mxu0
        %2325 = vdwg.mxu0
        %2326 = vmatpush.bf16.msra.mxu0 %v1102
        %2327 = vmatpush.bf16.msra.mxu0 %v1098
        %2328 = vmatpush.bf16.msra.mxu0 %v1094
        %2329 = vmatpush.bf16.msra.mxu0 %v1090
        %2330 = vmatpush.bf16.msra.mxu0 %v1086
        %2331 = vmatpush.bf16.msra.mxu0 %v1082
        %2332 = vmatpush.bf16.msra.mxu0 %v1078
        %2333 = vmatpush.bf16.msra.mxu0 %v1074
        %2334 = vmatmul.bf16.gmra.mxu0 %v2273
        %v2335 = vpop.f32.mrf.mxu0
        %v2336 = vadd.f32 %v2284, %v2335
        %v2337 = vpop.f32.mrf.mxu0
        %2338 = vdwg.mxu0
        %2339 = vmatpush.bf16.msra.mxu0 %v1103
        %2340 = vmatpush.bf16.msra.mxu0 %v1099
        %2341 = vmatpush.bf16.msra.mxu0 %v1095
        %2342 = vmatpush.bf16.msra.mxu0 %v1091
        %2343 = vmatpush.bf16.msra.mxu0 %v1087
        %2344 = vmatpush.bf16.msra.mxu0 %v1083
        %2345 = vmatpush.bf16.msra.mxu0 %v1079
        %2346 = vmatpush.bf16.msra.mxu0 %v1075
        %2347 = vmatmul.bf16.gmra.mxu0 %v2273
        %v2348 = vpop.f32.mrf.mxu0
        %v2349 = vadd.f32 %v2297, %v2348
        %v2350 = vpop.f32.mrf.mxu0
        %2351 = vdwg.mxu0
        %2352 = vmatpush.bf16.msra.mxu0 %v1104
        %2353 = vmatpush.bf16.msra.mxu0 %v1100
        %2354 = vmatpush.bf16.msra.mxu0 %v1096
        %2355 = vmatpush.bf16.msra.mxu0 %v1092
        %2356 = vmatpush.bf16.msra.mxu0 %v1088
        %2357 = vmatpush.bf16.msra.mxu0 %v1084
        %2358 = vmatpush.bf16.msra.mxu0 %v1080
        %2359 = vmatpush.bf16.msra.mxu0 %v1076
        %2360 = vmatmul.bf16.gmra.mxu0 %v2273
        %v2361 = vpop.f32.mrf.mxu0
        %v2362 = vadd.f32 %v2310, %v2361
        %v2363 = vpop.f32.mrf.mxu0
        %2364 = vdwg.mxu0
        %2365 = vmatpush.bf16.msra.mxu0 %v1105
        %2366 = vmatpush.bf16.msra.mxu0 %v1101
        %2367 = vmatpush.bf16.msra.mxu0 %v1097
        %2368 = vmatpush.bf16.msra.mxu0 %v1093
        %2369 = vmatpush.bf16.msra.mxu0 %v1089
        %2370 = vmatpush.bf16.msra.mxu0 %v1085
        %2371 = vmatpush.bf16.msra.mxu0 %v1081
        %2372 = vmatpush.bf16.msra.mxu0 %v1077
        %2373 = vmatmul.bf16.gmra.mxu0 %v2273
        %v2374 = vpop.f32.mrf.mxu0
        %v2375 = vadd.f32 %v2323, %v2374
        %v2376 = vpop.f32.mrf.mxu0
        %2377 = vdwg.mxu0
        %v2378 = vadd.f32 %v2336, %v468
        %v2379 = vadd.f32 %v2349, %v469
        %v2380 = vadd.f32 %v2362, %v470
        %v2381 = vadd.f32 %v2375, %v471
        %v2382 = vxor.u32 %v2378, 2147483648
        %v2383 = vxor.u32 %v2379, 2147483648
        %v2384 = vxor.u32 %v2380, 2147483648
        %v2385 = vmul.f32 %v2382, 1.442695
        %v2386 = vpow.pop %v2385
        %v2387 = vmul.f32 %v2383, 1.442695
        %v2388 = vpow.pop %v2387
        %v2389 = vmul.f32 %v2384, 1.442695
        %v2390 = vpow.pop %v2389
        %v2391 = vadd.f32 %v2386, 1.0
        %v2392 = vadd.f32 %v2388, 1.0
        %v2393 = vadd.f32 %v2390, 1.0
        %v2394 = vrcp.pop %v2391
        %v2395 = vmul.f32 %v2391, %v2394
        %v2396 = vsub.f32 1.0, %v2395
        %v2397 = vmul.f32 %v2394, %v2396
        %v2398 = vadd.f32 %v2394, %v2397
        %vm2399 = vweird.f32 %v2391
        %vm2400 = vweird.f32 %v2394
        %vm2401 = vmor %vm2399, %vm2400
        %v2402 = vsel %vm2401, %v2394, %v2398
        %v2403 = vand.u32 2147483647, %v2391
        %vm2404 = vcmp.eq.f32.partialorder %v2403, 8.507059e+37
        %v2405 = vand.u32 %v2391, 2147483648
        %v2406 = vor.u32 1.1754944e-38, %v2405
        %v2407 = vsel %vm2404, %v2406, %v2402
        %v2408 = vmul.f32 1.0, %v2407
        %v2409 = vrcp.pop %v2392
        %v2410 = vmul.f32 %v2392, %v2409
        %v2411 = vsub.f32 1.0, %v2410
        %v2412 = vmul.f32 %v2409, %v2411
        %v2413 = vadd.f32 %v2409, %v2412
        %vm2414 = vweird.f32 %v2392
        %vm2415 = vweird.f32 %v2409
        %vm2416 = vmor %vm2414, %vm2415
        %v2417 = vsel %vm2416, %v2409, %v2413
        %v2418 = vand.u32 2147483647, %v2392
        %vm2419 = vcmp.eq.f32.partialorder %v2418, 8.507059e+37
        %v2420 = vand.u32 %v2392, 2147483648
        %v2421 = vor.u32 1.1754944e-38, %v2420
        %v2422 = vsel %vm2419, %v2421, %v2417
        %v2423 = vmul.f32 1.0, %v2422
        %v2424 = vrcp.pop %v2393
        %v2425 = vmul.f32 %v2393, %v2424
        %v2426 = vsub.f32 1.0, %v2425
        %v2427 = vmul.f32 %v2424, %v2426
        %v2428 = vadd.f32 %v2424, %v2427
        %vm2429 = vweird.f32 %v2393
        %vm2430 = vweird.f32 %v2424
        %vm2431 = vmor %vm2429, %vm2430
        %v2432 = vsel %vm2431, %v2424, %v2428
        %v2433 = vand.u32 2147483647, %v2393
        %vm2434 = vcmp.eq.f32.partialorder %v2433, 8.507059e+37
        %v2435 = vand.u32 %v2393, 2147483648
        %v2436 = vor.u32 1.1754944e-38, %v2435
        %v2437 = vsel %vm2434, %v2436, %v2432
        %v2438 = vmul.f32 1.0, %v2437
        %v2439 = vtanh.pop %v2381
        %v2440 = vmul.f32 %v2423, %v2145
        %v2441 = vmul.f32 %v2408, %v2439
        %v2442 = vadd.f32 %v2440, %v2441
        %v2443 = vtanh.pop %v2442
        %v2444 = vmul.f32 %v2438, %v2443
        %v2445 = vpack.c.bf16 %v2444, %v2444
        %s2446 = scalar_lea.vmem %s328, 160 [#allocation4]
        %v2447 = vld [vmem:[%s2446] sm:$0xff]
        %v2448 = vld [vmem:[%s2446 + $0x8] sm:$0xff]
        %v2449 = vld [vmem:[%s2446 + $0x10] sm:$0xff]
        %v2450 = vld [vmem:[%s2446 + $0x18] sm:$0xff]
        %2451 = vmatpush.bf16.msra.mxu0 %v610
        %2452 = vmatpush.bf16.msra.mxu0 %v606
        %2453 = vmatpush.bf16.msra.mxu0 %v602
        %2454 = vmatpush.bf16.msra.mxu0 %v598
        %2455 = vmatpush.bf16.msra.mxu0 %v594
        %2456 = vmatpush.bf16.msra.mxu0 %v590
        %2457 = vmatpush.bf16.msra.mxu0 %v586
        %2458 = vmatpush.bf16.msra.mxu0 %v582
        %2459 = vmatmul.bf16.gmra.mxu0 %v2273
        %v2460 = vpop.f32.mrf.mxu0
        %v2461 = vadd.f32 0.0, %v2460
        %v2462 = vpop.f32.mrf.mxu0
        %2463 = vdwg.mxu0
        %2464 = vmatpush.bf16.msra.mxu0 %v611
        %2465 = vmatpush.bf16.msra.mxu0 %v607
        %2466 = vmatpush.bf16.msra.mxu0 %v603
        %2467 = vmatpush.bf16.msra.mxu0 %v599
        %2468 = vmatpush.bf16.msra.mxu0 %v595
        %2469 = vmatpush.bf16.msra.mxu0 %v591
        %2470 = vmatpush.bf16.msra.mxu0 %v587
        %2471 = vmatpush.bf16.msra.mxu0 %v583
        %2472 = vmatmul.bf16.gmra.mxu0 %v2273
        %v2473 = vpop.f32.mrf.mxu0
        %v2474 = vadd.f32 0.0, %v2473
        %v2475 = vpop.f32.mrf.mxu0
        %2476 = vdwg.mxu0
        %2477 = vmatpush.bf16.msra.mxu0 %v612
        %2478 = vmatpush.bf16.msra.mxu0 %v608
        %2479 = vmatpush.bf16.msra.mxu0 %v604
        %2480 = vmatpush.bf16.msra.mxu0 %v600
        %2481 = vmatpush.bf16.msra.mxu0 %v596
        %2482 = vmatpush.bf16.msra.mxu0 %v592
        %2483 = vmatpush.bf16.msra.mxu0 %v588
        %2484 = vmatpush.bf16.msra.mxu0 %v584
        %2485 = vmatmul.bf16.gmra.mxu0 %v2273
        %v2486 = vpop.f32.mrf.mxu0
        %v2487 = vadd.f32 0.0, %v2486
        %v2488 = vpop.f32.mrf.mxu0
        %2489 = vdwg.mxu0
        %2490 = vmatpush.bf16.msra.mxu0 %v613
        %2491 = vmatpush.bf16.msra.mxu0 %v609
        %2492 = vmatpush.bf16.msra.mxu0 %v605
        %2493 = vmatpush.bf16.msra.mxu0 %v601
        %2494 = vmatpush.bf16.msra.mxu0 %v597
        %2495 = vmatpush.bf16.msra.mxu0 %v593
        %2496 = vmatpush.bf16.msra.mxu0 %v589
        %2497 = vmatpush.bf16.msra.mxu0 %v585
        %2498 = vmatmul.bf16.gmra.mxu0 %v2273
        %v2499 = vpop.f32.mrf.mxu0
        %v2500 = vadd.f32 0.0, %v2499
        %v2501 = vpop.f32.mrf.mxu0
        %2502 = vdwg.mxu0
        %v2503 = vadd.f32 %v2447, %v2461
        %v2504 = vadd.f32 %v2448, %v2474
        %v2505 = vadd.f32 %v2449, %v2487
        %v2506 = vadd.f32 %v2450, %v2500
        %v2507 = vxor.u32 %v2503, 2147483648
        %v2508 = vxor.u32 %v2504, 2147483648
        %v2509 = vxor.u32 %v2505, 2147483648
        %v2510 = vmul.f32 %v2507, 1.442695
        %v2511 = vpow.pop %v2510
        %v2512 = vmul.f32 %v2508, 1.442695
        %v2513 = vpow.pop %v2512
        %v2514 = vmul.f32 %v2509, 1.442695
        %v2515 = vpow.pop %v2514
        %v2516 = vadd.f32 %v2511, 1.0
        %v2517 = vadd.f32 %v2513, 1.0
        %v2518 = vadd.f32 %v2515, 1.0
        %v2519 = vrcp.pop %v2516
        %v2520 = vmul.f32 %v2516, %v2519
        %v2521 = vsub.f32 1.0, %v2520
        %v2522 = vmul.f32 %v2519, %v2521
        %v2523 = vadd.f32 %v2519, %v2522
        %vm2524 = vweird.f32 %v2516
        %vm2525 = vweird.f32 %v2519
        %vm2526 = vmor %vm2524, %vm2525
        %v2527 = vsel %vm2526, %v2519, %v2523
        %v2528 = vand.u32 2147483647, %v2516
        %vm2529 = vcmp.eq.f32.partialorder %v2528, 8.507059e+37
        %v2530 = vand.u32 %v2516, 2147483648
        %v2531 = vor.u32 1.1754944e-38, %v2530
        %v2532 = vsel %vm2529, %v2531, %v2527
        %v2533 = vmul.f32 1.0, %v2532
        %v2534 = vrcp.pop %v2517
        %v2535 = vmul.f32 %v2517, %v2534
        %v2536 = vsub.f32 1.0, %v2535
        %v2537 = vmul.f32 %v2534, %v2536
        %v2538 = vadd.f32 %v2534, %v2537
        %vm2539 = vweird.f32 %v2517
        %vm2540 = vweird.f32 %v2534
        %vm2541 = vmor %vm2539, %vm2540
        %v2542 = vsel %vm2541, %v2534, %v2538
        %v2543 = vand.u32 2147483647, %v2517
        %vm2544 = vcmp.eq.f32.partialorder %v2543, 8.507059e+37
        %v2545 = vand.u32 %v2517, 2147483648
        %v2546 = vor.u32 1.1754944e-38, %v2545
        %v2547 = vsel %vm2544, %v2546, %v2542
        %v2548 = vmul.f32 1.0, %v2547
        %v2549 = vrcp.pop %v2518
        %v2550 = vmul.f32 %v2518, %v2549
        %v2551 = vsub.f32 1.0, %v2550
        %v2552 = vmul.f32 %v2549, %v2551
        %v2553 = vadd.f32 %v2549, %v2552
        %vm2554 = vweird.f32 %v2518
        %vm2555 = vweird.f32 %v2549
        %vm2556 = vmor %vm2554, %vm2555
        %v2557 = vsel %vm2556, %v2549, %v2553
        %v2558 = vand.u32 2147483647, %v2518
        %vm2559 = vcmp.eq.f32.partialorder %v2558, 8.507059e+37
        %v2560 = vand.u32 %v2518, 2147483648
        %v2561 = vor.u32 1.1754944e-38, %v2560
        %v2562 = vsel %vm2559, %v2561, %v2557
        %v2563 = vmul.f32 1.0, %v2562
        %v2564 = vtanh.pop %v2506
        %v2565 = vmul.f32 %v2548, %v2270
        %v2566 = vmul.f32 %v2533, %v2564
        %v2567 = vadd.f32 %v2565, %v2566
        %v2568 = vtanh.pop %v2567
        %v2569 = vmul.f32 %v2563, %v2568
        %v2570 = vpack.c.bf16 %v2569, %v2569
        %2571 = vmatpush.bf16.msra.mxu0 %v890
        %2572 = vmatpush.bf16.msra.mxu0 %v886
        %2573 = vmatpush.bf16.msra.mxu0 %v882
        %2574 = vmatpush.bf16.msra.mxu0 %v878
        %2575 = vmatpush.bf16.msra.mxu0 %v874
        %2576 = vmatpush.bf16.msra.mxu0 %v870
        %2577 = vmatpush.bf16.msra.mxu0 %v866
        %2578 = vmatpush.bf16.msra.mxu0 %v862
        %2579 = vmatmul.bf16.gmra.mxu0 %v2445
        %v2580 = vpop.f32.mrf.mxu0
        %v2581 = vadd.f32 0.0, %v2580
        %v2582 = vpop.f32.mrf.mxu0
        %2583 = vdwg.mxu0
        %2584 = vmatpush.bf16.msra.mxu0 %v891
        %2585 = vmatpush.bf16.msra.mxu0 %v887
        %2586 = vmatpush.bf16.msra.mxu0 %v883
        %2587 = vmatpush.bf16.msra.mxu0 %v879
        %2588 = vmatpush.bf16.msra.mxu0 %v875
        %2589 = vmatpush.bf16.msra.mxu0 %v871
        %2590 = vmatpush.bf16.msra.mxu0 %v867
        %2591 = vmatpush.bf16.msra.mxu0 %v863
        %2592 = vmatmul.bf16.gmra.mxu0 %v2445
        %v2593 = vpop.f32.mrf.mxu0
        %v2594 = vadd.f32 0.0, %v2593
        %v2595 = vpop.f32.mrf.mxu0
        %2596 = vdwg.mxu0
        %2597 = vmatpush.bf16.msra.mxu0 %v892
        %2598 = vmatpush.bf16.msra.mxu0 %v888
        %2599 = vmatpush.bf16.msra.mxu0 %v884
        %2600 = vmatpush.bf16.msra.mxu0 %v880
        %2601 = vmatpush.bf16.msra.mxu0 %v876
        %2602 = vmatpush.bf16.msra.mxu0 %v872
        %2603 = vmatpush.bf16.msra.mxu0 %v868
        %2604 = vmatpush.bf16.msra.mxu0 %v864
        %2605 = vmatmul.bf16.gmra.mxu0 %v2445
        %v2606 = vpop.f32.mrf.mxu0
        %v2607 = vadd.f32 0.0, %v2606
        %v2608 = vpop.f32.mrf.mxu0
        %2609 = vdwg.mxu0
        %2610 = vmatpush.bf16.msra.mxu0 %v893
        %2611 = vmatpush.bf16.msra.mxu0 %v889
        %2612 = vmatpush.bf16.msra.mxu0 %v885
        %2613 = vmatpush.bf16.msra.mxu0 %v881
        %2614 = vmatpush.bf16.msra.mxu0 %v877
        %2615 = vmatpush.bf16.msra.mxu0 %v873
        %2616 = vmatpush.bf16.msra.mxu0 %v869
        %2617 = vmatpush.bf16.msra.mxu0 %v865
        %2618 = vmatmul.bf16.gmra.mxu0 %v2445
        %v2619 = vpop.f32.mrf.mxu0
        %v2620 = vadd.f32 0.0, %v2619
        %v2621 = vpop.f32.mrf.mxu0
        %2622 = vdwg.mxu0
        %2623 = vmatpush.bf16.msra.mxu0 %v1102
        %2624 = vmatpush.bf16.msra.mxu0 %v1098
        %2625 = vmatpush.bf16.msra.mxu0 %v1094
        %2626 = vmatpush.bf16.msra.mxu0 %v1090
        %2627 = vmatpush.bf16.msra.mxu0 %v1086
        %2628 = vmatpush.bf16.msra.mxu0 %v1082
        %2629 = vmatpush.bf16.msra.mxu0 %v1078
        %2630 = vmatpush.bf16.msra.mxu0 %v1074
        %2631 = vmatmul.bf16.gmra.mxu0 %v2570
        %v2632 = vpop.f32.mrf.mxu0
        %v2633 = vadd.f32 %v2581, %v2632
        %v2634 = vpop.f32.mrf.mxu0
        %2635 = vdwg.mxu0
        %2636 = vmatpush.bf16.msra.mxu0 %v1103
        %2637 = vmatpush.bf16.msra.mxu0 %v1099
        %2638 = vmatpush.bf16.msra.mxu0 %v1095
        %2639 = vmatpush.bf16.msra.mxu0 %v1091
        %2640 = vmatpush.bf16.msra.mxu0 %v1087
        %2641 = vmatpush.bf16.msra.mxu0 %v1083
        %2642 = vmatpush.bf16.msra.mxu0 %v1079
        %2643 = vmatpush.bf16.msra.mxu0 %v1075
        %2644 = vmatmul.bf16.gmra.mxu0 %v2570
        %v2645 = vpop.f32.mrf.mxu0
        %v2646 = vadd.f32 %v2594, %v2645
        %v2647 = vpop.f32.mrf.mxu0
        %2648 = vdwg.mxu0
        %2649 = vmatpush.bf16.msra.mxu0 %v1104
        %2650 = vmatpush.bf16.msra.mxu0 %v1100
        %2651 = vmatpush.bf16.msra.mxu0 %v1096
        %2652 = vmatpush.bf16.msra.mxu0 %v1092
        %2653 = vmatpush.bf16.msra.mxu0 %v1088
        %2654 = vmatpush.bf16.msra.mxu0 %v1084
        %2655 = vmatpush.bf16.msra.mxu0 %v1080
        %2656 = vmatpush.bf16.msra.mxu0 %v1076
        %2657 = vmatmul.bf16.gmra.mxu0 %v2570
        %v2658 = vpop.f32.mrf.mxu0
        %v2659 = vadd.f32 %v2607, %v2658
        %v2660 = vpop.f32.mrf.mxu0
        %2661 = vdwg.mxu0
        %2662 = vmatpush.bf16.msra.mxu0 %v1105
        %2663 = vmatpush.bf16.msra.mxu0 %v1101
        %2664 = vmatpush.bf16.msra.mxu0 %v1097
        %2665 = vmatpush.bf16.msra.mxu0 %v1093
        %2666 = vmatpush.bf16.msra.mxu0 %v1089
        %2667 = vmatpush.bf16.msra.mxu0 %v1085
        %2668 = vmatpush.bf16.msra.mxu0 %v1081
        %2669 = vmatpush.bf16.msra.mxu0 %v1077
        %2670 = vmatmul.bf16.gmra.mxu0 %v2570
        %v2671 = vpop.f32.mrf.mxu0
        %v2672 = vadd.f32 %v2620, %v2671
        %v2673 = vpop.f32.mrf.mxu0
        %2674 = vdwg.mxu0
        %v2675 = vadd.f32 %v2633, %v468
        %v2676 = vadd.f32 %v2646, %v469
        %v2677 = vadd.f32 %v2659, %v470
        %v2678 = vadd.f32 %v2672, %v471
        %v2679 = vxor.u32 %v2675, 2147483648
        %v2680 = vxor.u32 %v2676, 2147483648
        %v2681 = vxor.u32 %v2677, 2147483648
        %v2682 = vmul.f32 %v2679, 1.442695
        %v2683 = vpow.pop %v2682
        %v2684 = vmul.f32 %v2680, 1.442695
        %v2685 = vpow.pop %v2684
        %v2686 = vmul.f32 %v2681, 1.442695
        %v2687 = vpow.pop %v2686
        %v2688 = vadd.f32 %v2683, 1.0
        %v2689 = vadd.f32 %v2685, 1.0
        %v2690 = vadd.f32 %v2687, 1.0
        %v2691 = vrcp.pop %v2688
        %v2692 = vmul.f32 %v2688, %v2691
        %v2693 = vsub.f32 1.0, %v2692
        %v2694 = vmul.f32 %v2691, %v2693
        %v2695 = vadd.f32 %v2691, %v2694
        %vm2696 = vweird.f32 %v2688
        %vm2697 = vweird.f32 %v2691
        %vm2698 = vmor %vm2696, %vm2697
        %v2699 = vsel %vm2698, %v2691, %v2695
        %v2700 = vand.u32 2147483647, %v2688
        %vm2701 = vcmp.eq.f32.partialorder %v2700, 8.507059e+37
        %v2702 = vand.u32 %v2688, 2147483648
        %v2703 = vor.u32 1.1754944e-38, %v2702
        %v2704 = vsel %vm2701, %v2703, %v2699
        %v2705 = vmul.f32 1.0, %v2704
        %v2706 = vrcp.pop %v2689
        %v2707 = vmul.f32 %v2689, %v2706
        %v2708 = vsub.f32 1.0, %v2707
        %v2709 = vmul.f32 %v2706, %v2708
        %v2710 = vadd.f32 %v2706, %v2709
        %vm2711 = vweird.f32 %v2689
        %vm2712 = vweird.f32 %v2706
        %vm2713 = vmor %vm2711, %vm2712
        %v2714 = vsel %vm2713, %v2706, %v2710
        %v2715 = vand.u32 2147483647, %v2689
        %vm2716 = vcmp.eq.f32.partialorder %v2715, 8.507059e+37
        %v2717 = vand.u32 %v2689, 2147483648
        %v2718 = vor.u32 1.1754944e-38, %v2717
        %v2719 = vsel %vm2716, %v2718, %v2714
        %v2720 = vmul.f32 1.0, %v2719
        %v2721 = vrcp.pop %v2690
        %v2722 = vmul.f32 %v2690, %v2721
        %v2723 = vsub.f32 1.0, %v2722
        %v2724 = vmul.f32 %v2721, %v2723
        %v2725 = vadd.f32 %v2721, %v2724
        %vm2726 = vweird.f32 %v2690
        %vm2727 = vweird.f32 %v2721
        %vm2728 = vmor %vm2726, %vm2727
        %v2729 = vsel %vm2728, %v2721, %v2725
        %v2730 = vand.u32 2147483647, %v2690
        %vm2731 = vcmp.eq.f32.partialorder %v2730, 8.507059e+37
        %v2732 = vand.u32 %v2690, 2147483648
        %v2733 = vor.u32 1.1754944e-38, %v2732
        %v2734 = vsel %vm2731, %v2733, %v2729
        %v2735 = vmul.f32 1.0, %v2734
        %v2736 = vtanh.pop %v2678
        %v2737 = vmul.f32 %v2720, %v2442
        %v2738 = vmul.f32 %v2705, %v2736
        %v2739 = vadd.f32 %v2737, %v2738
        %v2740 = vtanh.pop %v2739
        %v2741 = vmul.f32 %v2735, %v2740
        %v2742 = vpack.c.bf16 %v2741, %v2741
        %s2743 = scalar_lea.vmem %s328, 192 [#allocation4]
        %v2744 = vld [vmem:[%s2743] sm:$0xff]
        %v2745 = vld [vmem:[%s2743 + $0x8] sm:$0xff]
        %v2746 = vld [vmem:[%s2743 + $0x10] sm:$0xff]
        %v2747 = vld [vmem:[%s2743 + $0x18] sm:$0xff]
        %2748 = vmatpush.bf16.msra.mxu0 %v610
        %2749 = vmatpush.bf16.msra.mxu0 %v606
        %2750 = vmatpush.bf16.msra.mxu0 %v602
        %2751 = vmatpush.bf16.msra.mxu0 %v598
        %2752 = vmatpush.bf16.msra.mxu0 %v594
        %2753 = vmatpush.bf16.msra.mxu0 %v590
        %2754 = vmatpush.bf16.msra.mxu0 %v586
        %2755 = vmatpush.bf16.msra.mxu0 %v582
        %2756 = vmatmul.bf16.gmra.mxu0 %v2570
        %v2757 = vpop.f32.mrf.mxu0
        %v2758 = vadd.f32 0.0, %v2757
        %v2759 = vpop.f32.mrf.mxu0
        %2760 = vdwg.mxu0
        %2761 = vmatpush.bf16.msra.mxu0 %v611
        %2762 = vmatpush.bf16.msra.mxu0 %v607
        %2763 = vmatpush.bf16.msra.mxu0 %v603
        %2764 = vmatpush.bf16.msra.mxu0 %v599
        %2765 = vmatpush.bf16.msra.mxu0 %v595
        %2766 = vmatpush.bf16.msra.mxu0 %v591
        %2767 = vmatpush.bf16.msra.mxu0 %v587
        %2768 = vmatpush.bf16.msra.mxu0 %v583
        %2769 = vmatmul.bf16.gmra.mxu0 %v2570
        %v2770 = vpop.f32.mrf.mxu0
        %v2771 = vadd.f32 0.0, %v2770
        %v2772 = vpop.f32.mrf.mxu0
        %2773 = vdwg.mxu0
        %2774 = vmatpush.bf16.msra.mxu0 %v612
        %2775 = vmatpush.bf16.msra.mxu0 %v608
        %2776 = vmatpush.bf16.msra.mxu0 %v604
        %2777 = vmatpush.bf16.msra.mxu0 %v600
        %2778 = vmatpush.bf16.msra.mxu0 %v596
        %2779 = vmatpush.bf16.msra.mxu0 %v592
        %2780 = vmatpush.bf16.msra.mxu0 %v588
        %2781 = vmatpush.bf16.msra.mxu0 %v584
        %2782 = vmatmul.bf16.gmra.mxu0 %v2570
        %v2783 = vpop.f32.mrf.mxu0
        %v2784 = vadd.f32 0.0, %v2783
        %v2785 = vpop.f32.mrf.mxu0
        %2786 = vdwg.mxu0
        %2787 = vmatpush.bf16.msra.mxu0 %v613
        %2788 = vmatpush.bf16.msra.mxu0 %v609
        %2789 = vmatpush.bf16.msra.mxu0 %v605
        %2790 = vmatpush.bf16.msra.mxu0 %v601
        %2791 = vmatpush.bf16.msra.mxu0 %v597
        %2792 = vmatpush.bf16.msra.mxu0 %v593
        %2793 = vmatpush.bf16.msra.mxu0 %v589
        %2794 = vmatpush.bf16.msra.mxu0 %v585
        %2795 = vmatmul.bf16.gmra.mxu0 %v2570
        %v2796 = vpop.f32.mrf.mxu0
        %v2797 = vadd.f32 0.0, %v2796
        %v2798 = vpop.f32.mrf.mxu0
        %2799 = vdwg.mxu0
        %v2800 = vadd.f32 %v2744, %v2758
        %v2801 = vadd.f32 %v2745, %v2771
        %v2802 = vadd.f32 %v2746, %v2784
        %v2803 = vadd.f32 %v2747, %v2797
        %v2804 = vxor.u32 %v2800, 2147483648
        %v2805 = vxor.u32 %v2801, 2147483648
        %v2806 = vxor.u32 %v2802, 2147483648
        %v2807 = vmul.f32 %v2804, 1.442695
        %v2808 = vpow.pop %v2807
        %v2809 = vmul.f32 %v2805, 1.442695
        %v2810 = vpow.pop %v2809
        %v2811 = vmul.f32 %v2806, 1.442695
        %v2812 = vpow.pop %v2811
        %v2813 = vadd.f32 %v2808, 1.0
        %v2814 = vadd.f32 %v2810, 1.0
        %v2815 = vadd.f32 %v2812, 1.0
        %v2816 = vrcp.pop %v2813
        %v2817 = vmul.f32 %v2813, %v2816
        %v2818 = vsub.f32 1.0, %v2817
        %v2819 = vmul.f32 %v2816, %v2818
        %v2820 = vadd.f32 %v2816, %v2819
        %vm2821 = vweird.f32 %v2813
        %vm2822 = vweird.f32 %v2816
        %vm2823 = vmor %vm2821, %vm2822
        %v2824 = vsel %vm2823, %v2816, %v2820
        %v2825 = vand.u32 2147483647, %v2813
        %vm2826 = vcmp.eq.f32.partialorder %v2825, 8.507059e+37
        %v2827 = vand.u32 %v2813, 2147483648
        %v2828 = vor.u32 1.1754944e-38, %v2827
        %v2829 = vsel %vm2826, %v2828, %v2824
        %v2830 = vmul.f32 1.0, %v2829
        %v2831 = vrcp.pop %v2814
        %v2832 = vmul.f32 %v2814, %v2831
        %v2833 = vsub.f32 1.0, %v2832
        %v2834 = vmul.f32 %v2831, %v2833
        %v2835 = vadd.f32 %v2831, %v2834
        %vm2836 = vweird.f32 %v2814
        %vm2837 = vweird.f32 %v2831
        %vm2838 = vmor %vm2836, %vm2837
        %v2839 = vsel %vm2838, %v2831, %v2835
        %v2840 = vand.u32 2147483647, %v2814
        %vm2841 = vcmp.eq.f32.partialorder %v2840, 8.507059e+37
        %v2842 = vand.u32 %v2814, 2147483648
        %v2843 = vor.u32 1.1754944e-38, %v2842
        %v2844 = vsel %vm2841, %v2843, %v2839
        %v2845 = vmul.f32 1.0, %v2844
        %v2846 = vrcp.pop %v2815
        %v2847 = vmul.f32 %v2815, %v2846
        %v2848 = vsub.f32 1.0, %v2847
        %v2849 = vmul.f32 %v2846, %v2848
        %v2850 = vadd.f32 %v2846, %v2849
        %vm2851 = vweird.f32 %v2815
        %vm2852 = vweird.f32 %v2846
        %vm2853 = vmor %vm2851, %vm2852
        %v2854 = vsel %vm2853, %v2846, %v2850
        %v2855 = vand.u32 2147483647, %v2815
        %vm2856 = vcmp.eq.f32.partialorder %v2855, 8.507059e+37
        %v2857 = vand.u32 %v2815, 2147483648
        %v2858 = vor.u32 1.1754944e-38, %v2857
        %v2859 = vsel %vm2856, %v2858, %v2854
        %v2860 = vmul.f32 1.0, %v2859
        %v2861 = vtanh.pop %v2803
        %v2862 = vmul.f32 %v2845, %v2567
        %v2863 = vmul.f32 %v2830, %v2861
        %v2864 = vadd.f32 %v2862, %v2863
        %v2865 = vtanh.pop %v2864
        %v2866 = vmul.f32 %v2860, %v2865
        %v2867 = vpack.c.bf16 %v2866, %v2866
        %2868 = vmatpush.bf16.msra.mxu0 %v890
        %2869 = vmatpush.bf16.msra.mxu0 %v886
        %2870 = vmatpush.bf16.msra.mxu0 %v882
        %2871 = vmatpush.bf16.msra.mxu0 %v878
        %2872 = vmatpush.bf16.msra.mxu0 %v874
        %2873 = vmatpush.bf16.msra.mxu0 %v870
        %2874 = vmatpush.bf16.msra.mxu0 %v866
        %2875 = vmatpush.bf16.msra.mxu0 %v862
        %2876 = vmatmul.bf16.gmra.mxu0 %v2742
        %v2877 = vpop.f32.mrf.mxu0
        %v2878 = vadd.f32 0.0, %v2877
        %v2879 = vpop.f32.mrf.mxu0
        %2880 = vdwg.mxu0
        %2881 = vmatpush.bf16.msra.mxu0 %v891
        %2882 = vmatpush.bf16.msra.mxu0 %v887
        %2883 = vmatpush.bf16.msra.mxu0 %v883
        %2884 = vmatpush.bf16.msra.mxu0 %v879
        %2885 = vmatpush.bf16.msra.mxu0 %v875
        %2886 = vmatpush.bf16.msra.mxu0 %v871
        %2887 = vmatpush.bf16.msra.mxu0 %v867
        %2888 = vmatpush.bf16.msra.mxu0 %v863
        %2889 = vmatmul.bf16.gmra.mxu0 %v2742
        %v2890 = vpop.f32.mrf.mxu0
        %v2891 = vadd.f32 0.0, %v2890
        %v2892 = vpop.f32.mrf.mxu0
        %2893 = vdwg.mxu0
        %2894 = vmatpush.bf16.msra.mxu0 %v892
        %2895 = vmatpush.bf16.msra.mxu0 %v888
        %2896 = vmatpush.bf16.msra.mxu0 %v884
        %2897 = vmatpush.bf16.msra.mxu0 %v880
        %2898 = vmatpush.bf16.msra.mxu0 %v876
        %2899 = vmatpush.bf16.msra.mxu0 %v872
        %2900 = vmatpush.bf16.msra.mxu0 %v868
        %2901 = vmatpush.bf16.msra.mxu0 %v864
        %2902 = vmatmul.bf16.gmra.mxu0 %v2742
        %v2903 = vpop.f32.mrf.mxu0
        %v2904 = vadd.f32 0.0, %v2903
        %v2905 = vpop.f32.mrf.mxu0
        %2906 = vdwg.mxu0
        %2907 = vmatpush.bf16.msra.mxu0 %v893
        %2908 = vmatpush.bf16.msra.mxu0 %v889
        %2909 = vmatpush.bf16.msra.mxu0 %v885
        %2910 = vmatpush.bf16.msra.mxu0 %v881
        %2911 = vmatpush.bf16.msra.mxu0 %v877
        %2912 = vmatpush.bf16.msra.mxu0 %v873
        %2913 = vmatpush.bf16.msra.mxu0 %v869
        %2914 = vmatpush.bf16.msra.mxu0 %v865
        %2915 = vmatmul.bf16.gmra.mxu0 %v2742
        %v2916 = vpop.f32.mrf.mxu0
        %v2917 = vadd.f32 0.0, %v2916
        %v2918 = vpop.f32.mrf.mxu0
        %2919 = vdwg.mxu0
        %2920 = vmatpush.bf16.msra.mxu0 %v1102
        %2921 = vmatpush.bf16.msra.mxu0 %v1098
        %2922 = vmatpush.bf16.msra.mxu0 %v1094
        %2923 = vmatpush.bf16.msra.mxu0 %v1090
        %2924 = vmatpush.bf16.msra.mxu0 %v1086
        %2925 = vmatpush.bf16.msra.mxu0 %v1082
        %2926 = vmatpush.bf16.msra.mxu0 %v1078
        %2927 = vmatpush.bf16.msra.mxu0 %v1074
        %2928 = vmatmul.bf16.gmra.mxu0 %v2867
        %v2929 = vpop.f32.mrf.mxu0
        %v2930 = vadd.f32 %v2878, %v2929
        %v2931 = vpop.f32.mrf.mxu0
        %2932 = vdwg.mxu0
        %2933 = vmatpush.bf16.msra.mxu0 %v1103
        %2934 = vmatpush.bf16.msra.mxu0 %v1099
        %2935 = vmatpush.bf16.msra.mxu0 %v1095
        %2936 = vmatpush.bf16.msra.mxu0 %v1091
        %2937 = vmatpush.bf16.msra.mxu0 %v1087
        %2938 = vmatpush.bf16.msra.mxu0 %v1083
        %2939 = vmatpush.bf16.msra.mxu0 %v1079
        %2940 = vmatpush.bf16.msra.mxu0 %v1075
        %2941 = vmatmul.bf16.gmra.mxu0 %v2867
        %v2942 = vpop.f32.mrf.mxu0
        %v2943 = vadd.f32 %v2891, %v2942
        %v2944 = vpop.f32.mrf.mxu0
        %2945 = vdwg.mxu0
        %2946 = vmatpush.bf16.msra.mxu0 %v1104
        %2947 = vmatpush.bf16.msra.mxu0 %v1100
        %2948 = vmatpush.bf16.msra.mxu0 %v1096
        %2949 = vmatpush.bf16.msra.mxu0 %v1092
        %2950 = vmatpush.bf16.msra.mxu0 %v1088
        %2951 = vmatpush.bf16.msra.mxu0 %v1084
        %2952 = vmatpush.bf16.msra.mxu0 %v1080
        %2953 = vmatpush.bf16.msra.mxu0 %v1076
        %2954 = vmatmul.bf16.gmra.mxu0 %v2867
        %v2955 = vpop.f32.mrf.mxu0
        %v2956 = vadd.f32 %v2904, %v2955
        %v2957 = vpop.f32.mrf.mxu0
        %2958 = vdwg.mxu0
        %2959 = vmatpush.bf16.msra.mxu0 %v1105
        %2960 = vmatpush.bf16.msra.mxu0 %v1101
        %2961 = vmatpush.bf16.msra.mxu0 %v1097
        %2962 = vmatpush.bf16.msra.mxu0 %v1093
        %2963 = vmatpush.bf16.msra.mxu0 %v1089
        %2964 = vmatpush.bf16.msra.mxu0 %v1085
        %2965 = vmatpush.bf16.msra.mxu0 %v1081
        %2966 = vmatpush.bf16.msra.mxu0 %v1077
        %2967 = vmatmul.bf16.gmra.mxu0 %v2867
        %v2968 = vpop.f32.mrf.mxu0
        %v2969 = vadd.f32 %v2917, %v2968
        %v2970 = vpop.f32.mrf.mxu0
        %2971 = vdwg.mxu0
        %v2972 = vadd.f32 %v2930, %v468
        %v2973 = vadd.f32 %v2943, %v469
        %v2974 = vadd.f32 %v2956, %v470
        %v2975 = vadd.f32 %v2969, %v471
        %v2976 = vxor.u32 %v2972, 2147483648
        %v2977 = vxor.u32 %v2973, 2147483648
        %v2978 = vxor.u32 %v2974, 2147483648
        %v2979 = vmul.f32 %v2976, 1.442695
        %v2980 = vpow.pop %v2979
        %v2981 = vmul.f32 %v2977, 1.442695
        %v2982 = vpow.pop %v2981
        %v2983 = vmul.f32 %v2978, 1.442695
        %v2984 = vpow.pop %v2983
        %v2985 = vadd.f32 %v2980, 1.0
        %v2986 = vadd.f32 %v2982, 1.0
        %v2987 = vadd.f32 %v2984, 1.0
        %v2988 = vrcp.pop %v2985
        %v2989 = vmul.f32 %v2985, %v2988
        %v2990 = vsub.f32 1.0, %v2989
        %v2991 = vmul.f32 %v2988, %v2990
        %v2992 = vadd.f32 %v2988, %v2991
        %vm2993 = vweird.f32 %v2985
        %vm2994 = vweird.f32 %v2988
        %vm2995 = vmor %vm2993, %vm2994
        %v2996 = vsel %vm2995, %v2988, %v2992
        %v2997 = vand.u32 2147483647, %v2985
        %vm2998 = vcmp.eq.f32.partialorder %v2997, 8.507059e+37
        %v2999 = vand.u32 %v2985, 2147483648
        %v3000 = vor.u32 1.1754944e-38, %v2999
        %v3001 = vsel %vm2998, %v3000, %v2996
        %v3002 = vmul.f32 1.0, %v3001
        %v3003 = vrcp.pop %v2986
        %v3004 = vmul.f32 %v2986, %v3003
        %v3005 = vsub.f32 1.0, %v3004
        %v3006 = vmul.f32 %v3003, %v3005
        %v3007 = vadd.f32 %v3003, %v3006
        %vm3008 = vweird.f32 %v2986
        %vm3009 = vweird.f32 %v3003
        %vm3010 = vmor %vm3008, %vm3009
        %v3011 = vsel %vm3010, %v3003, %v3007
        %v3012 = vand.u32 2147483647, %v2986
        %vm3013 = vcmp.eq.f32.partialorder %v3012, 8.507059e+37
        %v3014 = vand.u32 %v2986, 2147483648
        %v3015 = vor.u32 1.1754944e-38, %v3014
        %v3016 = vsel %vm3013, %v3015, %v3011
        %v3017 = vmul.f32 1.0, %v3016
        %v3018 = vrcp.pop %v2987
        %v3019 = vmul.f32 %v2987, %v3018
        %v3020 = vsub.f32 1.0, %v3019
        %v3021 = vmul.f32 %v3018, %v3020
        %v3022 = vadd.f32 %v3018, %v3021
        %vm3023 = vweird.f32 %v2987
        %vm3024 = vweird.f32 %v3018
        %vm3025 = vmor %vm3023, %vm3024
        %v3026 = vsel %vm3025, %v3018, %v3022
        %v3027 = vand.u32 2147483647, %v2987
        %vm3028 = vcmp.eq.f32.partialorder %v3027, 8.507059e+37
        %v3029 = vand.u32 %v2987, 2147483648
        %v3030 = vor.u32 1.1754944e-38, %v3029
        %v3031 = vsel %vm3028, %v3030, %v3026
        %v3032 = vmul.f32 1.0, %v3031
        %v3033 = vtanh.pop %v2975
        %v3034 = vmul.f32 %v3017, %v2739
        %v3035 = vmul.f32 %v3002, %v3033
        %v3036 = vadd.f32 %v3034, %v3035
        %v3037 = vtanh.pop %v3036
        %v3038 = vmul.f32 %v3032, %v3037
        %v3039 = vpack.c.bf16 %v3038, %v3038
        %s3040 = scalar_lea.vmem %s328, 224 [#allocation4]
        %v3041 = vld [vmem:[%s3040] sm:$0xff]
        %v3042 = vld [vmem:[%s3040 + $0x8] sm:$0xff]
        %v3043 = vld [vmem:[%s3040 + $0x10] sm:$0xff]
        %v3044 = vld [vmem:[%s3040 + $0x18] sm:$0xff]
        %3045 = vmatpush.bf16.msra.mxu0 %v610
        %3046 = vmatpush.bf16.msra.mxu0 %v606
        %3047 = vmatpush.bf16.msra.mxu0 %v602
        %3048 = vmatpush.bf16.msra.mxu0 %v598
        %3049 = vmatpush.bf16.msra.mxu0 %v594
        %3050 = vmatpush.bf16.msra.mxu0 %v590
        %3051 = vmatpush.bf16.msra.mxu0 %v586
        %3052 = vmatpush.bf16.msra.mxu0 %v582
        %3053 = vmatmul.bf16.gmra.mxu0 %v2867
        %v3054 = vpop.f32.mrf.mxu0
        %v3055 = vadd.f32 0.0, %v3054
        %v3056 = vpop.f32.mrf.mxu0
        %3057 = vdwg.mxu0
        %3058 = vmatpush.bf16.msra.mxu0 %v611
        %3059 = vmatpush.bf16.msra.mxu0 %v607
        %3060 = vmatpush.bf16.msra.mxu0 %v603
        %3061 = vmatpush.bf16.msra.mxu0 %v599
        %3062 = vmatpush.bf16.msra.mxu0 %v595
        %3063 = vmatpush.bf16.msra.mxu0 %v591
        %3064 = vmatpush.bf16.msra.mxu0 %v587
        %3065 = vmatpush.bf16.msra.mxu0 %v583
        %3066 = vmatmul.bf16.gmra.mxu0 %v2867
        %v3067 = vpop.f32.mrf.mxu0
        %v3068 = vadd.f32 0.0, %v3067
        %v3069 = vpop.f32.mrf.mxu0
        %3070 = vdwg.mxu0
        %3071 = vmatpush.bf16.msra.mxu0 %v612
        %3072 = vmatpush.bf16.msra.mxu0 %v608
        %3073 = vmatpush.bf16.msra.mxu0 %v604
        %3074 = vmatpush.bf16.msra.mxu0 %v600
        %3075 = vmatpush.bf16.msra.mxu0 %v596
        %3076 = vmatpush.bf16.msra.mxu0 %v592
        %3077 = vmatpush.bf16.msra.mxu0 %v588
        %3078 = vmatpush.bf16.msra.mxu0 %v584
        %3079 = vmatmul.bf16.gmra.mxu0 %v2867
        %v3080 = vpop.f32.mrf.mxu0
        %v3081 = vadd.f32 0.0, %v3080
        %v3082 = vpop.f32.mrf.mxu0
        %3083 = vdwg.mxu0
        %3084 = vmatpush.bf16.msra.mxu0 %v613
        %3085 = vmatpush.bf16.msra.mxu0 %v609
        %3086 = vmatpush.bf16.msra.mxu0 %v605
        %3087 = vmatpush.bf16.msra.mxu0 %v601
        %3088 = vmatpush.bf16.msra.mxu0 %v597
        %3089 = vmatpush.bf16.msra.mxu0 %v593
        %3090 = vmatpush.bf16.msra.mxu0 %v589
        %3091 = vmatpush.bf16.msra.mxu0 %v585
        %3092 = vmatmul.bf16.gmra.mxu0 %v2867
        %v3093 = vpop.f32.mrf.mxu0
        %v3094 = vadd.f32 0.0, %v3093
        %v3095 = vpop.f32.mrf.mxu0
        %3096 = vdwg.mxu0
        %v3097 = vadd.f32 %v3041, %v3055
        %v3098 = vadd.f32 %v3042, %v3068
        %v3099 = vadd.f32 %v3043, %v3081
        %v3100 = vadd.f32 %v3044, %v3094
        %v3101 = vxor.u32 %v3097, 2147483648
        %v3102 = vxor.u32 %v3098, 2147483648
        %v3103 = vxor.u32 %v3099, 2147483648
        %v3104 = vmul.f32 %v3101, 1.442695
        %v3105 = vpow.pop %v3104
        %v3106 = vmul.f32 %v3102, 1.442695
        %v3107 = vpow.pop %v3106
        %v3108 = vmul.f32 %v3103, 1.442695
        %v3109 = vpow.pop %v3108
        %v3110 = vadd.f32 %v3105, 1.0
        %v3111 = vadd.f32 %v3107, 1.0
        %v3112 = vadd.f32 %v3109, 1.0
        %v3113 = vrcp.pop %v3110
        %v3114 = vmul.f32 %v3110, %v3113
        %v3115 = vsub.f32 1.0, %v3114
        %v3116 = vmul.f32 %v3113, %v3115
        %v3117 = vadd.f32 %v3113, %v3116
        %vm3118 = vweird.f32 %v3110
        %vm3119 = vweird.f32 %v3113
        %vm3120 = vmor %vm3118, %vm3119
        %v3121 = vsel %vm3120, %v3113, %v3117
        %v3122 = vand.u32 2147483647, %v3110
        %vm3123 = vcmp.eq.f32.partialorder %v3122, 8.507059e+37
        %v3124 = vand.u32 %v3110, 2147483648
        %v3125 = vor.u32 1.1754944e-38, %v3124
        %v3126 = vsel %vm3123, %v3125, %v3121
        %v3127 = vmul.f32 1.0, %v3126
        %v3128 = vrcp.pop %v3111
        %v3129 = vmul.f32 %v3111, %v3128
        %v3130 = vsub.f32 1.0, %v3129
        %v3131 = vmul.f32 %v3128, %v3130
        %v3132 = vadd.f32 %v3128, %v3131
        %vm3133 = vweird.f32 %v3111
        %vm3134 = vweird.f32 %v3128
        %vm3135 = vmor %vm3133, %vm3134
        %v3136 = vsel %vm3135, %v3128, %v3132
        %v3137 = vand.u32 2147483647, %v3111
        %vm3138 = vcmp.eq.f32.partialorder %v3137, 8.507059e+37
        %v3139 = vand.u32 %v3111, 2147483648
        %v3140 = vor.u32 1.1754944e-38, %v3139
        %v3141 = vsel %vm3138, %v3140, %v3136
        %v3142 = vmul.f32 1.0, %v3141
        %v3143 = vrcp.pop %v3112
        %v3144 = vmul.f32 %v3112, %v3143
        %v3145 = vsub.f32 1.0, %v3144
        %v3146 = vmul.f32 %v3143, %v3145
        %v3147 = vadd.f32 %v3143, %v3146
        %vm3148 = vweird.f32 %v3112
        %vm3149 = vweird.f32 %v3143
        %vm3150 = vmor %vm3148, %vm3149
        %v3151 = vsel %vm3150, %v3143, %v3147
        %v3152 = vand.u32 2147483647, %v3112
        %vm3153 = vcmp.eq.f32.partialorder %v3152, 8.507059e+37
        %v3154 = vand.u32 %v3112, 2147483648
        %v3155 = vor.u32 1.1754944e-38, %v3154
        %v3156 = vsel %vm3153, %v3155, %v3151
        %v3157 = vmul.f32 1.0, %v3156
        %v3158 = vtanh.pop %v3100
        %v3159 = vmul.f32 %v3142, %v2864
        %v3160 = vmul.f32 %v3127, %v3158
        %v3161 = vadd.f32 %v3159, %v3160
        %v3162 = vtanh.pop %v3161
        %v3163 = vmul.f32 %v3157, %v3162
        %v3164 = vpack.c.bf16 %v3163, %v3163
        %3165 = vmatpush.bf16.msra.mxu0 %v890
        %3166 = vmatpush.bf16.msra.mxu0 %v886
        %3167 = vmatpush.bf16.msra.mxu0 %v882
        %3168 = vmatpush.bf16.msra.mxu0 %v878
        %3169 = vmatpush.bf16.msra.mxu0 %v874
        %3170 = vmatpush.bf16.msra.mxu0 %v870
        %3171 = vmatpush.bf16.msra.mxu0 %v866
        %3172 = vmatpush.bf16.msra.mxu0 %v862
        %3173 = vmatmul.bf16.gmra.mxu0 %v3039
        %v3174 = vpop.f32.mrf.mxu0
        %v3175 = vadd.f32 0.0, %v3174
        %v3176 = vpop.f32.mrf.mxu0
        %3177 = vdwg.mxu0
        %3178 = vmatpush.bf16.msra.mxu0 %v891
        %3179 = vmatpush.bf16.msra.mxu0 %v887
        %3180 = vmatpush.bf16.msra.mxu0 %v883
        %3181 = vmatpush.bf16.msra.mxu0 %v879
        %3182 = vmatpush.bf16.msra.mxu0 %v875
        %3183 = vmatpush.bf16.msra.mxu0 %v871
        %3184 = vmatpush.bf16.msra.mxu0 %v867
        %3185 = vmatpush.bf16.msra.mxu0 %v863
        %3186 = vmatmul.bf16.gmra.mxu0 %v3039
        %v3187 = vpop.f32.mrf.mxu0
        %v3188 = vadd.f32 0.0, %v3187
        %v3189 = vpop.f32.mrf.mxu0
        %3190 = vdwg.mxu0
        %3191 = vmatpush.bf16.msra.mxu0 %v892
        %3192 = vmatpush.bf16.msra.mxu0 %v888
        %3193 = vmatpush.bf16.msra.mxu0 %v884
        %3194 = vmatpush.bf16.msra.mxu0 %v880
        %3195 = vmatpush.bf16.msra.mxu0 %v876
        %3196 = vmatpush.bf16.msra.mxu0 %v872
        %3197 = vmatpush.bf16.msra.mxu0 %v868
        %3198 = vmatpush.bf16.msra.mxu0 %v864
        %3199 = vmatmul.bf16.gmra.mxu0 %v3039
        %v3200 = vpop.f32.mrf.mxu0
        %v3201 = vadd.f32 0.0, %v3200
        %v3202 = vpop.f32.mrf.mxu0
        %3203 = vdwg.mxu0
        %3204 = vmatpush.bf16.msra.mxu0 %v893
        %3205 = vmatpush.bf16.msra.mxu0 %v889
        %3206 = vmatpush.bf16.msra.mxu0 %v885
        %3207 = vmatpush.bf16.msra.mxu0 %v881
        %3208 = vmatpush.bf16.msra.mxu0 %v877
        %3209 = vmatpush.bf16.msra.mxu0 %v873
        %3210 = vmatpush.bf16.msra.mxu0 %v869
        %3211 = vmatpush.bf16.msra.mxu0 %v865
        %3212 = vmatmul.bf16.gmra.mxu0 %v3039
        %v3213 = vpop.f32.mrf.mxu0
        %v3214 = vadd.f32 0.0, %v3213
        %v3215 = vpop.f32.mrf.mxu0
        %3216 = vdwg.mxu0
        %3217 = vmatpush.bf16.msra.mxu0 %v1102
        %3218 = vmatpush.bf16.msra.mxu0 %v1098
        %3219 = vmatpush.bf16.msra.mxu0 %v1094
        %3220 = vmatpush.bf16.msra.mxu0 %v1090
        %3221 = vmatpush.bf16.msra.mxu0 %v1086
        %3222 = vmatpush.bf16.msra.mxu0 %v1082
        %3223 = vmatpush.bf16.msra.mxu0 %v1078
        %3224 = vmatpush.bf16.msra.mxu0 %v1074
        %3225 = vmatmul.bf16.gmra.mxu0 %v3164
        %v3226 = vpop.f32.mrf.mxu0
        %v3227 = vadd.f32 %v3175, %v3226
        %v3228 = vpop.f32.mrf.mxu0
        %3229 = vdwg.mxu0
        %3230 = vmatpush.bf16.msra.mxu0 %v1103
        %3231 = vmatpush.bf16.msra.mxu0 %v1099
        %3232 = vmatpush.bf16.msra.mxu0 %v1095
        %3233 = vmatpush.bf16.msra.mxu0 %v1091
        %3234 = vmatpush.bf16.msra.mxu0 %v1087
        %3235 = vmatpush.bf16.msra.mxu0 %v1083
        %3236 = vmatpush.bf16.msra.mxu0 %v1079
        %3237 = vmatpush.bf16.msra.mxu0 %v1075
        %3238 = vmatmul.bf16.gmra.mxu0 %v3164
        %v3239 = vpop.f32.mrf.mxu0
        %v3240 = vadd.f32 %v3188, %v3239
        %v3241 = vpop.f32.mrf.mxu0
        %3242 = vdwg.mxu0
        %3243 = vmatpush.bf16.msra.mxu0 %v1104
        %3244 = vmatpush.bf16.msra.mxu0 %v1100
        %3245 = vmatpush.bf16.msra.mxu0 %v1096
        %3246 = vmatpush.bf16.msra.mxu0 %v1092
        %3247 = vmatpush.bf16.msra.mxu0 %v1088
        %3248 = vmatpush.bf16.msra.mxu0 %v1084
        %3249 = vmatpush.bf16.msra.mxu0 %v1080
        %3250 = vmatpush.bf16.msra.mxu0 %v1076
        %3251 = vmatmul.bf16.gmra.mxu0 %v3164
        %v3252 = vpop.f32.mrf.mxu0
        %v3253 = vadd.f32 %v3201, %v3252
        %v3254 = vpop.f32.mrf.mxu0
        %3255 = vdwg.mxu0
        %3256 = vmatpush.bf16.msra.mxu0 %v1105
        %3257 = vmatpush.bf16.msra.mxu0 %v1101
        %3258 = vmatpush.bf16.msra.mxu0 %v1097
        %3259 = vmatpush.bf16.msra.mxu0 %v1093
        %3260 = vmatpush.bf16.msra.mxu0 %v1089
        %3261 = vmatpush.bf16.msra.mxu0 %v1085
        %3262 = vmatpush.bf16.msra.mxu0 %v1081
        %3263 = vmatpush.bf16.msra.mxu0 %v1077
        %3264 = vmatmul.bf16.gmra.mxu0 %v3164
        %v3265 = vpop.f32.mrf.mxu0
        %v3266 = vadd.f32 %v3214, %v3265
        %v3267 = vpop.f32.mrf.mxu0
        %3268 = vdwg.mxu0
        %v3269 = vadd.f32 %v3227, %v468
        %v3270 = vadd.f32 %v3240, %v469
        %v3271 = vadd.f32 %v3253, %v470
        %v3272 = vadd.f32 %v3266, %v471
        %v3273 = vxor.u32 %v3269, 2147483648
        %v3274 = vxor.u32 %v3270, 2147483648
        %v3275 = vxor.u32 %v3271, 2147483648
        %v3276 = vmul.f32 %v3273, 1.442695
        %v3277 = vpow.pop %v3276
        %v3278 = vmul.f32 %v3274, 1.442695
        %v3279 = vpow.pop %v3278
        %v3280 = vmul.f32 %v3275, 1.442695
        %v3281 = vpow.pop %v3280
        %v3282 = vadd.f32 %v3277, 1.0
        %v3283 = vadd.f32 %v3279, 1.0
        %v3284 = vadd.f32 %v3281, 1.0
        %v3285 = vrcp.pop %v3282
        %v3286 = vmul.f32 %v3282, %v3285
        %v3287 = vsub.f32 1.0, %v3286
        %v3288 = vmul.f32 %v3285, %v3287
        %v3289 = vadd.f32 %v3285, %v3288
        %vm3290 = vweird.f32 %v3282
        %vm3291 = vweird.f32 %v3285
        %vm3292 = vmor %vm3290, %vm3291
        %v3293 = vsel %vm3292, %v3285, %v3289
        %v3294 = vand.u32 2147483647, %v3282
        %vm3295 = vcmp.eq.f32.partialorder %v3294, 8.507059e+37
        %v3296 = vand.u32 %v3282, 2147483648
        %v3297 = vor.u32 1.1754944e-38, %v3296
        %v3298 = vsel %vm3295, %v3297, %v3293
        %v3299 = vmul.f32 1.0, %v3298
        %v3300 = vrcp.pop %v3283
        %v3301 = vmul.f32 %v3283, %v3300
        %v3302 = vsub.f32 1.0, %v3301
        %v3303 = vmul.f32 %v3300, %v3302
        %v3304 = vadd.f32 %v3300, %v3303
        %vm3305 = vweird.f32 %v3283
        %vm3306 = vweird.f32 %v3300
        %vm3307 = vmor %vm3305, %vm3306
        %v3308 = vsel %vm3307, %v3300, %v3304
        %v3309 = vand.u32 2147483647, %v3283
        %vm3310 = vcmp.eq.f32.partialorder %v3309, 8.507059e+37
        %v3311 = vand.u32 %v3283, 2147483648
        %v3312 = vor.u32 1.1754944e-38, %v3311
        %v3313 = vsel %vm3310, %v3312, %v3308
        %v3314 = vmul.f32 1.0, %v3313
        %v3315 = vrcp.pop %v3284
        %v3316 = vmul.f32 %v3284, %v3315
        %v3317 = vsub.f32 1.0, %v3316
        %v3318 = vmul.f32 %v3315, %v3317
        %v3319 = vadd.f32 %v3315, %v3318
        %vm3320 = vweird.f32 %v3284
        %vm3321 = vweird.f32 %v3315
        %vm3322 = vmor %vm3320, %vm3321
        %v3323 = vsel %vm3322, %v3315, %v3319
        %v3324 = vand.u32 2147483647, %v3284
        %vm3325 = vcmp.eq.f32.partialorder %v3324, 8.507059e+37
        %v3326 = vand.u32 %v3284, 2147483648
        %v3327 = vor.u32 1.1754944e-38, %v3326
        %v3328 = vsel %vm3325, %v3327, %v3323
        %v3329 = vmul.f32 1.0, %v3328
        %v3330 = vtanh.pop %v3272
        %v3331 = vmul.f32 %v3314, %v3036
        %v3332 = vmul.f32 %v3299, %v3330
        %v3333 = vadd.f32 %v3331, %v3332
        %v3334 = vtanh.pop %v3333
        %v3335 = vmul.f32 %v3329, %v3334
        %v3336 = vpack.c.bf16 %v3335, %v3335
        %3337 = vst [vmem:[#allocation2] sm:$0xf] %v3164
        %3338 = vst [vmem:[#allocation3] sm:$0xff] %v3161
        %3339 = vst [vmem:[%s477] sm:$0xf] %v3336
        %3340 = vst [vmem:[%s480] sm:$0xff] %v3333
        // Predicated region
        $region68: #{encoder_forward.1} parent=58 // pred_check
          %p3341 = pneg %p362
        $region69: #{encoder_forward.1} parent=58 // pred_check_branch
          %3343 = sbr.rel (%p3341) target = $region71
        $region70: #{encoder_forward.1} parent=58 // pred_region
          %v3344 = vld [vmem:[#allocation2] sm:$0xf]
          %v3345 = vld [vmem:[#allocation2 + $0x4] sm:$0xf]
          %v3346 = vunpack.c.l.bf16 %v3344
          %v3347 = vunpack.c.l.bf16 %v3345
          %3348 = vst [vmem:[%s352] sm:$0xff] %v3346
          %3349 = vst [vmem:[%s352 + $0x8] sm:$0xff] %v3347
          %v3350 = vld [vmem:[#allocation3] sm:$0xff]
          %v3351 = vld [vmem:[#allocation3 + $0x8] sm:$0xff]
          %3352 = vst [vmem:[%s359] sm:$0xff] %v3350
          %3353 = vst [vmem:[%s359 + $0x8] sm:$0xff] %v3351
        $region71: #{encoder_forward.1} parent=58 // pred_fallthru
          _
        %s3354 = sand.u32 %s156, 1
        %s3355 = scalar_lea.sflag [#allocation6], %s3354
        %s3356 = sand.u32 %s156, 1
        %s3357 = smul.addr %s3356, 16
        %s3358 = scalar_lea.vmem [#allocation5], %s3357
        %s3359 = sand.u32 %s182, 1
        %s3360 = scalar_lea.sflag [#allocation8], %s3359
        %s3361 = sand.u32 %s182, 1
        %s3362 = smul.addr %s3361, 16
        %s3363 = scalar_lea.vmem [#allocation7], %s3362
        // Predicated region
        $region72: #{encoder_forward.1} parent=58 // pred_check
          %p3364 = pneg %p166
        $region73: #{encoder_forward.1} parent=58 // pred_check_branch
          %3366 = sbr.rel (%p3364) target = $region75
        $region74: #{encoder_forward.1} parent=58 // pred_region
          %3368 = vsyncadd %s3355, 0
          %s3369 = smul.addr %s28, 8
          %s3370 = scalar_lea.hbm %s5, %s3369
          %s3371 = sshll.u32 %s3358, 4
          %s3372 = int_to_ptr.vmem [resolvable:$true] %s3371
          %s3373 = sshll.u32 %s3370, 4
          %s3374 = int_to_ptr.hbm [resolvable:$true] %s3373
          %3379 = dma.vmem_to_hbm [thread:$0]  %s3372, 256, %s3374, %s3355, 128, 256, 8
        $region75: #{encoder_forward.1} parent=58 // pred_fallthru
          _
        // Predicated region
        $region76: #{encoder_forward.1} parent=58 // pred_check
          %p3380 = pneg %p192
        $region77: #{encoder_forward.1} parent=58 // pred_check_branch
          %3382 = sbr.rel (%p3380) target = $region79
        $region78: #{encoder_forward.1} parent=58 // pred_region
          %3384 = vsyncadd %s3360, 0
          %s3385 = smul.addr %s28, 8
          %s3386 = scalar_lea.hbm %s6, %s3385
          %s3387 = sshll.u32 %s3363, 4
          %s3388 = int_to_ptr.vmem [resolvable:$true] %s3387
          %s3389 = sshll.u32 %s3386, 4
          %s3390 = int_to_ptr.hbm [resolvable:$true] %s3389
          %3395 = dma.vmem_to_hbm [thread:$0]  %s3388, 256, %s3390, %s3360, 128, 256, 8
        $region79: #{encoder_forward.1} parent=58 // pred_fallthru
          _
      $region59: #{encoder_forward.1} parent=5 // pred_fallthru
        _
      %p3396 = scmp.le.s32.totalorder 2, %s19
      // Predicated region
      $region80: #{encoder_forward.1} parent=5 // pred_check
        %p3397 = pneg %p3396
      $region81: #{encoder_forward.1} parent=5 // pred_check_branch
        %3399 = sbr.rel (%p3397) target = $region83
      $region82: #{encoder_forward.1} parent=5 // pred_region
        %s3400 = ssub.s32 %s19, 2
        // Predicated region
        $region84: #{encoder_forward.1} parent=82 // pred_check
          %p3401 = pneg %p172
        $region85: #{encoder_forward.1} parent=82 // pred_check_branch
          %3403 = sbr.rel (%p3401) target = $region87
        $region86: #{encoder_forward.1} parent=82 // pred_region
          %s3404 = sand.u32 %s157, 1
          %s3405 = scalar_lea.sflag [#allocation6], %s3404
          %s3406 = sand.u32 %s157, 1
          %s3407 = smul.addr %s3406, 16
          %s3408 = scalar_lea.vmem [#allocation5], %s3407
          %3410 = dma.done %s3405, 256
        $region87: #{encoder_forward.1} parent=82 // pred_fallthru
          _
        // Predicated region
        $region88: #{encoder_forward.1} parent=82 // pred_check
          %p3411 = pneg %p198
        $region89: #{encoder_forward.1} parent=82 // pred_check_branch
          %3413 = sbr.rel (%p3411) target = $region91
        $region90: #{encoder_forward.1} parent=82 // pred_region
          %s3414 = sand.u32 %s183, 1
          %s3415 = scalar_lea.sflag [#allocation8], %s3414
          %s3416 = sand.u32 %s183, 1
          %s3417 = smul.addr %s3416, 16
          %s3418 = scalar_lea.vmem [#allocation7], %s3417
          %3420 = dma.done %s3415, 256
        $region91: #{encoder_forward.1} parent=82 // pred_fallthru
          _
      $region83: #{encoder_forward.1} parent=5 // pred_fallthru
        _
    $region6: #{encoder_forward.1} parent=1 // loop_footer
      %s23 = sadd.s32 1, %s19
    $region7: #{encoder_forward.1} parent=1 // loop_footer_branch
      %18 = sbr.rel target = $region3
    $region8: #{encoder_forward.1} parent=1 // loop_exit
      _
    %3421 = vsyncpa [#allocation6], 1
    %s3422 = scalar_lea.sflag [#allocation6], 1
    %3423 = vsyncpa %s3422, 1
    %3424 = vsyncpa [#allocation8], 1
    %s3425 = scalar_lea.sflag [#allocation8], 1
    %3426 = vsyncpa %s3425, 1

</llo_original>
